<compile_context>
chip_gen: v6e
topology: v6e:2x2x1
jax: 0.10.0
libtpu: 0.0.40
codegen_flags: <defaults>
</compile_context>

<pallas_src>
import jax
import jax.numpy as jnp
import numpy as np
from jax import lax
from jax.experimental import pallas as pl
from jax.experimental.pallas import tpu as pltpu

# ---- physical constants (identical to the PyTorch module) -------------------
G = 6.67408e-11
m_nd = 1.989e+30
r_nd = 5326000000000.0
t_nd = 79.91 * 365 * 24 * 3600 * 0.51
v_nd = 30000.0
K1 = G * t_nd * m_nd / (r_nd ** 2 * v_nd)
K2 = v_nd * t_nd / r_nd

_STATE = 18
_PACK = 64                       # 64 states per packed row: 64*18 = 1152 = 9*128 lanes
_PACKED_W = _PACK * _STATE       # 1152
_CHUNK_R = 64                    # packed rows per in-kernel chunk (resident)  = 4096 states
_TILE_R = 512                    # packed rows per grid step (streaming)       = 32768 states
_SMALL_B_LIMIT = 131072          # states: resident (2 HBM passes) vs streaming (3 passes)
_VMEM_LIMIT = 48 * 1024 * 1024   # explicit scoped-VMEM budget, safe on v5e/v6e/v7x

# ---- static per-lane selector / coefficient rows (channel = lane % 18) -------
_c = np.arange(_PACKED_W) % _STATE
_SEL_DV1 = jnp.asarray(((_c >= 9) & (_c < 12)).astype(np.float32))   # dv1 lanes
_SEL_DV2 = jnp.asarray(((_c >= 12) & (_c < 15)).astype(np.float32))  # dv2 lanes
_SEL_DV3 = jnp.asarray((_c >= 15).astype(np.float32))                # dv3 lanes
_KR_ROW = jnp.asarray(
    np.where(_c < 9, np.float32(K2), np.float32(0.0)).astype(np.float32))  # dr lanes (K2)
_MASK_ROWS = jnp.stack([_SEL_DV1, _SEL_DV2, _SEL_DV3, _KR_ROW])      # (4, 1152)


# ------------------------------ shared kernel math ---------------------------
def _shifted_views(w):
    """Lane-rolled copies of the packed state + pair-difference slabs.

    Only lanes whose channel is covered by a non-zero coefficient row are
    meaningful; every other lane (including circular wrap at the row edge) is
    multiplied by 0 downstream, so rolls never mix data across 18-lane groups
    where it matters.
    """
    w3 = jnp.roll(w, 3, axis=1)
    w6 = jnp.roll(w, 6, axis=1)
    w9 = jnp.roll(w, 9, axis=1)
    w12 = jnp.roll(w, 12, axis=1)
    w15 = jnp.roll(w, 15, axis=1)
    wm9 = jnp.roll(w, -9, axis=1)    # velocities aligned onto the dr lanes
    t1 = w6 - w9     # r2-r1 on dv1 lanes,  r3-r2 on dv2 lanes
    t2 = w9 - w15    # r3-r1 on dv3 lanes
    t3 = w3 - w9     # r3-r1 on dv1 lanes
    t4 = w9 - w12    # r2-r1 on dv2 lanes,  r3-r2 on dv3 lanes
    return wm9, t1, t2, t3, t4


def _combine(wm9, t1, t2, t3, t4, kr, a1, a2, a3, a4):
    # Full-lane-density linear combination: 5 muls + 4 adds over whole slabs.
    return kr * wm9 + a1 * t1 + a2 * t2 + a3 * t3 + a4 * t4


# --------------------- streaming path (large B): grid kernel -----------------
def _streaming_kernel(coef_ref, w_ref, out_ref):
    # coef_ref: VMEM (5, 1152) = [kr, a1, a2, a3, a4]; w_ref/out_ref: (TILE_R, 1152)
    c = coef_ref[...]
    wm9, t1, t2, t3, t4 = _shifted_views(w_ref[...])
    out_ref[...] = _combine(wm9, t1, t2, t3, t4,
                            c[0:1], c[1:2], c[2:3], c[3:4], c[4:5])


# --------------- resident path (small/mid B): whole state in VMEM ------------
def _resident_kernel(mass_ref, masks_ref, w_ref, out_ref):
    # mass_ref: SMEM (3,); masks_ref: VMEM (4, 1152); w_ref/out_ref: VMEM (R, 1152)
    n_chunks = w_ref.shape[0] // _CHUNK_R
    sel_dv1 = masks_ref[0:1, :]
    sel_dv2 = masks_ref[1:2, :]
    sel_dv3 = masks_ref[2:3, :]
    kr = masks_ref[3:4, :]

    # Pass 1 (VMEM-resident): batch-global pairwise sums of squares.
    def _sums_body(i, carry):
        s12, s13, s23 = carry
        row = pl.multiple_of(i * _CHUNK_R, _CHUNK_R)
        _, t1, t2, _, _ = _shifted_views(w_ref[pl.ds(row, _CHUNK_R), :])
        t1sq = t1 * t1
        s12 = s12 + jnp.sum(t1sq * sel_dv1, keepdims=True)
        s23 = s23 + jnp.sum(t1sq * sel_dv2, keepdims=True)
        s13 = s13 + jnp.sum((t2 * t2) * sel_dv3, keepdims=True)
        return s12, s13, s23

    zero = jnp.zeros((1, 1), jnp.float32)
    s12, s13, s23 = lax.fori_loop(0, n_chunks, _sums_body, (zero, zero, zero))

    k1 = jnp.float32(K1)
    m1 = mass_ref[0]
    m2 = mass_ref[1]
    m3 = mass_ref[2]
    # 1/|r|^3 = rsqrt(s)/s  (no s**3 -> no premature f32 overflow)
    inv12 = lax.rsqrt(s12) / s12
    inv13 = lax.rsqrt(s13) / s13
    inv23 = lax.rsqrt(s23) / s23
    a1 = (k1 * m2 * inv12) * sel_dv1 + (k1 * m3 * inv23) * sel_dv2
    a2 = (-k1 * m1 * inv13) * sel_dv3
    a3 = (k1 * m3 * inv13) * sel_dv1
    a4 = (-k1 * m1 * inv12) * sel_dv2 + (-k1 * m2 * inv23) * sel_dv3

    # Pass 2 (VMEM-resident): derivatives, chunked to bound live temporaries.
    def _out_body(i, carry):
        row = pl.multiple_of(i * _CHUNK_R, _CHUNK_R)
        wm9, t1, t2, t3, t4 = _shifted_views(w_ref[pl.ds(row, _CHUNK_R), :])
        out_ref[pl.ds(row, _CHUNK_R), :] = _combine(
            wm9, t1, t2, t3, t4, kr, a1, a2, a3, a4)
        return carry

    lax.fori_loop(0, n_chunks, _out_body, 0)


# --------------------------------- wrappers -----------------------------------
def _pack_state(w, row_multiple=1):
    """(B, 18) -> (Bp/64, 1152) lane-dense packing (zero rows are inert)."""
    b = w.shape[0]
    unit = _PACK * row_multiple
    bp = ((b + unit - 1) // unit) * unit
    if bp != b:
        w = jnp.pad(w, ((0, bp - b), (0, 0)))
    return w.reshape(bp // _PACK, _PACKED_W), bp


def _coeff_rows(masses, s12, s13, s23):
    m1, m2, m3 = masses[0], masses[1], masses[2]
    k1 = jnp.float32(K1)
    inv12 = lax.rsqrt(s12) / s12
    inv13 = lax.rsqrt(s13) / s13
    inv23 = lax.rsqrt(s23) / s23
    a1 = (k1 * m2 * inv12) * _SEL_DV1 + (k1 * m3 * inv23) * _SEL_DV2
    a2 = (-k1 * m1 * inv13) * _SEL_DV3
    a3 = (k1 * m3 * inv13) * _SEL_DV1
    a4 = (-k1 * m1 * inv12) * _SEL_DV2 + (-k1 * m2 * inv23) * _SEL_DV3
    return jnp.stack([_KR_ROW, a1, a2, a3, a4])     # (5, 1152)


def _three_body_resident(w, masses):
    b = w.shape[0]
    wp, bp = _pack_state(w, _CHUNK_R)
    out = pl.pallas_call(
        _resident_kernel,
        out_shape=jax.ShapeDtypeStruct(wp.shape, jnp.float32),
        in_specs=[
            pl.BlockSpec(memory_space=pltpu.MemorySpace.SMEM),   # masses
            pl.BlockSpec(memory_space=pltpu.MemorySpace.VMEM),   # selector rows
            pl.BlockSpec(memory_space=pltpu.MemorySpace.VMEM),   # packed state
        ],
        out_specs=pl.BlockSpec(memory_space=pltpu.MemorySpace.VMEM),
        compiler_params=pltpu.CompilerParams(vmem_limit_bytes=_VMEM_LIMIT),
    )(masses, _MASK_ROWS, wp)
    return out.reshape(bp, _STATE)[:b]


def _three_body_streaming(w, masses):
    b = w.shape[0]
    # Pass 1: batch-global pairwise sums of squares as one fused XLA reduction
    # (single HBM read of w); the Pallas grid below does the heavy elementwise work.
    d12 = w[:, 3:6] - w[:, 0:3]
    d13 = w[:, 6:9] - w[:, 0:3]
    d23 = w[:, 6:9] - w[:, 3:6]
    s12 = jnp.sum(d12 * d12)
    s13 = jnp.sum(d13 * d13)
    s23 = jnp.sum(d23 * d23)
    coef = _coeff_rows(masses, s12, s13, s23)

    wp, bp = _pack_state(w, 1)          # pad only to a multiple of 64 states
    r = wp.shape[0]
    out = pl.pallas_call(
        _streaming_kernel,
        out_shape=jax.ShapeDtypeStruct((r, _PACKED_W), jnp.float32),
        grid=(pl.cdiv(r, _TILE_R),),
        in_specs=[
            pl.BlockSpec((5, _PACKED_W), lambda i: (0, 0)),         # coefficient rows
            pl.BlockSpec((_TILE_R, _PACKED_W), lambda i: (i, 0)),   # state tile
        ],
        out_specs=pl.BlockSpec((_TILE_R, _PACKED_W), lambda i: (i, 0)),
        compiler_params=pltpu.CompilerParams(
            dimension_semantics=("parallel",),
            vmem_limit_bytes=_VMEM_LIMIT),
    )(coef, wp)
    return out.reshape(bp, _STATE)[:b]


def three_body_equations(t, w, masses, *, small_b_limit=_SMALL_B_LIMIT):
    """Pallas equivalent of TorchThreeBodyEquations.forward(t, w).

    t: unused (signature parity with the torch module).
    w: (B, 18) float32 state.
    masses: (3,) float32 = [m1, m2, m3] parameters.
    """
    del t  # unused by the math, as in the torch module
    b, d = w.shape
    assert d == _STATE
    w = w.astype(jnp.float32)
    masses = jnp.asarray(masses, jnp.float32).reshape((3,))
    if b <= small_b_limit:
        return _three_body_resident(w, masses)
    return _three_body_streaming(w, masses)


# ------------------------------- pure-JAX reference --------------------------
def _reference(t, w, masses):
    m1, m2, m3 = masses[0], masses[1], masses[2]
    r1, r2, r3 = w[..., 0:3], w[..., 3:6], w[..., 6:9]
    v1, v2, v3 = w[..., 9:12], w[..., 12:15], w[..., 15:18]
    r12 = jnp.linalg.norm((r2 - r1).reshape(-1))
    r13 = jnp.linalg.norm((r3 - r1).reshape(-1))
    r23 = jnp.linalg.norm((r3 - r2).reshape(-1))
    dv1 = K1 * m2 * (r2 - r1) / r12 ** 3 + K1 * m3 * (r3 - r1) / r13 ** 3
    dv2 = K1 * m1 * (r1 - r2) / r12 ** 3 + K1 * m3 * (r3 - r2) / r23 ** 3
    dv3 = K1 * m1 * (r1 - r3) / r13 ** 3 + K1 * m2 * (r2 - r3) / r23 ** 3
    return jnp.concatenate(
        [K2 * v1, K2 * v2, K2 * v3, dv1, dv2, dv3], axis=-1
    ).astype(jnp.float32)


if __name__ == "__main__":
    key = jax.random.PRNGKey(0)
    k_m, k_w1, k_w2 = jax.random.split(key, 3)

    # Deterministic parameter init: (rand - 0.5) * 0.2 + 1.0 per mass.
    u = jax.random.uniform(k_m, (3,), dtype=jnp.float32)
    masses = (u - 0.5) * 0.2 + 1.0

    t = jnp.float32(0.0)

    # Small batch -> VMEM-resident single-kernel path.
    B_small = 96
    w_small = 0.04 * jax.random.normal(k_w1, (B_small, _STATE), dtype=jnp.float32)
    out_small = jax.block_until_ready(three_body_equations(t, w_small, masses))
    ref_small = _reference(t, w_small, masses)
    assert out_small.shape == (B_small, _STATE) and out_small.dtype == jnp.float32
    assert jnp.allclose(out_small, ref_small, rtol=1e-4, atol=1e-7), \
        float(jnp.max(jnp.abs(out_small - ref_small)))

    # Modest batch forced through the streaming (tiled) path so both kernels
    # are exercised, including a ragged last tile (40000/64 = 625 packed rows).
    B_big = 40000
    w_big = 0.002 * jax.random.normal(k_w2, (B_big, _STATE), dtype=jnp.float32)
    out_big = jax.block_until_ready(
        three_body_equations(t, w_big, masses, small_b_limit=0))
    ref_big = _reference(t, w_big, masses)
    assert out_big.shape == (B_big, _STATE) and out_big.dtype == jnp.float32
    assert jnp.allclose(out_big, ref_big, rtol=1e-4, atol=1e-7), \
        float(jnp.max(jnp.abs(out_big - ref_big)))

    print("KERNEL_OK")
</pallas_src>

<mosaic_0001>
module attributes {stable_mosaic.version = 11 : i64} {
  func.func @_resident_kernel(%arg0: memref<3xf32, #tpu.memory_space<smem>>, %arg1: memref<4x1152xf32, #tpu.memory_space<vmem>>, %arg2: memref<64x1152xf32, #tpu.memory_space<vmem>>, %arg3: memref<64x1152xf32, #tpu.memory_space<vmem>>) attributes {dimension_semantics = [], scalar_prefetch = 0 : i64, scratch_operands = 0 : i64, tpu.core_type = #tpu.core_type<tc>} {
    %c0 = arith.constant 0 : index
    %c0_0 = arith.constant 0 : index
    %0 = vector.load %arg1[%c0, %c0_0] : memref<4x1152xf32, #tpu.memory_space<vmem>>, vector<1x1152xf32>
    %c1 = arith.constant 1 : index
    %c0_1 = arith.constant 0 : index
    %1 = vector.load %arg1[%c1, %c0_1] : memref<4x1152xf32, #tpu.memory_space<vmem>>, vector<1x1152xf32>
    %c2 = arith.constant 2 : index
    %c0_2 = arith.constant 0 : index
    %2 = vector.load %arg1[%c2, %c0_2] : memref<4x1152xf32, #tpu.memory_space<vmem>>, vector<1x1152xf32>
    %c3 = arith.constant 3 : index
    %c0_3 = arith.constant 0 : index
    %3 = vector.load %arg1[%c3, %c0_3] : memref<4x1152xf32, #tpu.memory_space<vmem>>, vector<1x1152xf32>
    %cst = arith.constant 0.000000e+00 : f32
    %4 = vector.broadcast %cst : f32 to vector<1x1xf32>
    %c0_i32 = arith.constant 0 : i32
    %c64_i32 = arith.constant 64 : i32
    %5 = arith.muli %c0_i32, %c64_i32 : i32
    %6 = tpu.assume_multiple %5, 64 : i32
    %7 = arith.index_cast %6 : i32 to index
    %c0_4 = arith.constant 0 : index
    %8 = vector.load %arg2[%7, %c0_4] : memref<64x1152xf32, #tpu.memory_space<vmem>>, vector<64x1152xf32>
    %9 = vector.extract_strided_slice %8 {offsets = [0, 1146], sizes = [64, 6], strides = [1, 1]} : vector<64x1152xf32> to vector<64x6xf32>
    %10 = vector.extract_strided_slice %8 {offsets = [0, 0], sizes = [64, 1146], strides = [1, 1]} : vector<64x1152xf32> to vector<64x1146xf32>
    %11 = tpu.concatenate %9, %10 in 1 : vector<64x6xf32>, vector<64x1146xf32> -> vector<64x1152xf32>
    %12 = vector.extract_strided_slice %8 {offsets = [0, 1143], sizes = [64, 9], strides = [1, 1]} : vector<64x1152xf32> to vector<64x9xf32>
    %13 = vector.extract_strided_slice %8 {offsets = [0, 0], sizes = [64, 1143], strides = [1, 1]} : vector<64x1152xf32> to vector<64x1143xf32>
    %14 = tpu.concatenate %12, %13 in 1 : vector<64x9xf32>, vector<64x1143xf32> -> vector<64x1152xf32>
    %15 = vector.extract_strided_slice %8 {offsets = [0, 1137], sizes = [64, 15], strides = [1, 1]} : vector<64x1152xf32> to vector<64x15xf32>
    %16 = vector.extract_strided_slice %8 {offsets = [0, 0], sizes = [64, 1137], strides = [1, 1]} : vector<64x1152xf32> to vector<64x1137xf32>
    %17 = tpu.concatenate %15, %16 in 1 : vector<64x15xf32>, vector<64x1137xf32> -> vector<64x1152xf32>
    %18 = arith.subf %11, %14 : vector<64x1152xf32>
    %19 = arith.subf %14, %17 : vector<64x1152xf32>
    %20 = arith.mulf %18, %18 : vector<64x1152xf32>
    %21 = vector.broadcast %0 : vector<1x1152xf32> to vector<64x1152xf32>
    %22 = arith.mulf %20, %21 : vector<64x1152xf32>
    %23 = vector.shape_cast %22 : vector<64x1152xf32> to vector<1x64x1152xf32>
    %cst_5 = arith.constant dense<0.000000e+00> : vector<1xf32>
    %24 = vector.multi_reduction <add>, %23, %cst_5 [1, 2] : vector<1x64x1152xf32> to vector<1xf32>
    %25 = vector.shape_cast %24 : vector<1xf32> to vector<1x1x1xf32>
    %26 = vector.extract %25[0, 0, 0] : f32 from vector<1x1x1xf32>
    %27 = vector.broadcast %26 : f32 to vector<1x1xf32>
    %28 = arith.addf %4, %27 : vector<1x1xf32>
    %29 = vector.broadcast %1 : vector<1x1152xf32> to vector<64x1152xf32>
    %30 = arith.mulf %20, %29 : vector<64x1152xf32>
    %31 = vector.shape_cast %30 : vector<64x1152xf32> to vector<1x64x1152xf32>
    %cst_6 = arith.constant dense<0.000000e+00> : vector<1xf32>
    %32 = vector.multi_reduction <add>, %31, %cst_6 [1, 2] : vector<1x64x1152xf32> to vector<1xf32>
    %33 = vector.shape_cast %32 : vector<1xf32> to vector<1x1x1xf32>
    %34 = vector.extract %33[0, 0, 0] : f32 from vector<1x1x1xf32>
    %35 = vector.broadcast %34 : f32 to vector<1x1xf32>
    %36 = arith.addf %4, %35 : vector<1x1xf32>
    %37 = arith.mulf %19, %19 : vector<64x1152xf32>
    %38 = vector.broadcast %2 : vector<1x1152xf32> to vector<64x1152xf32>
    %39 = arith.mulf %37, %38 : vector<64x1152xf32>
    %40 = vector.shape_cast %39 : vector<64x1152xf32> to vector<1x64x1152xf32>
    %cst_7 = arith.constant dense<0.000000e+00> : vector<1xf32>
    %41 = vector.multi_reduction <add>, %40, %cst_7 [1, 2] : vector<1x64x1152xf32> to vector<1xf32>
    %42 = vector.shape_cast %41 : vector<1xf32> to vector<1x1x1xf32>
    %43 = vector.extract %42[0, 0, 0] : f32 from vector<1x1x1xf32>
    %44 = vector.broadcast %43 : f32 to vector<1x1xf32>
    %45 = arith.addf %4, %44 : vector<1x1xf32>
    %c1_i32 = arith.constant 1 : i32
    %c0_8 = arith.constant 0 : index
    %46 = memref.load %arg0[%c0_8] : memref<3xf32, #tpu.memory_space<smem>>
    %c1_9 = arith.constant 1 : index
    %47 = memref.load %arg0[%c1_9] : memref<3xf32, #tpu.memory_space<smem>>
    %c2_10 = arith.constant 2 : index
    %48 = memref.load %arg0[%c2_10] : memref<3xf32, #tpu.memory_space<smem>>
    %49 = math.rsqrt %28 : vector<1x1xf32>
    %50 = arith.divf %49, %28 : vector<1x1xf32>
    %51 = math.rsqrt %45 : vector<1x1xf32>
    %52 = arith.divf %51, %45 : vector<1x1xf32>
    %53 = math.rsqrt %36 : vector<1x1xf32>
    %54 = arith.divf %53, %36 : vector<1x1xf32>
    %cst_11 = arith.constant 0.20048438 : f32
    %55 = arith.mulf %cst_11, %47 : f32
    %56 = vector.broadcast %55 : f32 to vector<1x1xf32>
    %57 = arith.mulf %56, %50 : vector<1x1xf32>
    %58 = vector.broadcast %57 : vector<1x1xf32> to vector<1x1152xf32>
    %59 = arith.mulf %58, %0 : vector<1x1152xf32>
    %cst_12 = arith.constant 0.20048438 : f32
    %60 = arith.mulf %cst_12, %48 : f32
    %61 = vector.broadcast %60 : f32 to vector<1x1xf32>
    %62 = arith.mulf %61, %54 : vector<1x1xf32>
    %63 = vector.broadcast %62 : vector<1x1xf32> to vector<1x1152xf32>
    %64 = arith.mulf %63, %1 : vector<1x1152xf32>
    %65 = arith.addf %59, %64 : vector<1x1152xf32>
    %cst_13 = arith.constant 0.000000e+00 : f32
    %cst_14 = arith.constant 0.20048438 : f32
    %66 = arith.subf %cst_13, %cst_14 : f32
    %67 = arith.mulf %66, %46 : f32
    %68 = vector.broadcast %67 : f32 to vector<1x1xf32>
    %69 = arith.mulf %68, %52 : vector<1x1xf32>
    %70 = vector.broadcast %69 : vector<1x1xf32> to vector<1x1152xf32>
    %71 = arith.mulf %70, %2 : vector<1x1152xf32>
    %cst_15 = arith.constant 0.20048438 : f32
    %72 = arith.mulf %cst_15, %48 : f32
    %73 = vector.broadcast %72 : f32 to vector<1x1xf32>
    %74 = arith.mulf %73, %52 : vector<1x1xf32>
    %75 = vector.broadcast %74 : vector<1x1xf32> to vector<1x1152xf32>
    %76 = arith.mulf %75, %0 : vector<1x1152xf32>
    %cst_16 = arith.constant 0.000000e+00 : f32
    %cst_17 = arith.constant 0.20048438 : f32
    %77 = arith.subf %cst_16, %cst_17 : f32
    %78 = arith.mulf %77, %46 : f32
    %79 = vector.broadcast %78 : f32 to vector<1x1xf32>
    %80 = arith.mulf %79, %50 : vector<1x1xf32>
    %81 = vector.broadcast %80 : vector<1x1xf32> to vector<1x1152xf32>
    %82 = arith.mulf %81, %1 : vector<1x1152xf32>
    %cst_18 = arith.constant 0.000000e+00 : f32
    %cst_19 = arith.constant 0.20048438 : f32
    %83 = arith.subf %cst_18, %cst_19 : f32
    %84 = arith.mulf %83, %47 : f32
    %85 = vector.broadcast %84 : f32 to vector<1x1xf32>
    %86 = arith.mulf %85, %54 : vector<1x1xf32>
    %87 = vector.broadcast %86 : vector<1x1xf32> to vector<1x1152xf32>
    %88 = arith.mulf %87, %2 : vector<1x1152xf32>
    %89 = arith.addf %82, %88 : vector<1x1152xf32>
    %c0_i32_20 = arith.constant 0 : i32
    %c64_i32_21 = arith.constant 64 : i32
    %90 = arith.muli %c0_i32_20, %c64_i32_21 : i32
    %91 = tpu.assume_multiple %90, 64 : i32
    %92 = arith.index_cast %91 : i32 to index
    %c0_22 = arith.constant 0 : index
    %93 = vector.load %arg2[%92, %c0_22] : memref<64x1152xf32, #tpu.memory_space<vmem>>, vector<64x1152xf32>
    %94 = vector.extract_strided_slice %93 {offsets = [0, 1149], sizes = [64, 3], strides = [1, 1]} : vector<64x1152xf32> to vector<64x3xf32>
    %95 = vector.extract_strided_slice %93 {offsets = [0, 0], sizes = [64, 1149], strides = [1, 1]} : vector<64x1152xf32> to vector<64x1149xf32>
    %96 = tpu.concatenate %94, %95 in 1 : vector<64x3xf32>, vector<64x1149xf32> -> vector<64x1152xf32>
    %97 = vector.extract_strided_slice %93 {offsets = [0, 1146], sizes = [64, 6], strides = [1, 1]} : vector<64x1152xf32> to vector<64x6xf32>
    %98 = vector.extract_strided_slice %93 {offsets = [0, 0], sizes = [64, 1146], strides = [1, 1]} : vector<64x1152xf32> to vector<64x1146xf32>
    %99 = tpu.concatenate %97, %98 in 1 : vector<64x6xf32>, vector<64x1146xf32> -> vector<64x1152xf32>
    %100 = vector.extract_strided_slice %93 {offsets = [0, 1143], sizes = [64, 9], strides = [1, 1]} : vector<64x1152xf32> to vector<64x9xf32>
    %101 = vector.extract_strided_slice %93 {offsets = [0, 0], sizes = [64, 1143], strides = [1, 1]} : vector<64x1152xf32> to vector<64x1143xf32>
    %102 = tpu.concatenate %100, %101 in 1 : vector<64x9xf32>, vector<64x1143xf32> -> vector<64x1152xf32>
    %103 = vector.extract_strided_slice %93 {offsets = [0, 1140], sizes = [64, 12], strides = [1, 1]} : vector<64x1152xf32> to vector<64x12xf32>
    %104 = vector.extract_strided_slice %93 {offsets = [0, 0], sizes = [64, 1140], strides = [1, 1]} : vector<64x1152xf32> to vector<64x1140xf32>
    %105 = tpu.concatenate %103, %104 in 1 : vector<64x12xf32>, vector<64x1140xf32> -> vector<64x1152xf32>
    %106 = vector.extract_strided_slice %93 {offsets = [0, 1137], sizes = [64, 15], strides = [1, 1]} : vector<64x1152xf32> to vector<64x15xf32>
    %107 = vector.extract_strided_slice %93 {offsets = [0, 0], sizes = [64, 1137], strides = [1, 1]} : vector<64x1152xf32> to vector<64x1137xf32>
    %108 = tpu.concatenate %106, %107 in 1 : vector<64x15xf32>, vector<64x1137xf32> -> vector<64x1152xf32>
    %109 = vector.extract_strided_slice %93 {offsets = [0, 9], sizes = [64, 1143], strides = [1, 1]} : vector<64x1152xf32> to vector<64x1143xf32>
    %110 = vector.extract_strided_slice %93 {offsets = [0, 0], sizes = [64, 9], strides = [1, 1]} : vector<64x1152xf32> to vector<64x9xf32>
    %111 = tpu.concatenate %109, %110 in 1 : vector<64x1143xf32>, vector<64x9xf32> -> vector<64x1152xf32>
    %112 = arith.subf %99, %102 : vector<64x1152xf32>
    %113 = arith.subf %102, %108 : vector<64x1152xf32>
    %114 = arith.subf %96, %102 : vector<64x1152xf32>
    %115 = arith.subf %102, %105 : vector<64x1152xf32>
    %116 = vector.broadcast %3 : vector<1x1152xf32> to vector<64x1152xf32>
    %117 = arith.mulf %116, %111 : vector<64x1152xf32>
    %118 = vector.broadcast %65 : vector<1x1152xf32> to vector<64x1152xf32>
    %119 = arith.mulf %118, %112 : vector<64x1152xf32>
    %120 = arith.addf %117, %119 : vector<64x1152xf32>
    %121 = vector.broadcast %71 : vector<1x1152xf32> to vector<64x1152xf32>
    %122 = arith.mulf %121, %113 : vector<64x1152xf32>
    %123 = arith.addf %120, %122 : vector<64x1152xf32>
    %124 = vector.broadcast %76 : vector<1x1152xf32> to vector<64x1152xf32>
    %125 = arith.mulf %124, %114 : vector<64x1152xf32>
    %126 = arith.addf %123, %125 : vector<64x1152xf32>
    %127 = vector.broadcast %89 : vector<1x1152xf32> to vector<64x1152xf32>
    %128 = arith.mulf %127, %115 : vector<64x1152xf32>
    %129 = arith.addf %126, %128 : vector<64x1152xf32>
    %130 = arith.index_cast %91 : i32 to index
    %c0_23 = arith.constant 0 : index
    %131 = vector.load %arg3[%130, %c0_23] : memref<64x1152xf32, #tpu.memory_space<vmem>>, vector<64x1152xf32>
    tpu.vector_store %arg3[%130, %c0_23], %129 {strides = array<i32>} : memref<64x1152xf32, #tpu.memory_space<vmem>>, vector<64x1152xf32>,
    %c1_i32_24 = arith.constant 1 : i32
    return
  }
}

</mosaic_0001>

<llo_original>
// kernel: tpu_custom_call.1
$region0: #{tpu_custom_call.1}
  #allocation0 [shape = 'u32[]', space=smem, size = 0x4, offset = 0x4, fixed_abs, tag = 'smem constant byte address 0x4 - core index']
  #allocation1 [shape = 'u32[144,128]{1,0:T(1,128)}', space=vmem, size = 0x12000, scoped, tag = 'internal scratch']
  %s0 = inlined_call_operand.hbm [shape: f32[3], index: 0, kind: input, shape index: {}]
  %s1 = inlined_call_operand.hbm [shape: f32[4,1152], index: 1, kind: input, shape index: {}]
  %s2 = inlined_call_operand.hbm [shape: f32[64,1152], index: 2, kind: input, shape index: {}]
  %s3 = inlined_call_operand.hbm [shape: f32[64,1152], index: 3, kind: output, shape index: {}]
  %s4 = sld [smem:[#allocation0]]
  $region34: #{tpu_custom_call.1} parent=0
    _
  %s6 = ssub.s32 1, %s4
  %s7 = scalar_select 0, %s6, %s4
  $region1: #{tpu_custom_call.1} parent=0
    #allocation2 [shape = 'u8[512]{0}', space=smem, size = 0x200, scoped, tag = 'input window, operand 0, single buffered']
    #allocation3 [shape = 's32[1]{0}', space=sflag, size = 0x4, scoped, tag = 'scoped memory for tpu_custom_call.1']
    #allocation4 [shape = 's32[1]{0}', space=sflag, size = 0x4, scoped, tag = 'scoped memory for tpu_custom_call.1']
    #allocation5 [shape = 's32[1]{0}', space=sflag, size = 0x4, scoped, tag = 'scoped memory for tpu_custom_call.1']
    #allocation6 [shape = 'u8[18432]{0}', space=vmem, size = 0x4800, scoped, tag = 'input window, operand 1, single buffered']
    #allocation7 [shape = 'u8[294912]{0}', space=vmem, size = 0x48000, scoped, tag = 'input window, operand 2, single buffered']
    #allocation8 [shape = 's32[1]{0}', space=sflag, size = 0x4, scoped, tag = 'scoped memory for tpu_custom_call.1']
    #allocation9 [shape = 'u8[294912]{0}', space=vmem, size = 0x48000, scoped, tag = 'output window, operand 0, single buffered']
    %8 = vsyncpa [#allocation5], 0
    %9 = vsyncpa [#allocation3], 0
    %10 = vsyncpa [#allocation8], 0
    %11 = vsyncpa [#allocation4], 0
    // Predicated region
    $region2: #{tpu_custom_call.1} parent=1 // pred_check
      _
    $region3: #{tpu_custom_call.1} parent=1 // pred_check_branch
      %13 = sbr.rel (0) target = $region5
    $region4: #{tpu_custom_call.1} parent=1 // pred_region
      %s15 = ssub.s32 16, 16
      %16 = vsyncadd [#allocation5], %s15
      %19 = dma.hbm_to_smem %s0, 16, [#allocation2], [#allocation5]
    $region5: #{tpu_custom_call.1} parent=1 // pred_fallthru
      _
    // Predicated region
    $region6: #{tpu_custom_call.1} parent=1 // pred_check
      _
    $region7: #{tpu_custom_call.1} parent=1 // pred_check_branch
      %21 = sbr.rel (0) target = $region9
    $region8: #{tpu_custom_call.1} parent=1 // pred_region
      %s23 = ssub.s32 576, 576
      %24 = vsyncadd [#allocation3], %s23
      %s26 = sshll.u32 [#allocation6], 4
      %s27 = int_to_ptr.vmem [resolvable:$true] %s26
      %29 = dma.hbm_to_vmem [thread:$0]  %s1, 576, %s27, [#allocation3]
    $region9: #{tpu_custom_call.1} parent=1 // pred_fallthru
      _
    // Predicated region
    $region10: #{tpu_custom_call.1} parent=1 // pred_check
      _
    $region11: #{tpu_custom_call.1} parent=1 // pred_check_branch
      %31 = sbr.rel (0) target = $region13
    $region12: #{tpu_custom_call.1} parent=1 // pred_region
      %s33 = ssub.s32 9216, 9216
      %34 = vsyncadd [#allocation8], %s33
      %s35 = sshll.u32 [#allocation7], 4
      %s36 = int_to_ptr.vmem [resolvable:$true] %s35
      %41 = dma.hbm_to_vmem [thread:$0]  %s2, 9216, %s36, [#allocation8], 1152, 1152, 72
    $region13: #{tpu_custom_call.1} parent=1 // pred_fallthru
      _
    // Predicated region
    $region14: #{tpu_custom_call.1} parent=1 // pred_check
      _
    $region15: #{tpu_custom_call.1} parent=1 // pred_check_branch
      %43 = sbr.rel (0) target = $region17
    $region16: #{tpu_custom_call.1} parent=1 // pred_region
      %44 = dma.done [#allocation5], 16
    $region17: #{tpu_custom_call.1} parent=1 // pred_fallthru
      _
    // Predicated region
    $region18: #{tpu_custom_call.1} parent=1 // pred_check
      _
    $region19: #{tpu_custom_call.1} parent=1 // pred_check_branch
      %46 = sbr.rel (0) target = $region21
    $region20: #{tpu_custom_call.1} parent=1 // pred_region
      %47 = dma.done [#allocation3], 576
    $region21: #{tpu_custom_call.1} parent=1 // pred_fallthru
      _
    // Predicated region
    $region22: #{tpu_custom_call.1} parent=1 // pred_check
      _
    $region23: #{tpu_custom_call.1} parent=1 // pred_check_branch
      %49 = sbr.rel (0) target = $region25
    $region24: #{tpu_custom_call.1} parent=1 // pred_region
      %50 = dma.done [#allocation8], 9216
    $region25: #{tpu_custom_call.1} parent=1 // pred_fallthru
      _
    %51 = sfence
    %v52 = vld [vmem:[#allocation6] ss:$4 sm:$0xff]
    %s53 = scalar_lea.vmem [#allocation6], 32
    %v54 = vld [vmem:[%s53] ss:$4 sm:$0x1]
    %s55 = scalar_lea.vmem [#allocation6], 1
    %v56 = vld [vmem:[%s55] ss:$4 sm:$0xff]
    %s57 = scalar_lea.vmem [#allocation6], 33
    %v58 = vld [vmem:[%s57] ss:$4 sm:$0x1]
    %s59 = scalar_lea.vmem [#allocation6], 2
    %v60 = vld [vmem:[%s59] ss:$4 sm:$0xff]
    %s61 = scalar_lea.vmem [#allocation6], 34
    %v62 = vld [vmem:[%s61] ss:$4 sm:$0x1]
    %s63 = scalar_lea.vmem [#allocation6], 3
    %v64 = vld [vmem:[%s63] ss:$4 sm:$0xff]
    %s65 = scalar_lea.vmem [#allocation6], 35
    %v66 = vld [vmem:[%s65] ss:$4 sm:$0x1]
    %s67 = smul.u32 0, 9
    %s68 = smul.addr %s67, 8
    %s69 = scalar_lea.vmem [#allocation7], %s68
    %v70 = vld [vmem:[%s69] sm:$0xff]
    %v71 = vld [vmem:[%s69 + $0x8] sm:$0xff]
    %v72 = vld [vmem:[%s69 + $0x10] sm:$0xff]
    %v73 = vld [vmem:[%s69 + $0x18] sm:$0xff]
    %v74 = vld [vmem:[%s69 + $0x20] sm:$0xff]
    %v75 = vld [vmem:[%s69 + $0x28] sm:$0xff]
    %v76 = vld [vmem:[%s69 + $0x30] sm:$0xff]
    %v77 = vld [vmem:[%s69 + $0x38] sm:$0xff]
    %v78 = vld [vmem:[%s69 + $0x40] sm:$0xff]
    %v79 = vld [vmem:[%s69 + $0x48] sm:$0xff]
    %v80 = vld [vmem:[%s69 + $0x50] sm:$0xff]
    %v81 = vld [vmem:[%s69 + $0x58] sm:$0xff]
    %v82 = vld [vmem:[%s69 + $0x60] sm:$0xff]
    %v83 = vld [vmem:[%s69 + $0x68] sm:$0xff]
    %v84 = vld [vmem:[%s69 + $0x70] sm:$0xff]
    %v85 = vld [vmem:[%s69 + $0x78] sm:$0xff]
    %v86 = vld [vmem:[%s69 + $0x80] sm:$0xff]
    %v87 = vld [vmem:[%s69 + $0x88] sm:$0xff]
    %v88 = vld [vmem:[%s69 + $0x90] sm:$0xff]
    %v89 = vld [vmem:[%s69 + $0x98] sm:$0xff]
    %v90 = vld [vmem:[%s69 + $0xa0] sm:$0xff]
    %v91 = vld [vmem:[%s69 + $0xa8] sm:$0xff]
    %v92 = vld [vmem:[%s69 + $0xb0] sm:$0xff]
    %v93 = vld [vmem:[%s69 + $0xb8] sm:$0xff]
    %v94 = vld [vmem:[%s69 + $0xc0] sm:$0xff]
    %v95 = vld [vmem:[%s69 + $0xc8] sm:$0xff]
    %v96 = vld [vmem:[%s69 + $0xd0] sm:$0xff]
    %v97 = vld [vmem:[%s69 + $0xd8] sm:$0xff]
    %v98 = vld [vmem:[%s69 + $0xe0] sm:$0xff]
    %v99 = vld [vmem:[%s69 + $0xe8] sm:$0xff]
    %v100 = vld [vmem:[%s69 + $0xf0] sm:$0xff]
    %v101 = vld [vmem:[%s69 + $0xf8] sm:$0xff]
    %v102 = vld [vmem:[%s69 + $0x100] sm:$0xff]
    %v103 = vld [vmem:[%s69 + $0x108] sm:$0xff]
    %v104 = vld [vmem:[%s69 + $0x110] sm:$0xff]
    %v105 = vld [vmem:[%s69 + $0x118] sm:$0xff]
    %v106 = vld [vmem:[%s69 + $0x120] sm:$0xff]
    %v107 = vld [vmem:[%s69 + $0x128] sm:$0xff]
    %v108 = vld [vmem:[%s69 + $0x130] sm:$0xff]
    %v109 = vld [vmem:[%s69 + $0x138] sm:$0xff]
    %v110 = vld [vmem:[%s69 + $0x140] sm:$0xff]
    %v111 = vld [vmem:[%s69 + $0x148] sm:$0xff]
    %v112 = vld [vmem:[%s69 + $0x150] sm:$0xff]
    %v113 = vld [vmem:[%s69 + $0x158] sm:$0xff]
    %v114 = vld [vmem:[%s69 + $0x160] sm:$0xff]
    %v115 = vld [vmem:[%s69 + $0x168] sm:$0xff]
    %v116 = vld [vmem:[%s69 + $0x170] sm:$0xff]
    %v117 = vld [vmem:[%s69 + $0x178] sm:$0xff]
    %v118 = vld [vmem:[%s69 + $0x180] sm:$0xff]
    %v119 = vld [vmem:[%s69 + $0x188] sm:$0xff]
    %v120 = vld [vmem:[%s69 + $0x190] sm:$0xff]
    %v121 = vld [vmem:[%s69 + $0x198] sm:$0xff]
    %v122 = vld [vmem:[%s69 + $0x1a0] sm:$0xff]
    %v123 = vld [vmem:[%s69 + $0x1a8] sm:$0xff]
    %v124 = vld [vmem:[%s69 + $0x1b0] sm:$0xff]
    %v125 = vld [vmem:[%s69 + $0x1b8] sm:$0xff]
    %v126 = vld [vmem:[%s69 + $0x1c0] sm:$0xff]
    %v127 = vld [vmem:[%s69 + $0x1c8] sm:$0xff]
    %v128 = vld [vmem:[%s69 + $0x1d0] sm:$0xff]
    %v129 = vld [vmem:[%s69 + $0x1d8] sm:$0xff]
    %v130 = vld [vmem:[%s69 + $0x1e0] sm:$0xff]
    %v131 = vld [vmem:[%s69 + $0x1e8] sm:$0xff]
    %v132 = vld [vmem:[%s69 + $0x1f0] sm:$0xff]
    %v133 = vld [vmem:[%s69 + $0x1f8] sm:$0xff]
    %v134 = vld [vmem:[%s69 + $0x200] sm:$0xff]
    %v135 = vld [vmem:[%s69 + $0x208] sm:$0xff]
    %v136 = vld [vmem:[%s69 + $0x210] sm:$0xff]
    %v137 = vld [vmem:[%s69 + $0x218] sm:$0xff]
    %v138 = vld [vmem:[%s69 + $0x220] sm:$0xff]
    %v139 = vld [vmem:[%s69 + $0x228] sm:$0xff]
    %v140 = vld [vmem:[%s69 + $0x230] sm:$0xff]
    %v141 = vld [vmem:[%s69 + $0x238] sm:$0xff]
    %150 = vrot.lane.b32.xlu0 %v78, 6
    %v151 = vpop.permute.xlu0 %150
    %152 = vrot.lane.b32.xlu0 %v87, 6
    %v153 = vpop.permute.xlu0 %152
    %154 = vrot.lane.b32.xlu0 %v96, 6
    %v155 = vpop.permute.xlu0 %154
    %156 = vrot.lane.b32.xlu0 %v105, 6
    %v157 = vpop.permute.xlu0 %156
    %158 = vrot.lane.b32.xlu0 %v114, 6
    %v159 = vpop.permute.xlu0 %158
    %160 = vrot.lane.b32.xlu0 %v123, 6
    %v161 = vpop.permute.xlu0 %160
    %162 = vrot.lane.b32.xlu0 %v132, 6
    %v163 = vpop.permute.xlu0 %162
    %164 = vrot.lane.b32.xlu0 %v141, 6
    %v165 = vpop.permute.xlu0 %164
    %238 = vrot.lane.b32.xlu0 %v70, 6
    %v239 = vpop.permute.xlu0 %238
    %240 = vrot.lane.b32.xlu0 %v71, 6
    %v241 = vpop.permute.xlu0 %240
    %242 = vrot.lane.b32.xlu0 %v72, 6
    %v243 = vpop.permute.xlu0 %242
    %244 = vrot.lane.b32.xlu0 %v73, 6
    %v245 = vpop.permute.xlu0 %244
    %246 = vrot.lane.b32.xlu0 %v74, 6
    %v247 = vpop.permute.xlu0 %246
    %248 = vrot.lane.b32.xlu0 %v75, 6
    %v249 = vpop.permute.xlu0 %248
    %250 = vrot.lane.b32.xlu0 %v76, 6
    %v251 = vpop.permute.xlu0 %250
    %252 = vrot.lane.b32.xlu0 %v77, 6
    %v253 = vpop.permute.xlu0 %252
    %254 = vrot.lane.b32.xlu0 %v79, 6
    %v255 = vpop.permute.xlu0 %254
    %256 = vrot.lane.b32.xlu0 %v80, 6
    %v257 = vpop.permute.xlu0 %256
    %258 = vrot.lane.b32.xlu0 %v81, 6
    %v259 = vpop.permute.xlu0 %258
    %260 = vrot.lane.b32.xlu0 %v82, 6
    %v261 = vpop.permute.xlu0 %260
    %262 = vrot.lane.b32.xlu0 %v83, 6
    %v263 = vpop.permute.xlu0 %262
    %264 = vrot.lane.b32.xlu0 %v84, 6
    %v265 = vpop.permute.xlu0 %264
    %266 = vrot.lane.b32.xlu0 %v85, 6
    %v267 = vpop.permute.xlu0 %266
    %268 = vrot.lane.b32.xlu0 %v86, 6
    %v269 = vpop.permute.xlu0 %268
    %270 = vrot.lane.b32.xlu0 %v88, 6
    %v271 = vpop.permute.xlu0 %270
    %272 = vrot.lane.b32.xlu0 %v89, 6
    %v273 = vpop.permute.xlu0 %272
    %274 = vrot.lane.b32.xlu0 %v90, 6
    %v275 = vpop.permute.xlu0 %274
    %276 = vrot.lane.b32.xlu0 %v91, 6
    %v277 = vpop.permute.xlu0 %276
    %278 = vrot.lane.b32.xlu0 %v92, 6
    %v279 = vpop.permute.xlu0 %278
    %280 = vrot.lane.b32.xlu0 %v93, 6
    %v281 = vpop.permute.xlu0 %280
    %282 = vrot.lane.b32.xlu0 %v94, 6
    %v283 = vpop.permute.xlu0 %282
    %284 = vrot.lane.b32.xlu0 %v95, 6
    %v285 = vpop.permute.xlu0 %284
    %286 = vrot.lane.b32.xlu0 %v97, 6
    %v287 = vpop.permute.xlu0 %286
    %288 = vrot.lane.b32.xlu0 %v98, 6
    %v289 = vpop.permute.xlu0 %288
    %290 = vrot.lane.b32.xlu0 %v99, 6
    %v291 = vpop.permute.xlu0 %290
    %292 = vrot.lane.b32.xlu0 %v100, 6
    %v293 = vpop.permute.xlu0 %292
    %294 = vrot.lane.b32.xlu0 %v101, 6
    %v295 = vpop.permute.xlu0 %294
    %296 = vrot.lane.b32.xlu0 %v102, 6
    %v297 = vpop.permute.xlu0 %296
    %298 = vrot.lane.b32.xlu0 %v103, 6
    %v299 = vpop.permute.xlu0 %298
    %300 = vrot.lane.b32.xlu0 %v104, 6
    %v301 = vpop.permute.xlu0 %300
    %302 = vrot.lane.b32.xlu0 %v106, 6
    %v303 = vpop.permute.xlu0 %302
    %304 = vrot.lane.b32.xlu0 %v107, 6
    %v305 = vpop.permute.xlu0 %304
    %306 = vrot.lane.b32.xlu0 %v108, 6
    %v307 = vpop.permute.xlu0 %306
    %308 = vrot.lane.b32.xlu0 %v109, 6
    %v309 = vpop.permute.xlu0 %308
    %310 = vrot.lane.b32.xlu0 %v110, 6
    %v311 = vpop.permute.xlu0 %310
    %312 = vrot.lane.b32.xlu0 %v111, 6
    %v313 = vpop.permute.xlu0 %312
    %314 = vrot.lane.b32.xlu0 %v112, 6
    %v315 = vpop.permute.xlu0 %314
    %316 = vrot.lane.b32.xlu0 %v113, 6
    %v317 = vpop.permute.xlu0 %316
    %318 = vrot.lane.b32.xlu0 %v115, 6
    %v319 = vpop.permute.xlu0 %318
    %320 = vrot.lane.b32.xlu0 %v116, 6
    %v321 = vpop.permute.xlu0 %320
    %322 = vrot.lane.b32.xlu0 %v117, 6
    %v323 = vpop.permute.xlu0 %322
    %324 = vrot.lane.b32.xlu0 %v118, 6
    %v325 = vpop.permute.xlu0 %324
    %326 = vrot.lane.b32.xlu0 %v119, 6
    %v327 = vpop.permute.xlu0 %326
    %328 = vrot.lane.b32.xlu0 %v120, 6
    %v329 = vpop.permute.xlu0 %328
    %330 = vrot.lane.b32.xlu0 %v121, 6
    %v331 = vpop.permute.xlu0 %330
    %332 = vrot.lane.b32.xlu0 %v122, 6
    %v333 = vpop.permute.xlu0 %332
    %334 = vrot.lane.b32.xlu0 %v124, 6
    %v335 = vpop.permute.xlu0 %334
    %336 = vrot.lane.b32.xlu0 %v125, 6
    %v337 = vpop.permute.xlu0 %336
    %338 = vrot.lane.b32.xlu0 %v126, 6
    %v339 = vpop.permute.xlu0 %338
    %340 = vrot.lane.b32.xlu0 %v127, 6
    %v341 = vpop.permute.xlu0 %340
    %342 = vrot.lane.b32.xlu0 %v128, 6
    %v343 = vpop.permute.xlu0 %342
    %344 = vrot.lane.b32.xlu0 %v129, 6
    %v345 = vpop.permute.xlu0 %344
    %346 = vrot.lane.b32.xlu0 %v130, 6
    %v347 = vpop.permute.xlu0 %346
    %348 = vrot.lane.b32.xlu0 %v131, 6
    %v349 = vpop.permute.xlu0 %348
    %350 = vrot.lane.b32.xlu0 %v133, 6
    %v351 = vpop.permute.xlu0 %350
    %352 = vrot.lane.b32.xlu0 %v134, 6
    %v353 = vpop.permute.xlu0 %352
    %354 = vrot.lane.b32.xlu0 %v135, 6
    %v355 = vpop.permute.xlu0 %354
    %356 = vrot.lane.b32.xlu0 %v136, 6
    %v357 = vpop.permute.xlu0 %356
    %358 = vrot.lane.b32.xlu0 %v137, 6
    %v359 = vpop.permute.xlu0 %358
    %360 = vrot.lane.b32.xlu0 %v138, 6
    %v361 = vpop.permute.xlu0 %360
    %362 = vrot.lane.b32.xlu0 %v139, 6
    %v363 = vpop.permute.xlu0 %362
    %364 = vrot.lane.b32.xlu0 %v140, 6
    %v365 = vpop.permute.xlu0 %364
    %vm366 = vcmask 48128
    %v367 = vsel %vm366, %v239, %v241
    %v368 = vsel %vm366, %v241, %v243
    %v369 = vsel %vm366, %v243, %v245
    %v370 = vsel %vm366, %v245, %v247
    %v371 = vsel %vm366, %v247, %v249
    %v372 = vsel %vm366, %v249, %v251
    %v373 = vsel %vm366, %v251, %v253
    %v374 = vsel %vm366, %v253, %v151
    %v375 = vsel %vm366, %v255, %v257
    %v376 = vsel %vm366, %v257, %v259
    %v377 = vsel %vm366, %v259, %v261
    %v378 = vsel %vm366, %v261, %v263
    %v379 = vsel %vm366, %v263, %v265
    %v380 = vsel %vm366, %v265, %v267
    %v381 = vsel %vm366, %v267, %v269
    %v382 = vsel %vm366, %v269, %v153
    %v383 = vsel %vm366, %v271, %v273
    %v384 = vsel %vm366, %v273, %v275
    %v385 = vsel %vm366, %v275, %v277
    %v386 = vsel %vm366, %v277, %v279
    %v387 = vsel %vm366, %v279, %v281
    %v388 = vsel %vm366, %v281, %v283
    %v389 = vsel %vm366, %v283, %v285
    %v390 = vsel %vm366, %v285, %v155
    %v391 = vsel %vm366, %v287, %v289
    %v392 = vsel %vm366, %v289, %v291
    %v393 = vsel %vm366, %v291, %v293
    %v394 = vsel %vm366, %v293, %v295
    %v395 = vsel %vm366, %v295, %v297
    %v396 = vsel %vm366, %v297, %v299
    %v397 = vsel %vm366, %v299, %v301
    %v398 = vsel %vm366, %v301, %v157
    %v399 = vsel %vm366, %v303, %v305
    %v400 = vsel %vm366, %v305, %v307
    %v401 = vsel %vm366, %v307, %v309
    %v402 = vsel %vm366, %v309, %v311
    %v403 = vsel %vm366, %v311, %v313
    %v404 = vsel %vm366, %v313, %v315
    %v405 = vsel %vm366, %v315, %v317
    %v406 = vsel %vm366, %v317, %v159
    %v407 = vsel %vm366, %v319, %v321
    %v408 = vsel %vm366, %v321, %v323
    %v409 = vsel %vm366, %v323, %v325
    %v410 = vsel %vm366, %v325, %v327
    %v411 = vsel %vm366, %v327, %v329
    %v412 = vsel %vm366, %v329, %v331
    %v413 = vsel %vm366, %v331, %v333
    %v414 = vsel %vm366, %v333, %v161
    %v415 = vsel %vm366, %v335, %v337
    %v416 = vsel %vm366, %v337, %v339
    %v417 = vsel %vm366, %v339, %v341
    %v418 = vsel %vm366, %v341, %v343
    %v419 = vsel %vm366, %v343, %v345
    %v420 = vsel %vm366, %v345, %v347
    %v421 = vsel %vm366, %v347, %v349
    %v422 = vsel %vm366, %v349, %v163
    %v423 = vsel %vm366, %v351, %v353
    %v424 = vsel %vm366, %v353, %v355
    %v425 = vsel %vm366, %v355, %v357
    %v426 = vsel %vm366, %v357, %v359
    %v427 = vsel %vm366, %v359, %v361
    %v428 = vsel %vm366, %v361, %v363
    %v429 = vsel %vm366, %v363, %v365
    %v430 = vsel %vm366, %v365, %v165
    %v503 = vsel %vm366, %v151, %v239
    %v504 = vsel %vm366, %v153, %v255
    %v505 = vsel %vm366, %v155, %v271
    %v506 = vsel %vm366, %v157, %v287
    %v507 = vsel %vm366, %v159, %v303
    %v508 = vsel %vm366, %v161, %v319
    %v509 = vsel %vm366, %v163, %v335
    %v510 = vsel %vm366, %v165, %v351
    %511 = vrot.lane.b32.xlu0 %v78, 9
    %v512 = vpop.permute.xlu0 %511
    %513 = vrot.lane.b32.xlu0 %v87, 9
    %v514 = vpop.permute.xlu0 %513
    %515 = vrot.lane.b32.xlu0 %v96, 9
    %v516 = vpop.permute.xlu0 %515
    %517 = vrot.lane.b32.xlu0 %v105, 9
    %v518 = vpop.permute.xlu0 %517
    %519 = vrot.lane.b32.xlu0 %v114, 9
    %v520 = vpop.permute.xlu0 %519
    %521 = vrot.lane.b32.xlu0 %v123, 9
    %v522 = vpop.permute.xlu0 %521
    %523 = vrot.lane.b32.xlu0 %v132, 9
    %v524 = vpop.permute.xlu0 %523
    %525 = vrot.lane.b32.xlu0 %v141, 9
    %v526 = vpop.permute.xlu0 %525
    %535 = vrot.lane.b32.xlu0 %v70, 9
    %v536 = vpop.permute.xlu0 %535
    %537 = vrot.lane.b32.xlu0 %v71, 9
    %v538 = vpop.permute.xlu0 %537
    %539 = vrot.lane.b32.xlu0 %v72, 9
    %v540 = vpop.permute.xlu0 %539
    %541 = vrot.lane.b32.xlu0 %v73, 9
    %v542 = vpop.permute.xlu0 %541
    %543 = vrot.lane.b32.xlu0 %v74, 9
    %v544 = vpop.permute.xlu0 %543
    %545 = vrot.lane.b32.xlu0 %v75, 9
    %v546 = vpop.permute.xlu0 %545
    %547 = vrot.lane.b32.xlu0 %v76, 9
    %v548 = vpop.permute.xlu0 %547
    %549 = vrot.lane.b32.xlu0 %v77, 9
    %v550 = vpop.permute.xlu0 %549
    %551 = vrot.lane.b32.xlu0 %v79, 9
    %v552 = vpop.permute.xlu0 %551
    %553 = vrot.lane.b32.xlu0 %v80, 9
    %v554 = vpop.permute.xlu0 %553
    %555 = vrot.lane.b32.xlu0 %v81, 9
    %v556 = vpop.permute.xlu0 %555
    %557 = vrot.lane.b32.xlu0 %v82, 9
    %v558 = vpop.permute.xlu0 %557
    %559 = vrot.lane.b32.xlu0 %v83, 9
    %v560 = vpop.permute.xlu0 %559
    %561 = vrot.lane.b32.xlu0 %v84, 9
    %v562 = vpop.permute.xlu0 %561
    %563 = vrot.lane.b32.xlu0 %v85, 9
    %v564 = vpop.permute.xlu0 %563
    %565 = vrot.lane.b32.xlu0 %v86, 9
    %v566 = vpop.permute.xlu0 %565
    %567 = vrot.lane.b32.xlu0 %v88, 9
    %v568 = vpop.permute.xlu0 %567
    %569 = vrot.lane.b32.xlu0 %v89, 9
    %v570 = vpop.permute.xlu0 %569
    %571 = vrot.lane.b32.xlu0 %v90, 9
    %v572 = vpop.permute.xlu0 %571
    %573 = vrot.lane.b32.xlu0 %v91, 9
    %v574 = vpop.permute.xlu0 %573
    %575 = vrot.lane.b32.xlu0 %v92, 9
    %v576 = vpop.permute.xlu0 %575
    %577 = vrot.lane.b32.xlu0 %v93, 9
    %v578 = vpop.permute.xlu0 %577
    %579 = vrot.lane.b32.xlu0 %v94, 9
    %v580 = vpop.permute.xlu0 %579
    %581 = vrot.lane.b32.xlu0 %v95, 9
    %v582 = vpop.permute.xlu0 %581
    %583 = vrot.lane.b32.xlu0 %v97, 9
    %v584 = vpop.permute.xlu0 %583
    %585 = vrot.lane.b32.xlu0 %v98, 9
    %v586 = vpop.permute.xlu0 %585
    %587 = vrot.lane.b32.xlu0 %v99, 9
    %v588 = vpop.permute.xlu0 %587
    %589 = vrot.lane.b32.xlu0 %v100, 9
    %v590 = vpop.permute.xlu0 %589
    %591 = vrot.lane.b32.xlu0 %v101, 9
    %v592 = vpop.permute.xlu0 %591
    %593 = vrot.lane.b32.xlu0 %v102, 9
    %v594 = vpop.permute.xlu0 %593
    %595 = vrot.lane.b32.xlu0 %v103, 9
    %v596 = vpop.permute.xlu0 %595
    %597 = vrot.lane.b32.xlu0 %v104, 9
    %v598 = vpop.permute.xlu0 %597
    %599 = vrot.lane.b32.xlu0 %v106, 9
    %v600 = vpop.permute.xlu0 %599
    %601 = vrot.lane.b32.xlu0 %v107, 9
    %v602 = vpop.permute.xlu0 %601
    %603 = vrot.lane.b32.xlu0 %v108, 9
    %v604 = vpop.permute.xlu0 %603
    %605 = vrot.lane.b32.xlu0 %v109, 9
    %v606 = vpop.permute.xlu0 %605
    %607 = vrot.lane.b32.xlu0 %v110, 9
    %v608 = vpop.permute.xlu0 %607
    %609 = vrot.lane.b32.xlu0 %v111, 9
    %v610 = vpop.permute.xlu0 %609
    %611 = vrot.lane.b32.xlu0 %v112, 9
    %v612 = vpop.permute.xlu0 %611
    %613 = vrot.lane.b32.xlu0 %v113, 9
    %v614 = vpop.permute.xlu0 %613
    %615 = vrot.lane.b32.xlu0 %v115, 9
    %v616 = vpop.permute.xlu0 %615
    %617 = vrot.lane.b32.xlu0 %v116, 9
    %v618 = vpop.permute.xlu0 %617
    %619 = vrot.lane.b32.xlu0 %v117, 9
    %v620 = vpop.permute.xlu0 %619
    %621 = vrot.lane.b32.xlu0 %v118, 9
    %v622 = vpop.permute.xlu0 %621
    %623 = vrot.lane.b32.xlu0 %v119, 9
    %v624 = vpop.permute.xlu0 %623
    %625 = vrot.lane.b32.xlu0 %v120, 9
    %v626 = vpop.permute.xlu0 %625
    %627 = vrot.lane.b32.xlu0 %v121, 9
    %v628 = vpop.permute.xlu0 %627
    %629 = vrot.lane.b32.xlu0 %v122, 9
    %v630 = vpop.permute.xlu0 %629
    %631 = vrot.lane.b32.xlu0 %v124, 9
    %v632 = vpop.permute.xlu0 %631
    %633 = vrot.lane.b32.xlu0 %v125, 9
    %v634 = vpop.permute.xlu0 %633
    %635 = vrot.lane.b32.xlu0 %v126, 9
    %v636 = vpop.permute.xlu0 %635
    %637 = vrot.lane.b32.xlu0 %v127, 9
    %v638 = vpop.permute.xlu0 %637
    %639 = vrot.lane.b32.xlu0 %v128, 9
    %v640 = vpop.permute.xlu0 %639
    %641 = vrot.lane.b32.xlu0 %v129, 9
    %v642 = vpop.permute.xlu0 %641
    %643 = vrot.lane.b32.xlu0 %v130, 9
    %v644 = vpop.permute.xlu0 %643
    %645 = vrot.lane.b32.xlu0 %v131, 9
    %v646 = vpop.permute.xlu0 %645
    %647 = vrot.lane.b32.xlu0 %v133, 9
    %v648 = vpop.permute.xlu0 %647
    %649 = vrot.lane.b32.xlu0 %v134, 9
    %v650 = vpop.permute.xlu0 %649
    %651 = vrot.lane.b32.xlu0 %v135, 9
    %v652 = vpop.permute.xlu0 %651
    %653 = vrot.lane.b32.xlu0 %v136, 9
    %v654 = vpop.permute.xlu0 %653
    %655 = vrot.lane.b32.xlu0 %v137, 9
    %v656 = vpop.permute.xlu0 %655
    %657 = vrot.lane.b32.xlu0 %v138, 9
    %v658 = vpop.permute.xlu0 %657
    %659 = vrot.lane.b32.xlu0 %v139, 9
    %v660 = vpop.permute.xlu0 %659
    %661 = vrot.lane.b32.xlu0 %v140, 9
    %v662 = vpop.permute.xlu0 %661
    %vm663 = vcmask 72704
    %v664 = vsel %vm663, %v536, %v538
    %v665 = vsel %vm663, %v538, %v540
    %v666 = vsel %vm663, %v540, %v542
    %v667 = vsel %vm663, %v542, %v544
    %v668 = vsel %vm663, %v544, %v546
    %v669 = vsel %vm663, %v546, %v548
    %v670 = vsel %vm663, %v548, %v550
    %v671 = vsel %vm663, %v550, %v512
    %v672 = vsel %vm663, %v552, %v554
    %v673 = vsel %vm663, %v554, %v556
    %v674 = vsel %vm663, %v556, %v558
    %v675 = vsel %vm663, %v558, %v560
    %v676 = vsel %vm663, %v560, %v562
    %v677 = vsel %vm663, %v562, %v564
    %v678 = vsel %vm663, %v564, %v566
    %v679 = vsel %vm663, %v566, %v514
    %v680 = vsel %vm663, %v568, %v570
    %v681 = vsel %vm663, %v570, %v572
    %v682 = vsel %vm663, %v572, %v574
    %v683 = vsel %vm663, %v574, %v576
    %v684 = vsel %vm663, %v576, %v578
    %v685 = vsel %vm663, %v578, %v580
    %v686 = vsel %vm663, %v580, %v582
    %v687 = vsel %vm663, %v582, %v516
    %v688 = vsel %vm663, %v584, %v586
    %v689 = vsel %vm663, %v586, %v588
    %v690 = vsel %vm663, %v588, %v590
    %v691 = vsel %vm663, %v590, %v592
    %v692 = vsel %vm663, %v592, %v594
    %v693 = vsel %vm663, %v594, %v596
    %v694 = vsel %vm663, %v596, %v598
    %v695 = vsel %vm663, %v598, %v518
    %v696 = vsel %vm663, %v600, %v602
    %v697 = vsel %vm663, %v602, %v604
    %v698 = vsel %vm663, %v604, %v606
    %v699 = vsel %vm663, %v606, %v608
    %v700 = vsel %vm663, %v608, %v610
    %v701 = vsel %vm663, %v610, %v612
    %v702 = vsel %vm663, %v612, %v614
    %v703 = vsel %vm663, %v614, %v520
    %v704 = vsel %vm663, %v616, %v618
    %v705 = vsel %vm663, %v618, %v620
    %v706 = vsel %vm663, %v620, %v622
    %v707 = vsel %vm663, %v622, %v624
    %v708 = vsel %vm663, %v624, %v626
    %v709 = vsel %vm663, %v626, %v628
    %v710 = vsel %vm663, %v628, %v630
    %v711 = vsel %vm663, %v630, %v522
    %v712 = vsel %vm663, %v632, %v634
    %v713 = vsel %vm663, %v634, %v636
    %v714 = vsel %vm663, %v636, %v638
    %v715 = vsel %vm663, %v638, %v640
    %v716 = vsel %vm663, %v640, %v642
    %v717 = vsel %vm663, %v642, %v644
    %v718 = vsel %vm663, %v644, %v646
    %v719 = vsel %vm663, %v646, %v524
    %v720 = vsel %vm663, %v648, %v650
    %v721 = vsel %vm663, %v650, %v652
    %v722 = vsel %vm663, %v652, %v654
    %v723 = vsel %vm663, %v654, %v656
    %v724 = vsel %vm663, %v656, %v658
    %v725 = vsel %vm663, %v658, %v660
    %v726 = vsel %vm663, %v660, %v662
    %v727 = vsel %vm663, %v662, %v526
    %v800 = vsel %vm663, %v512, %v536
    %v801 = vsel %vm663, %v514, %v552
    %v802 = vsel %vm663, %v516, %v568
    %v803 = vsel %vm663, %v518, %v584
    %v804 = vsel %vm663, %v520, %v600
    %v805 = vsel %vm663, %v522, %v616
    %v806 = vsel %vm663, %v524, %v632
    %v807 = vsel %vm663, %v526, %v648
    %808 = vrot.lane.b32.xlu0 %v78, 15
    %v809 = vpop.permute.xlu0 %808
    %810 = vrot.lane.b32.xlu0 %v87, 15
    %v811 = vpop.permute.xlu0 %810
    %812 = vrot.lane.b32.xlu0 %v96, 15
    %v813 = vpop.permute.xlu0 %812
    %814 = vrot.lane.b32.xlu0 %v105, 15
    %v815 = vpop.permute.xlu0 %814
    %816 = vrot.lane.b32.xlu0 %v114, 15
    %v817 = vpop.permute.xlu0 %816
    %818 = vrot.lane.b32.xlu0 %v123, 15
    %v819 = vpop.permute.xlu0 %818
    %820 = vrot.lane.b32.xlu0 %v132, 15
    %v821 = vpop.permute.xlu0 %820
    %822 = vrot.lane.b32.xlu0 %v141, 15
    %v823 = vpop.permute.xlu0 %822
    %832 = vrot.lane.b32.xlu0 %v70, 15
    %v833 = vpop.permute.xlu0 %832
    %834 = vrot.lane.b32.xlu0 %v71, 15
    %v835 = vpop.permute.xlu0 %834
    %836 = vrot.lane.b32.xlu0 %v72, 15
    %v837 = vpop.permute.xlu0 %836
    %838 = vrot.lane.b32.xlu0 %v73, 15
    %v839 = vpop.permute.xlu0 %838
    %840 = vrot.lane.b32.xlu0 %v74, 15
    %v841 = vpop.permute.xlu0 %840
    %842 = vrot.lane.b32.xlu0 %v75, 15
    %v843 = vpop.permute.xlu0 %842
    %844 = vrot.lane.b32.xlu0 %v76, 15
    %v845 = vpop.permute.xlu0 %844
    %846 = vrot.lane.b32.xlu0 %v77, 15
    %v847 = vpop.permute.xlu0 %846
    %848 = vrot.lane.b32.xlu0 %v79, 15
    %v849 = vpop.permute.xlu0 %848
    %850 = vrot.lane.b32.xlu0 %v80, 15
    %v851 = vpop.permute.xlu0 %850
    %852 = vrot.lane.b32.xlu0 %v81, 15
    %v853 = vpop.permute.xlu0 %852
    %854 = vrot.lane.b32.xlu0 %v82, 15
    %v855 = vpop.permute.xlu0 %854
    %856 = vrot.lane.b32.xlu0 %v83, 15
    %v857 = vpop.permute.xlu0 %856
    %858 = vrot.lane.b32.xlu0 %v84, 15
    %v859 = vpop.permute.xlu0 %858
    %860 = vrot.lane.b32.xlu0 %v85, 15
    %v861 = vpop.permute.xlu0 %860
    %862 = vrot.lane.b32.xlu0 %v86, 15
    %v863 = vpop.permute.xlu0 %862
    %864 = vrot.lane.b32.xlu0 %v88, 15
    %v865 = vpop.permute.xlu0 %864
    %866 = vrot.lane.b32.xlu0 %v89, 15
    %v867 = vpop.permute.xlu0 %866
    %868 = vrot.lane.b32.xlu0 %v90, 15
    %v869 = vpop.permute.xlu0 %868
    %870 = vrot.lane.b32.xlu0 %v91, 15
    %v871 = vpop.permute.xlu0 %870
    %872 = vrot.lane.b32.xlu0 %v92, 15
    %v873 = vpop.permute.xlu0 %872
    %874 = vrot.lane.b32.xlu0 %v93, 15
    %v875 = vpop.permute.xlu0 %874
    %876 = vrot.lane.b32.xlu0 %v94, 15
    %v877 = vpop.permute.xlu0 %876
    %878 = vrot.lane.b32.xlu0 %v95, 15
    %v879 = vpop.permute.xlu0 %878
    %880 = vrot.lane.b32.xlu0 %v97, 15
    %v881 = vpop.permute.xlu0 %880
    %882 = vrot.lane.b32.xlu0 %v98, 15
    %v883 = vpop.permute.xlu0 %882
    %884 = vrot.lane.b32.xlu0 %v99, 15
    %v885 = vpop.permute.xlu0 %884
    %886 = vrot.lane.b32.xlu0 %v100, 15
    %v887 = vpop.permute.xlu0 %886
    %888 = vrot.lane.b32.xlu0 %v101, 15
    %v889 = vpop.permute.xlu0 %888
    %890 = vrot.lane.b32.xlu0 %v102, 15
    %v891 = vpop.permute.xlu0 %890
    %892 = vrot.lane.b32.xlu0 %v103, 15
    %v893 = vpop.permute.xlu0 %892
    %894 = vrot.lane.b32.xlu0 %v104, 15
    %v895 = vpop.permute.xlu0 %894
    %896 = vrot.lane.b32.xlu0 %v106, 15
    %v897 = vpop.permute.xlu0 %896
    %898 = vrot.lane.b32.xlu0 %v107, 15
    %v899 = vpop.permute.xlu0 %898
    %900 = vrot.lane.b32.xlu0 %v108, 15
    %v901 = vpop.permute.xlu0 %900
    %902 = vrot.lane.b32.xlu0 %v109, 15
    %v903 = vpop.permute.xlu0 %902
    %904 = vrot.lane.b32.xlu0 %v110, 15
    %v905 = vpop.permute.xlu0 %904
    %906 = vrot.lane.b32.xlu0 %v111, 15
    %v907 = vpop.permute.xlu0 %906
    %908 = vrot.lane.b32.xlu0 %v112, 15
    %v909 = vpop.permute.xlu0 %908
    %910 = vrot.lane.b32.xlu0 %v113, 15
    %v911 = vpop.permute.xlu0 %910
    %912 = vrot.lane.b32.xlu0 %v115, 15
    %v913 = vpop.permute.xlu0 %912
    %914 = vrot.lane.b32.xlu0 %v116, 15
    %v915 = vpop.permute.xlu0 %914
    %916 = vrot.lane.b32.xlu0 %v117, 15
    %v917 = vpop.permute.xlu0 %916
    %918 = vrot.lane.b32.xlu0 %v118, 15
    %v919 = vpop.permute.xlu0 %918
    %920 = vrot.lane.b32.xlu0 %v119, 15
    %v921 = vpop.permute.xlu0 %920
    %922 = vrot.lane.b32.xlu0 %v120, 15
    %v923 = vpop.permute.xlu0 %922
    %924 = vrot.lane.b32.xlu0 %v121, 15
    %v925 = vpop.permute.xlu0 %924
    %926 = vrot.lane.b32.xlu0 %v122, 15
    %v927 = vpop.permute.xlu0 %926
    %928 = vrot.lane.b32.xlu0 %v124, 15
    %v929 = vpop.permute.xlu0 %928
    %930 = vrot.lane.b32.xlu0 %v125, 15
    %v931 = vpop.permute.xlu0 %930
    %932 = vrot.lane.b32.xlu0 %v126, 15
    %v933 = vpop.permute.xlu0 %932
    %934 = vrot.lane.b32.xlu0 %v127, 15
    %v935 = vpop.permute.xlu0 %934
    %936 = vrot.lane.b32.xlu0 %v128, 15
    %v937 = vpop.permute.xlu0 %936
    %938 = vrot.lane.b32.xlu0 %v129, 15
    %v939 = vpop.permute.xlu0 %938
    %940 = vrot.lane.b32.xlu0 %v130, 15
    %v941 = vpop.permute.xlu0 %940
    %942 = vrot.lane.b32.xlu0 %v131, 15
    %v943 = vpop.permute.xlu0 %942
    %944 = vrot.lane.b32.xlu0 %v133, 15
    %v945 = vpop.permute.xlu0 %944
    %946 = vrot.lane.b32.xlu0 %v134, 15
    %v947 = vpop.permute.xlu0 %946
    %948 = vrot.lane.b32.xlu0 %v135, 15
    %v949 = vpop.permute.xlu0 %948
    %950 = vrot.lane.b32.xlu0 %v136, 15
    %v951 = vpop.permute.xlu0 %950
    %952 = vrot.lane.b32.xlu0 %v137, 15
    %v953 = vpop.permute.xlu0 %952
    %954 = vrot.lane.b32.xlu0 %v138, 15
    %v955 = vpop.permute.xlu0 %954
    %956 = vrot.lane.b32.xlu0 %v139, 15
    %v957 = vpop.permute.xlu0 %956
    %958 = vrot.lane.b32.xlu0 %v140, 15
    %v959 = vpop.permute.xlu0 %958
    %vm960 = vcmask 121856
    %v961 = vsel %vm960, %v833, %v835
    %v962 = vsel %vm960, %v835, %v837
    %v963 = vsel %vm960, %v837, %v839
    %v964 = vsel %vm960, %v839, %v841
    %v965 = vsel %vm960, %v841, %v843
    %v966 = vsel %vm960, %v843, %v845
    %v967 = vsel %vm960, %v845, %v847
    %v968 = vsel %vm960, %v847, %v809
    %v969 = vsel %vm960, %v849, %v851
    %v970 = vsel %vm960, %v851, %v853
    %v971 = vsel %vm960, %v853, %v855
    %v972 = vsel %vm960, %v855, %v857
    %v973 = vsel %vm960, %v857, %v859
    %v974 = vsel %vm960, %v859, %v861
    %v975 = vsel %vm960, %v861, %v863
    %v976 = vsel %vm960, %v863, %v811
    %v977 = vsel %vm960, %v865, %v867
    %v978 = vsel %vm960, %v867, %v869
    %v979 = vsel %vm960, %v869, %v871
    %v980 = vsel %vm960, %v871, %v873
    %v981 = vsel %vm960, %v873, %v875
    %v982 = vsel %vm960, %v875, %v877
    %v983 = vsel %vm960, %v877, %v879
    %v984 = vsel %vm960, %v879, %v813
    %v985 = vsel %vm960, %v881, %v883
    %v986 = vsel %vm960, %v883, %v885
    %v987 = vsel %vm960, %v885, %v887
    %v988 = vsel %vm960, %v887, %v889
    %v989 = vsel %vm960, %v889, %v891
    %v990 = vsel %vm960, %v891, %v893
    %v991 = vsel %vm960, %v893, %v895
    %v992 = vsel %vm960, %v895, %v815
    %v993 = vsel %vm960, %v897, %v899
    %v994 = vsel %vm960, %v899, %v901
    %v995 = vsel %vm960, %v901, %v903
    %v996 = vsel %vm960, %v903, %v905
    %v997 = vsel %vm960, %v905, %v907
    %v998 = vsel %vm960, %v907, %v909
    %v999 = vsel %vm960, %v909, %v911
    %v1000 = vsel %vm960, %v911, %v817
    %v1001 = vsel %vm960, %v913, %v915
    %v1002 = vsel %vm960, %v915, %v917
    %v1003 = vsel %vm960, %v917, %v919
    %v1004 = vsel %vm960, %v919, %v921
    %v1005 = vsel %vm960, %v921, %v923
    %v1006 = vsel %vm960, %v923, %v925
    %v1007 = vsel %vm960, %v925, %v927
    %v1008 = vsel %vm960, %v927, %v819
    %v1009 = vsel %vm960, %v929, %v931
    %v1010 = vsel %vm960, %v931, %v933
    %v1011 = vsel %vm960, %v933, %v935
    %v1012 = vsel %vm960, %v935, %v937
    %v1013 = vsel %vm960, %v937, %v939
    %v1014 = vsel %vm960, %v939, %v941
    %v1015 = vsel %vm960, %v941, %v943
    %v1016 = vsel %vm960, %v943, %v821
    %v1017 = vsel %vm960, %v945, %v947
    %v1018 = vsel %vm960, %v947, %v949
    %v1019 = vsel %vm960, %v949, %v951
    %v1020 = vsel %vm960, %v951, %v953
    %v1021 = vsel %vm960, %v953, %v955
    %v1022 = vsel %vm960, %v955, %v957
    %v1023 = vsel %vm960, %v957, %v959
    %v1024 = vsel %vm960, %v959, %v823
    %v1097 = vsel %vm960, %v809, %v833
    %v1098 = vsel %vm960, %v811, %v849
    %v1099 = vsel %vm960, %v813, %v865
    %v1100 = vsel %vm960, %v815, %v881
    %v1101 = vsel %vm960, %v817, %v897
    %v1102 = vsel %vm960, %v819, %v913
    %v1103 = vsel %vm960, %v821, %v929
    %v1104 = vsel %vm960, %v823, %v945
    %v1105 = vsub.f32 %v503, %v800
    %v1106 = vsub.f32 %v367, %v664
    %v1107 = vsub.f32 %v368, %v665
    %v1108 = vsub.f32 %v369, %v666
    %v1109 = vsub.f32 %v370, %v667
    %v1110 = vsub.f32 %v371, %v668
    %v1111 = vsub.f32 %v372, %v669
    %v1112 = vsub.f32 %v373, %v670
    %v1113 = vsub.f32 %v374, %v671
    %v1114 = vsub.f32 %v504, %v801
    %v1115 = vsub.f32 %v375, %v672
    %v1116 = vsub.f32 %v376, %v673
    %v1117 = vsub.f32 %v377, %v674
    %v1118 = vsub.f32 %v378, %v675
    %v1119 = vsub.f32 %v379, %v676
    %v1120 = vsub.f32 %v380, %v677
    %v1121 = vsub.f32 %v381, %v678
    %v1122 = vsub.f32 %v382, %v679
    %v1123 = vsub.f32 %v505, %v802
    %v1124 = vsub.f32 %v383, %v680
    %v1125 = vsub.f32 %v384, %v681
    %v1126 = vsub.f32 %v385, %v682
    %v1127 = vsub.f32 %v386, %v683
    %v1128 = vsub.f32 %v387, %v684
    %v1129 = vsub.f32 %v388, %v685
    %v1130 = vsub.f32 %v389, %v686
    %v1131 = vsub.f32 %v390, %v687
    %v1132 = vsub.f32 %v506, %v803
    %v1133 = vsub.f32 %v391, %v688
    %v1134 = vsub.f32 %v392, %v689
    %v1135 = vsub.f32 %v393, %v690
    %v1136 = vsub.f32 %v394, %v691
    %v1137 = vsub.f32 %v395, %v692
    %v1138 = vsub.f32 %v396, %v693
    %v1139 = vsub.f32 %v397, %v694
    %v1140 = vsub.f32 %v398, %v695
    %v1141 = vsub.f32 %v507, %v804
    %v1142 = vsub.f32 %v399, %v696
    %v1143 = vsub.f32 %v400, %v697
    %v1144 = vsub.f32 %v401, %v698
    %v1145 = vsub.f32 %v402, %v699
    %v1146 = vsub.f32 %v403, %v700
    %v1147 = vsub.f32 %v404, %v701
    %v1148 = vsub.f32 %v405, %v702
    %v1149 = vsub.f32 %v406, %v703
    %v1150 = vsub.f32 %v508, %v805
    %v1151 = vsub.f32 %v407, %v704
    %v1152 = vsub.f32 %v408, %v705
    %v1153 = vsub.f32 %v409, %v706
    %v1154 = vsub.f32 %v410, %v707
    %v1155 = vsub.f32 %v411, %v708
    %v1156 = vsub.f32 %v412, %v709
    %v1157 = vsub.f32 %v413, %v710
    %v1158 = vsub.f32 %v414, %v711
    %v1159 = vsub.f32 %v509, %v806
    %v1160 = vsub.f32 %v415, %v712
    %v1161 = vsub.f32 %v416, %v713
    %v1162 = vsub.f32 %v417, %v714
    %v1163 = vsub.f32 %v418, %v715
    %v1164 = vsub.f32 %v419, %v716
    %v1165 = vsub.f32 %v420, %v717
    %v1166 = vsub.f32 %v421, %v718
    %v1167 = vsub.f32 %v422, %v719
    %v1168 = vsub.f32 %v510, %v807
    %v1169 = vsub.f32 %v423, %v720
    %v1170 = vsub.f32 %v424, %v721
    %v1171 = vsub.f32 %v425, %v722
    %v1172 = vsub.f32 %v426, %v723
    %v1173 = vsub.f32 %v427, %v724
    %v1174 = vsub.f32 %v428, %v725
    %v1175 = vsub.f32 %v429, %v726
    %v1176 = vsub.f32 %v430, %v727
    %v1177 = vsub.f32 %v800, %v1097
    %v1178 = vsub.f32 %v664, %v961
    %v1179 = vsub.f32 %v665, %v962
    %v1180 = vsub.f32 %v666, %v963
    %v1181 = vsub.f32 %v667, %v964
    %v1182 = vsub.f32 %v668, %v965
    %v1183 = vsub.f32 %v669, %v966
    %v1184 = vsub.f32 %v670, %v967
    %v1185 = vsub.f32 %v671, %v968
    %v1186 = vsub.f32 %v801, %v1098
    %v1187 = vsub.f32 %v672, %v969
    %v1188 = vsub.f32 %v673, %v970
    %v1189 = vsub.f32 %v674, %v971
    %v1190 = vsub.f32 %v675, %v972
    %v1191 = vsub.f32 %v676, %v973
    %v1192 = vsub.f32 %v677, %v974
    %v1193 = vsub.f32 %v678, %v975
    %v1194 = vsub.f32 %v679, %v976
    %v1195 = vsub.f32 %v802, %v1099
    %v1196 = vsub.f32 %v680, %v977
    %v1197 = vsub.f32 %v681, %v978
    %v1198 = vsub.f32 %v682, %v979
    %v1199 = vsub.f32 %v683, %v980
    %v1200 = vsub.f32 %v684, %v981
    %v1201 = vsub.f32 %v685, %v982
    %v1202 = vsub.f32 %v686, %v983
    %v1203 = vsub.f32 %v687, %v984
    %v1204 = vsub.f32 %v803, %v1100
    %v1205 = vsub.f32 %v688, %v985
    %v1206 = vsub.f32 %v689, %v986
    %v1207 = vsub.f32 %v690, %v987
    %v1208 = vsub.f32 %v691, %v988
    %v1209 = vsub.f32 %v692, %v989
    %v1210 = vsub.f32 %v693, %v990
    %v1211 = vsub.f32 %v694, %v991
    %v1212 = vsub.f32 %v695, %v992
    %v1213 = vsub.f32 %v804, %v1101
    %v1214 = vsub.f32 %v696, %v993
    %v1215 = vsub.f32 %v697, %v994
    %v1216 = vsub.f32 %v698, %v995
    %v1217 = vsub.f32 %v699, %v996
    %v1218 = vsub.f32 %v700, %v997
    %v1219 = vsub.f32 %v701, %v998
    %v1220 = vsub.f32 %v702, %v999
    %v1221 = vsub.f32 %v703, %v1000
    %v1222 = vsub.f32 %v805, %v1102
    %v1223 = vsub.f32 %v704, %v1001
    %v1224 = vsub.f32 %v705, %v1002
    %v1225 = vsub.f32 %v706, %v1003
    %v1226 = vsub.f32 %v707, %v1004
    %v1227 = vsub.f32 %v708, %v1005
    %v1228 = vsub.f32 %v709, %v1006
    %v1229 = vsub.f32 %v710, %v1007
    %v1230 = vsub.f32 %v711, %v1008
    %v1231 = vsub.f32 %v806, %v1103
    %v1232 = vsub.f32 %v712, %v1009
    %v1233 = vsub.f32 %v713, %v1010
    %v1234 = vsub.f32 %v714, %v1011
    %v1235 = vsub.f32 %v715, %v1012
    %v1236 = vsub.f32 %v716, %v1013
    %v1237 = vsub.f32 %v717, %v1014
    %v1238 = vsub.f32 %v718, %v1015
    %v1239 = vsub.f32 %v719, %v1016
    %v1240 = vsub.f32 %v807, %v1104
    %v1241 = vsub.f32 %v720, %v1017
    %v1242 = vsub.f32 %v721, %v1018
    %v1243 = vsub.f32 %v722, %v1019
    %v1244 = vsub.f32 %v723, %v1020
    %v1245 = vsub.f32 %v724, %v1021
    %v1246 = vsub.f32 %v725, %v1022
    %v1247 = vsub.f32 %v726, %v1023
    %v1248 = vsub.f32 %v727, %v1024
    %v1249 = vmul.f32 %v1105, %v1105
    %v1250 = vmul.f32 %v1106, %v1106
    %v1251 = vmul.f32 %v1107, %v1107
    %v1252 = vmul.f32 %v1108, %v1108
    %v1253 = vmul.f32 %v1109, %v1109
    %v1254 = vmul.f32 %v1110, %v1110
    %v1255 = vmul.f32 %v1111, %v1111
    %v1256 = vmul.f32 %v1112, %v1112
    %v1257 = vmul.f32 %v1113, %v1113
    %v1258 = vmul.f32 %v1114, %v1114
    %v1259 = vmul.f32 %v1115, %v1115
    %v1260 = vmul.f32 %v1116, %v1116
    %v1261 = vmul.f32 %v1117, %v1117
    %v1262 = vmul.f32 %v1118, %v1118
    %v1263 = vmul.f32 %v1119, %v1119
    %v1264 = vmul.f32 %v1120, %v1120
    %v1265 = vmul.f32 %v1121, %v1121
    %v1266 = vmul.f32 %v1122, %v1122
    %v1267 = vmul.f32 %v1123, %v1123
    %v1268 = vmul.f32 %v1124, %v1124
    %v1269 = vmul.f32 %v1125, %v1125
    %v1270 = vmul.f32 %v1126, %v1126
    %v1271 = vmul.f32 %v1127, %v1127
    %v1272 = vmul.f32 %v1128, %v1128
    %v1273 = vmul.f32 %v1129, %v1129
    %v1274 = vmul.f32 %v1130, %v1130
    %v1275 = vmul.f32 %v1131, %v1131
    %v1276 = vmul.f32 %v1132, %v1132
    %v1277 = vmul.f32 %v1133, %v1133
    %v1278 = vmul.f32 %v1134, %v1134
    %v1279 = vmul.f32 %v1135, %v1135
    %v1280 = vmul.f32 %v1136, %v1136
    %v1281 = vmul.f32 %v1137, %v1137
    %v1282 = vmul.f32 %v1138, %v1138
    %v1283 = vmul.f32 %v1139, %v1139
    %v1284 = vmul.f32 %v1140, %v1140
    %v1285 = vmul.f32 %v1141, %v1141
    %v1286 = vmul.f32 %v1142, %v1142
    %v1287 = vmul.f32 %v1143, %v1143
    %v1288 = vmul.f32 %v1144, %v1144
    %v1289 = vmul.f32 %v1145, %v1145
    %v1290 = vmul.f32 %v1146, %v1146
    %v1291 = vmul.f32 %v1147, %v1147
    %v1292 = vmul.f32 %v1148, %v1148
    %v1293 = vmul.f32 %v1149, %v1149
    %v1294 = vmul.f32 %v1150, %v1150
    %v1295 = vmul.f32 %v1151, %v1151
    %v1296 = vmul.f32 %v1152, %v1152
    %v1297 = vmul.f32 %v1153, %v1153
    %v1298 = vmul.f32 %v1154, %v1154
    %v1299 = vmul.f32 %v1155, %v1155
    %v1300 = vmul.f32 %v1156, %v1156
    %v1301 = vmul.f32 %v1157, %v1157
    %v1302 = vmul.f32 %v1158, %v1158
    %v1303 = vmul.f32 %v1159, %v1159
    %v1304 = vmul.f32 %v1160, %v1160
    %v1305 = vmul.f32 %v1161, %v1161
    %v1306 = vmul.f32 %v1162, %v1162
    %v1307 = vmul.f32 %v1163, %v1163
    %v1308 = vmul.f32 %v1164, %v1164
    %v1309 = vmul.f32 %v1165, %v1165
    %v1310 = vmul.f32 %v1166, %v1166
    %v1311 = vmul.f32 %v1167, %v1167
    %v1312 = vmul.f32 %v1168, %v1168
    %v1313 = vmul.f32 %v1169, %v1169
    %v1314 = vmul.f32 %v1170, %v1170
    %v1315 = vmul.f32 %v1171, %v1171
    %v1316 = vmul.f32 %v1172, %v1172
    %v1317 = vmul.f32 %v1173, %v1173
    %v1318 = vmul.f32 %v1174, %v1174
    %v1319 = vmul.f32 %v1175, %v1175
    %v1320 = vmul.f32 %v1176, %v1176
    %v1323 = vlaneseq
    %v1324 = vshrl.u32 %v1323, 7
    %v1325 = vsub.s32 0, %v1324
    %v1326 = vrot.slane %v52, %v1325
    %v1327 = vlaneseq
    %v1328 = vshrl.u32 %v1327, 7
    %v1329 = vsub.s32 1, %v1328
    %v1330 = vrot.slane %v52, %v1329
    %v1331 = vlaneseq
    %v1332 = vshrl.u32 %v1331, 7
    %v1333 = vsub.s32 2, %v1332
    %v1334 = vrot.slane %v52, %v1333
    %v1335 = vlaneseq
    %v1336 = vshrl.u32 %v1335, 7
    %v1337 = vsub.s32 3, %v1336
    %v1338 = vrot.slane %v52, %v1337
    %v1339 = vlaneseq
    %v1340 = vshrl.u32 %v1339, 7
    %v1341 = vsub.s32 4, %v1340
    %v1342 = vrot.slane %v52, %v1341
    %v1343 = vlaneseq
    %v1344 = vshrl.u32 %v1343, 7
    %v1345 = vsub.s32 5, %v1344
    %v1346 = vrot.slane %v52, %v1345
    %v1347 = vlaneseq
    %v1348 = vshrl.u32 %v1347, 7
    %v1349 = vsub.s32 6, %v1348
    %v1350 = vrot.slane %v52, %v1349
    %v1351 = vlaneseq
    %v1352 = vshrl.u32 %v1351, 7
    %v1353 = vsub.s32 7, %v1352
    %v1354 = vrot.slane %v52, %v1353
    %v1355 = vlaneseq
    %v1356 = vshrl.u32 %v1355, 7
    %v1357 = vsub.s32 0, %v1356
    %v1358 = vrot.slane %v54, %v1357
    %v1368 = vmul.f32 %v1249, %v1326
    %v1369 = vmul.f32 %v1250, %v1330
    %v1370 = vmul.f32 %v1251, %v1334
    %v1371 = vmul.f32 %v1252, %v1338
    %v1372 = vmul.f32 %v1253, %v1342
    %v1373 = vmul.f32 %v1254, %v1346
    %v1374 = vmul.f32 %v1255, %v1350
    %v1375 = vmul.f32 %v1256, %v1354
    %v1376 = vmul.f32 %v1257, %v1358
    %v1377 = vmul.f32 %v1258, %v1326
    %v1378 = vmul.f32 %v1259, %v1330
    %v1379 = vmul.f32 %v1260, %v1334
    %v1380 = vmul.f32 %v1261, %v1338
    %v1381 = vmul.f32 %v1262, %v1342
    %v1382 = vmul.f32 %v1263, %v1346
    %v1383 = vmul.f32 %v1264, %v1350
    %v1384 = vmul.f32 %v1265, %v1354
    %v1385 = vmul.f32 %v1266, %v1358
    %v1386 = vmul.f32 %v1267, %v1326
    %v1387 = vmul.f32 %v1268, %v1330
    %v1388 = vmul.f32 %v1269, %v1334
    %v1389 = vmul.f32 %v1270, %v1338
    %v1390 = vmul.f32 %v1271, %v1342
    %v1391 = vmul.f32 %v1272, %v1346
    %v1392 = vmul.f32 %v1273, %v1350
    %v1393 = vmul.f32 %v1274, %v1354
    %v1394 = vmul.f32 %v1275, %v1358
    %v1395 = vmul.f32 %v1276, %v1326
    %v1396 = vmul.f32 %v1277, %v1330
    %v1397 = vmul.f32 %v1278, %v1334
    %v1398 = vmul.f32 %v1279, %v1338
    %v1399 = vmul.f32 %v1280, %v1342
    %v1400 = vmul.f32 %v1281, %v1346
    %v1401 = vmul.f32 %v1282, %v1350
    %v1402 = vmul.f32 %v1283, %v1354
    %v1403 = vmul.f32 %v1284, %v1358
    %v1404 = vmul.f32 %v1285, %v1326
    %v1405 = vmul.f32 %v1286, %v1330
    %v1406 = vmul.f32 %v1287, %v1334
    %v1407 = vmul.f32 %v1288, %v1338
    %v1408 = vmul.f32 %v1289, %v1342
    %v1409 = vmul.f32 %v1290, %v1346
    %v1410 = vmul.f32 %v1291, %v1350
    %v1411 = vmul.f32 %v1292, %v1354
    %v1412 = vmul.f32 %v1293, %v1358
    %v1413 = vmul.f32 %v1294, %v1326
    %v1414 = vmul.f32 %v1295, %v1330
    %v1415 = vmul.f32 %v1296, %v1334
    %v1416 = vmul.f32 %v1297, %v1338
    %v1417 = vmul.f32 %v1298, %v1342
    %v1418 = vmul.f32 %v1299, %v1346
    %v1419 = vmul.f32 %v1300, %v1350
    %v1420 = vmul.f32 %v1301, %v1354
    %v1421 = vmul.f32 %v1302, %v1358
    %v1422 = vmul.f32 %v1303, %v1326
    %v1423 = vmul.f32 %v1304, %v1330
    %v1424 = vmul.f32 %v1305, %v1334
    %v1425 = vmul.f32 %v1306, %v1338
    %v1426 = vmul.f32 %v1307, %v1342
    %v1427 = vmul.f32 %v1308, %v1346
    %v1428 = vmul.f32 %v1309, %v1350
    %v1429 = vmul.f32 %v1310, %v1354
    %v1430 = vmul.f32 %v1311, %v1358
    %v1431 = vmul.f32 %v1312, %v1326
    %v1432 = vmul.f32 %v1313, %v1330
    %v1433 = vmul.f32 %v1314, %v1334
    %v1434 = vmul.f32 %v1315, %v1338
    %v1435 = vmul.f32 %v1316, %v1342
    %v1436 = vmul.f32 %v1317, %v1346
    %v1437 = vmul.f32 %v1318, %v1350
    %v1438 = vmul.f32 %v1319, %v1354
    %v1439 = vmul.f32 %v1320, %v1358
    %v1440 = vadd.f32 %v1368, %v1369
    %v1441 = vadd.f32 %v1440, %v1370
    %v1442 = vadd.f32 %v1441, %v1371
    %v1443 = vadd.f32 %v1442, %v1372
    %v1444 = vadd.f32 %v1443, %v1373
    %v1445 = vadd.f32 %v1444, %v1374
    %v1446 = vadd.f32 %v1445, %v1375
    %v1447 = vadd.f32 %v1446, %v1376
    %v1448 = vadd.f32 %v1447, %v1377
    %v1449 = vadd.f32 %v1448, %v1378
    %v1450 = vadd.f32 %v1449, %v1379
    %v1451 = vadd.f32 %v1450, %v1380
    %v1452 = vadd.f32 %v1451, %v1381
    %v1453 = vadd.f32 %v1452, %v1382
    %v1454 = vadd.f32 %v1453, %v1383
    %v1455 = vadd.f32 %v1454, %v1384
    %v1456 = vadd.f32 %v1455, %v1385
    %v1457 = vadd.f32 %v1456, %v1386
    %v1458 = vadd.f32 %v1457, %v1387
    %v1459 = vadd.f32 %v1458, %v1388
    %v1460 = vadd.f32 %v1459, %v1389
    %v1461 = vadd.f32 %v1460, %v1390
    %v1462 = vadd.f32 %v1461, %v1391
    %v1463 = vadd.f32 %v1462, %v1392
    %v1464 = vadd.f32 %v1463, %v1393
    %v1465 = vadd.f32 %v1464, %v1394
    %v1466 = vadd.f32 %v1465, %v1395
    %v1467 = vadd.f32 %v1466, %v1396
    %v1468 = vadd.f32 %v1467, %v1397
    %v1469 = vadd.f32 %v1468, %v1398
    %v1470 = vadd.f32 %v1469, %v1399
    %v1471 = vadd.f32 %v1470, %v1400
    %v1472 = vadd.f32 %v1471, %v1401
    %v1473 = vadd.f32 %v1472, %v1402
    %v1474 = vadd.f32 %v1473, %v1403
    %v1475 = vadd.f32 %v1474, %v1404
    %v1476 = vadd.f32 %v1475, %v1405
    %v1477 = vadd.f32 %v1476, %v1406
    %v1478 = vadd.f32 %v1477, %v1407
    %v1479 = vadd.f32 %v1478, %v1408
    %v1480 = vadd.f32 %v1479, %v1409
    %v1481 = vadd.f32 %v1480, %v1410
    %v1482 = vadd.f32 %v1481, %v1411
    %v1483 = vadd.f32 %v1482, %v1412
    %v1484 = vadd.f32 %v1483, %v1413
    %v1485 = vadd.f32 %v1484, %v1414
    %v1486 = vadd.f32 %v1485, %v1415
    %v1487 = vadd.f32 %v1486, %v1416
    %v1488 = vadd.f32 %v1487, %v1417
    %v1489 = vadd.f32 %v1488, %v1418
    %v1490 = vadd.f32 %v1489, %v1419
    %v1491 = vadd.f32 %v1490, %v1420
    %v1492 = vadd.f32 %v1491, %v1421
    %v1493 = vadd.f32 %v1492, %v1422
    %v1494 = vadd.f32 %v1493, %v1423
    %v1495 = vadd.f32 %v1494, %v1424
    %v1496 = vadd.f32 %v1495, %v1425
    %v1497 = vadd.f32 %v1496, %v1426
    %v1498 = vadd.f32 %v1497, %v1427
    %v1499 = vadd.f32 %v1498, %v1428
    %v1500 = vadd.f32 %v1499, %v1429
    %v1501 = vadd.f32 %v1500, %v1430
    %v1502 = vadd.f32 %v1501, %v1431
    %v1503 = vadd.f32 %v1502, %v1432
    %v1504 = vadd.f32 %v1503, %v1433
    %v1505 = vadd.f32 %v1504, %v1434
    %v1506 = vadd.f32 %v1505, %v1435
    %v1507 = vadd.f32 %v1506, %v1436
    %v1508 = vadd.f32 %v1507, %v1437
    %v1509 = vadd.f32 %v1508, %v1438
    %v1510 = vadd.f32 %v1509, %v1439
    %1511 = vadd.xlane.f32.xlu0 %v1510
    %v1512 = vpop.xlane.xlu0 %1511
    %v1513 = vrot.slane %v1512, 4
    %v1514 = vadd.f32 %v1512, %v1513
    %v1515 = vrot.slane %v1514, 2
    %v1516 = vadd.f32 %v1514, %v1515
    %v1517 = vrot.slane %v1516, 1
    %v1518 = vadd.f32 %v1516, %v1517
    %s1519 = vtos %v1518
    %v1520 = vstv %s1519
    %v1521 = vadd.f32 %v1520, 0.0
    %v1524 = vlaneseq
    %v1525 = vshrl.u32 %v1524, 7
    %v1526 = vsub.s32 0, %v1525
    %v1527 = vrot.slane %v56, %v1526
    %v1528 = vlaneseq
    %v1529 = vshrl.u32 %v1528, 7
    %v1530 = vsub.s32 1, %v1529
    %v1531 = vrot.slane %v56, %v1530
    %v1532 = vlaneseq
    %v1533 = vshrl.u32 %v1532, 7
    %v1534 = vsub.s32 2, %v1533
    %v1535 = vrot.slane %v56, %v1534
    %v1536 = vlaneseq
    %v1537 = vshrl.u32 %v1536, 7
    %v1538 = vsub.s32 3, %v1537
    %v1539 = vrot.slane %v56, %v1538
    %v1540 = vlaneseq
    %v1541 = vshrl.u32 %v1540, 7
    %v1542 = vsub.s32 4, %v1541
    %v1543 = vrot.slane %v56, %v1542
    %v1544 = vlaneseq
    %v1545 = vshrl.u32 %v1544, 7
    %v1546 = vsub.s32 5, %v1545
    %v1547 = vrot.slane %v56, %v1546
    %v1548 = vlaneseq
    %v1549 = vshrl.u32 %v1548, 7
    %v1550 = vsub.s32 6, %v1549
    %v1551 = vrot.slane %v56, %v1550
    %v1552 = vlaneseq
    %v1553 = vshrl.u32 %v1552, 7
    %v1554 = vsub.s32 7, %v1553
    %v1555 = vrot.slane %v56, %v1554
    %v1556 = vlaneseq
    %v1557 = vshrl.u32 %v1556, 7
    %v1558 = vsub.s32 0, %v1557
    %v1559 = vrot.slane %v58, %v1558
    %v1569 = vmul.f32 %v1249, %v1527
    %v1570 = vmul.f32 %v1250, %v1531
    %v1571 = vmul.f32 %v1251, %v1535
    %v1572 = vmul.f32 %v1252, %v1539
    %v1573 = vmul.f32 %v1253, %v1543
    %v1574 = vmul.f32 %v1254, %v1547
    %v1575 = vmul.f32 %v1255, %v1551
    %v1576 = vmul.f32 %v1256, %v1555
    %v1577 = vmul.f32 %v1257, %v1559
    %v1578 = vmul.f32 %v1258, %v1527
    %v1579 = vmul.f32 %v1259, %v1531
    %v1580 = vmul.f32 %v1260, %v1535
    %v1581 = vmul.f32 %v1261, %v1539
    %v1582 = vmul.f32 %v1262, %v1543
    %v1583 = vmul.f32 %v1263, %v1547
    %v1584 = vmul.f32 %v1264, %v1551
    %v1585 = vmul.f32 %v1265, %v1555
    %v1586 = vmul.f32 %v1266, %v1559
    %v1587 = vmul.f32 %v1267, %v1527
    %v1588 = vmul.f32 %v1268, %v1531
    %v1589 = vmul.f32 %v1269, %v1535
    %v1590 = vmul.f32 %v1270, %v1539
    %v1591 = vmul.f32 %v1271, %v1543
    %v1592 = vmul.f32 %v1272, %v1547
    %v1593 = vmul.f32 %v1273, %v1551
    %v1594 = vmul.f32 %v1274, %v1555
    %v1595 = vmul.f32 %v1275, %v1559
    %v1596 = vmul.f32 %v1276, %v1527
    %v1597 = vmul.f32 %v1277, %v1531
    %v1598 = vmul.f32 %v1278, %v1535
    %v1599 = vmul.f32 %v1279, %v1539
    %v1600 = vmul.f32 %v1280, %v1543
    %v1601 = vmul.f32 %v1281, %v1547
    %v1602 = vmul.f32 %v1282, %v1551
    %v1603 = vmul.f32 %v1283, %v1555
    %v1604 = vmul.f32 %v1284, %v1559
    %v1605 = vmul.f32 %v1285, %v1527
    %v1606 = vmul.f32 %v1286, %v1531
    %v1607 = vmul.f32 %v1287, %v1535
    %v1608 = vmul.f32 %v1288, %v1539
    %v1609 = vmul.f32 %v1289, %v1543
    %v1610 = vmul.f32 %v1290, %v1547
    %v1611 = vmul.f32 %v1291, %v1551
    %v1612 = vmul.f32 %v1292, %v1555
    %v1613 = vmul.f32 %v1293, %v1559
    %v1614 = vmul.f32 %v1294, %v1527
    %v1615 = vmul.f32 %v1295, %v1531
    %v1616 = vmul.f32 %v1296, %v1535
    %v1617 = vmul.f32 %v1297, %v1539
    %v1618 = vmul.f32 %v1298, %v1543
    %v1619 = vmul.f32 %v1299, %v1547
    %v1620 = vmul.f32 %v1300, %v1551
    %v1621 = vmul.f32 %v1301, %v1555
    %v1622 = vmul.f32 %v1302, %v1559
    %v1623 = vmul.f32 %v1303, %v1527
    %v1624 = vmul.f32 %v1304, %v1531
    %v1625 = vmul.f32 %v1305, %v1535
    %v1626 = vmul.f32 %v1306, %v1539
    %v1627 = vmul.f32 %v1307, %v1543
    %v1628 = vmul.f32 %v1308, %v1547
    %v1629 = vmul.f32 %v1309, %v1551
    %v1630 = vmul.f32 %v1310, %v1555
    %v1631 = vmul.f32 %v1311, %v1559
    %v1632 = vmul.f32 %v1312, %v1527
    %v1633 = vmul.f32 %v1313, %v1531
    %v1634 = vmul.f32 %v1314, %v1535
    %v1635 = vmul.f32 %v1315, %v1539
    %v1636 = vmul.f32 %v1316, %v1543
    %v1637 = vmul.f32 %v1317, %v1547
    %v1638 = vmul.f32 %v1318, %v1551
    %v1639 = vmul.f32 %v1319, %v1555
    %v1640 = vmul.f32 %v1320, %v1559
    %v1641 = vadd.f32 %v1569, %v1570
    %v1642 = vadd.f32 %v1641, %v1571
    %v1643 = vadd.f32 %v1642, %v1572
    %v1644 = vadd.f32 %v1643, %v1573
    %v1645 = vadd.f32 %v1644, %v1574
    %v1646 = vadd.f32 %v1645, %v1575
    %v1647 = vadd.f32 %v1646, %v1576
    %v1648 = vadd.f32 %v1647, %v1577
    %v1649 = vadd.f32 %v1648, %v1578
    %v1650 = vadd.f32 %v1649, %v1579
    %v1651 = vadd.f32 %v1650, %v1580
    %v1652 = vadd.f32 %v1651, %v1581
    %v1653 = vadd.f32 %v1652, %v1582
    %v1654 = vadd.f32 %v1653, %v1583
    %v1655 = vadd.f32 %v1654, %v1584
    %v1656 = vadd.f32 %v1655, %v1585
    %v1657 = vadd.f32 %v1656, %v1586
    %v1658 = vadd.f32 %v1657, %v1587
    %v1659 = vadd.f32 %v1658, %v1588
    %v1660 = vadd.f32 %v1659, %v1589
    %v1661 = vadd.f32 %v1660, %v1590
    %v1662 = vadd.f32 %v1661, %v1591
    %v1663 = vadd.f32 %v1662, %v1592
    %v1664 = vadd.f32 %v1663, %v1593
    %v1665 = vadd.f32 %v1664, %v1594
    %v1666 = vadd.f32 %v1665, %v1595
    %v1667 = vadd.f32 %v1666, %v1596
    %v1668 = vadd.f32 %v1667, %v1597
    %v1669 = vadd.f32 %v1668, %v1598
    %v1670 = vadd.f32 %v1669, %v1599
    %v1671 = vadd.f32 %v1670, %v1600
    %v1672 = vadd.f32 %v1671, %v1601
    %v1673 = vadd.f32 %v1672, %v1602
    %v1674 = vadd.f32 %v1673, %v1603
    %v1675 = vadd.f32 %v1674, %v1604
    %v1676 = vadd.f32 %v1675, %v1605
    %v1677 = vadd.f32 %v1676, %v1606
    %v1678 = vadd.f32 %v1677, %v1607
    %v1679 = vadd.f32 %v1678, %v1608
    %v1680 = vadd.f32 %v1679, %v1609
    %v1681 = vadd.f32 %v1680, %v1610
    %v1682 = vadd.f32 %v1681, %v1611
    %v1683 = vadd.f32 %v1682, %v1612
    %v1684 = vadd.f32 %v1683, %v1613
    %v1685 = vadd.f32 %v1684, %v1614
    %v1686 = vadd.f32 %v1685, %v1615
    %v1687 = vadd.f32 %v1686, %v1616
    %v1688 = vadd.f32 %v1687, %v1617
    %v1689 = vadd.f32 %v1688, %v1618
    %v1690 = vadd.f32 %v1689, %v1619
    %v1691 = vadd.f32 %v1690, %v1620
    %v1692 = vadd.f32 %v1691, %v1621
    %v1693 = vadd.f32 %v1692, %v1622
    %v1694 = vadd.f32 %v1693, %v1623
    %v1695 = vadd.f32 %v1694, %v1624
    %v1696 = vadd.f32 %v1695, %v1625
    %v1697 = vadd.f32 %v1696, %v1626
    %v1698 = vadd.f32 %v1697, %v1627
    %v1699 = vadd.f32 %v1698, %v1628
    %v1700 = vadd.f32 %v1699, %v1629
    %v1701 = vadd.f32 %v1700, %v1630
    %v1702 = vadd.f32 %v1701, %v1631
    %v1703 = vadd.f32 %v1702, %v1632
    %v1704 = vadd.f32 %v1703, %v1633
    %v1705 = vadd.f32 %v1704, %v1634
    %v1706 = vadd.f32 %v1705, %v1635
    %v1707 = vadd.f32 %v1706, %v1636
    %v1708 = vadd.f32 %v1707, %v1637
    %v1709 = vadd.f32 %v1708, %v1638
    %v1710 = vadd.f32 %v1709, %v1639
    %v1711 = vadd.f32 %v1710, %v1640
    %1712 = vadd.xlane.f32.xlu0 %v1711
    %v1713 = vpop.xlane.xlu0 %1712
    %v1714 = vrot.slane %v1713, 4
    %v1715 = vadd.f32 %v1713, %v1714
    %v1716 = vrot.slane %v1715, 2
    %v1717 = vadd.f32 %v1715, %v1716
    %v1718 = vrot.slane %v1717, 1
    %v1719 = vadd.f32 %v1717, %v1718
    %s1720 = vtos %v1719
    %v1721 = vstv %s1720
    %v1722 = vadd.f32 %v1721, 0.0
    %v1723 = vmul.f32 %v1177, %v1177
    %v1724 = vmul.f32 %v1178, %v1178
    %v1725 = vmul.f32 %v1179, %v1179
    %v1726 = vmul.f32 %v1180, %v1180
    %v1727 = vmul.f32 %v1181, %v1181
    %v1728 = vmul.f32 %v1182, %v1182
    %v1729 = vmul.f32 %v1183, %v1183
    %v1730 = vmul.f32 %v1184, %v1184
    %v1731 = vmul.f32 %v1185, %v1185
    %v1732 = vmul.f32 %v1186, %v1186
    %v1733 = vmul.f32 %v1187, %v1187
    %v1734 = vmul.f32 %v1188, %v1188
    %v1735 = vmul.f32 %v1189, %v1189
    %v1736 = vmul.f32 %v1190, %v1190
    %v1737 = vmul.f32 %v1191, %v1191
    %v1738 = vmul.f32 %v1192, %v1192
    %v1739 = vmul.f32 %v1193, %v1193
    %v1740 = vmul.f32 %v1194, %v1194
    %v1741 = vmul.f32 %v1195, %v1195
    %v1742 = vmul.f32 %v1196, %v1196
    %v1743 = vmul.f32 %v1197, %v1197
    %v1744 = vmul.f32 %v1198, %v1198
    %v1745 = vmul.f32 %v1199, %v1199
    %v1746 = vmul.f32 %v1200, %v1200
    %v1747 = vmul.f32 %v1201, %v1201
    %v1748 = vmul.f32 %v1202, %v1202
    %v1749 = vmul.f32 %v1203, %v1203
    %v1750 = vmul.f32 %v1204, %v1204
    %v1751 = vmul.f32 %v1205, %v1205
    %v1752 = vmul.f32 %v1206, %v1206
    %v1753 = vmul.f32 %v1207, %v1207
    %v1754 = vmul.f32 %v1208, %v1208
    %v1755 = vmul.f32 %v1209, %v1209
    %v1756 = vmul.f32 %v1210, %v1210
    %v1757 = vmul.f32 %v1211, %v1211
    %v1758 = vmul.f32 %v1212, %v1212
    %v1759 = vmul.f32 %v1213, %v1213
    %v1760 = vmul.f32 %v1214, %v1214
    %v1761 = vmul.f32 %v1215, %v1215
    %v1762 = vmul.f32 %v1216, %v1216
    %v1763 = vmul.f32 %v1217, %v1217
    %v1764 = vmul.f32 %v1218, %v1218
    %v1765 = vmul.f32 %v1219, %v1219
    %v1766 = vmul.f32 %v1220, %v1220
    %v1767 = vmul.f32 %v1221, %v1221
    %v1768 = vmul.f32 %v1222, %v1222
    %v1769 = vmul.f32 %v1223, %v1223
    %v1770 = vmul.f32 %v1224, %v1224
    %v1771 = vmul.f32 %v1225, %v1225
    %v1772 = vmul.f32 %v1226, %v1226
    %v1773 = vmul.f32 %v1227, %v1227
    %v1774 = vmul.f32 %v1228, %v1228
    %v1775 = vmul.f32 %v1229, %v1229
    %v1776 = vmul.f32 %v1230, %v1230
    %v1777 = vmul.f32 %v1231, %v1231
    %v1778 = vmul.f32 %v1232, %v1232
    %v1779 = vmul.f32 %v1233, %v1233
    %v1780 = vmul.f32 %v1234, %v1234
    %v1781 = vmul.f32 %v1235, %v1235
    %v1782 = vmul.f32 %v1236, %v1236
    %v1783 = vmul.f32 %v1237, %v1237
    %v1784 = vmul.f32 %v1238, %v1238
    %v1785 = vmul.f32 %v1239, %v1239
    %v1786 = vmul.f32 %v1240, %v1240
    %v1787 = vmul.f32 %v1241, %v1241
    %v1788 = vmul.f32 %v1242, %v1242
    %v1789 = vmul.f32 %v1243, %v1243
    %v1790 = vmul.f32 %v1244, %v1244
    %v1791 = vmul.f32 %v1245, %v1245
    %v1792 = vmul.f32 %v1246, %v1246
    %v1793 = vmul.f32 %v1247, %v1247
    %v1794 = vmul.f32 %v1248, %v1248
    %v1797 = vlaneseq
    %v1798 = vshrl.u32 %v1797, 7
    %v1799 = vsub.s32 0, %v1798
    %v1800 = vrot.slane %v60, %v1799
    %v1801 = vlaneseq
    %v1802 = vshrl.u32 %v1801, 7
    %v1803 = vsub.s32 1, %v1802
    %v1804 = vrot.slane %v60, %v1803
    %v1805 = vlaneseq
    %v1806 = vshrl.u32 %v1805, 7
    %v1807 = vsub.s32 2, %v1806
    %v1808 = vrot.slane %v60, %v1807
    %v1809 = vlaneseq
    %v1810 = vshrl.u32 %v1809, 7
    %v1811 = vsub.s32 3, %v1810
    %v1812 = vrot.slane %v60, %v1811
    %v1813 = vlaneseq
    %v1814 = vshrl.u32 %v1813, 7
    %v1815 = vsub.s32 4, %v1814
    %v1816 = vrot.slane %v60, %v1815
    %v1817 = vlaneseq
    %v1818 = vshrl.u32 %v1817, 7
    %v1819 = vsub.s32 5, %v1818
    %v1820 = vrot.slane %v60, %v1819
    %v1821 = vlaneseq
    %v1822 = vshrl.u32 %v1821, 7
    %v1823 = vsub.s32 6, %v1822
    %v1824 = vrot.slane %v60, %v1823
    %v1825 = vlaneseq
    %v1826 = vshrl.u32 %v1825, 7
    %v1827 = vsub.s32 7, %v1826
    %v1828 = vrot.slane %v60, %v1827
    %v1829 = vlaneseq
    %v1830 = vshrl.u32 %v1829, 7
    %v1831 = vsub.s32 0, %v1830
    %v1832 = vrot.slane %v62, %v1831
    %v1842 = vmul.f32 %v1723, %v1800
    %v1843 = vmul.f32 %v1724, %v1804
    %v1844 = vmul.f32 %v1725, %v1808
    %v1845 = vmul.f32 %v1726, %v1812
    %v1846 = vmul.f32 %v1727, %v1816
    %v1847 = vmul.f32 %v1728, %v1820
    %v1848 = vmul.f32 %v1729, %v1824
    %v1849 = vmul.f32 %v1730, %v1828
    %v1850 = vmul.f32 %v1731, %v1832
    %v1851 = vmul.f32 %v1732, %v1800
    %v1852 = vmul.f32 %v1733, %v1804
    %v1853 = vmul.f32 %v1734, %v1808
    %v1854 = vmul.f32 %v1735, %v1812
    %v1855 = vmul.f32 %v1736, %v1816
    %v1856 = vmul.f32 %v1737, %v1820
    %v1857 = vmul.f32 %v1738, %v1824
    %v1858 = vmul.f32 %v1739, %v1828
    %v1859 = vmul.f32 %v1740, %v1832
    %v1860 = vmul.f32 %v1741, %v1800
    %v1861 = vmul.f32 %v1742, %v1804
    %v1862 = vmul.f32 %v1743, %v1808
    %v1863 = vmul.f32 %v1744, %v1812
    %v1864 = vmul.f32 %v1745, %v1816
    %v1865 = vmul.f32 %v1746, %v1820
    %v1866 = vmul.f32 %v1747, %v1824
    %v1867 = vmul.f32 %v1748, %v1828
    %v1868 = vmul.f32 %v1749, %v1832
    %v1869 = vmul.f32 %v1750, %v1800
    %v1870 = vmul.f32 %v1751, %v1804
    %v1871 = vmul.f32 %v1752, %v1808
    %v1872 = vmul.f32 %v1753, %v1812
    %v1873 = vmul.f32 %v1754, %v1816
    %v1874 = vmul.f32 %v1755, %v1820
    %v1875 = vmul.f32 %v1756, %v1824
    %v1876 = vmul.f32 %v1757, %v1828
    %v1877 = vmul.f32 %v1758, %v1832
    %v1878 = vmul.f32 %v1759, %v1800
    %v1879 = vmul.f32 %v1760, %v1804
    %v1880 = vmul.f32 %v1761, %v1808
    %v1881 = vmul.f32 %v1762, %v1812
    %v1882 = vmul.f32 %v1763, %v1816
    %v1883 = vmul.f32 %v1764, %v1820
    %v1884 = vmul.f32 %v1765, %v1824
    %v1885 = vmul.f32 %v1766, %v1828
    %v1886 = vmul.f32 %v1767, %v1832
    %v1887 = vmul.f32 %v1768, %v1800
    %v1888 = vmul.f32 %v1769, %v1804
    %v1889 = vmul.f32 %v1770, %v1808
    %v1890 = vmul.f32 %v1771, %v1812
    %v1891 = vmul.f32 %v1772, %v1816
    %v1892 = vmul.f32 %v1773, %v1820
    %v1893 = vmul.f32 %v1774, %v1824
    %v1894 = vmul.f32 %v1775, %v1828
    %v1895 = vmul.f32 %v1776, %v1832
    %v1896 = vmul.f32 %v1777, %v1800
    %v1897 = vmul.f32 %v1778, %v1804
    %v1898 = vmul.f32 %v1779, %v1808
    %v1899 = vmul.f32 %v1780, %v1812
    %v1900 = vmul.f32 %v1781, %v1816
    %v1901 = vmul.f32 %v1782, %v1820
    %v1902 = vmul.f32 %v1783, %v1824
    %v1903 = vmul.f32 %v1784, %v1828
    %v1904 = vmul.f32 %v1785, %v1832
    %v1905 = vmul.f32 %v1786, %v1800
    %v1906 = vmul.f32 %v1787, %v1804
    %v1907 = vmul.f32 %v1788, %v1808
    %v1908 = vmul.f32 %v1789, %v1812
    %v1909 = vmul.f32 %v1790, %v1816
    %v1910 = vmul.f32 %v1791, %v1820
    %v1911 = vmul.f32 %v1792, %v1824
    %v1912 = vmul.f32 %v1793, %v1828
    %v1913 = vmul.f32 %v1794, %v1832
    %v1914 = vadd.f32 %v1842, %v1843
    %v1915 = vadd.f32 %v1914, %v1844
    %v1916 = vadd.f32 %v1915, %v1845
    %v1917 = vadd.f32 %v1916, %v1846
    %v1918 = vadd.f32 %v1917, %v1847
    %v1919 = vadd.f32 %v1918, %v1848
    %v1920 = vadd.f32 %v1919, %v1849
    %v1921 = vadd.f32 %v1920, %v1850
    %v1922 = vadd.f32 %v1921, %v1851
    %v1923 = vadd.f32 %v1922, %v1852
    %v1924 = vadd.f32 %v1923, %v1853
    %v1925 = vadd.f32 %v1924, %v1854
    %v1926 = vadd.f32 %v1925, %v1855
    %v1927 = vadd.f32 %v1926, %v1856
    %v1928 = vadd.f32 %v1927, %v1857
    %v1929 = vadd.f32 %v1928, %v1858
    %v1930 = vadd.f32 %v1929, %v1859
    %v1931 = vadd.f32 %v1930, %v1860
    %v1932 = vadd.f32 %v1931, %v1861
    %v1933 = vadd.f32 %v1932, %v1862
    %v1934 = vadd.f32 %v1933, %v1863
    %v1935 = vadd.f32 %v1934, %v1864
    %v1936 = vadd.f32 %v1935, %v1865
    %v1937 = vadd.f32 %v1936, %v1866
    %v1938 = vadd.f32 %v1937, %v1867
    %v1939 = vadd.f32 %v1938, %v1868
    %v1940 = vadd.f32 %v1939, %v1869
    %v1941 = vadd.f32 %v1940, %v1870
    %v1942 = vadd.f32 %v1941, %v1871
    %v1943 = vadd.f32 %v1942, %v1872
    %v1944 = vadd.f32 %v1943, %v1873
    %v1945 = vadd.f32 %v1944, %v1874
    %v1946 = vadd.f32 %v1945, %v1875
    %v1947 = vadd.f32 %v1946, %v1876
    %v1948 = vadd.f32 %v1947, %v1877
    %v1949 = vadd.f32 %v1948, %v1878
    %v1950 = vadd.f32 %v1949, %v1879
    %v1951 = vadd.f32 %v1950, %v1880
    %v1952 = vadd.f32 %v1951, %v1881
    %v1953 = vadd.f32 %v1952, %v1882
    %v1954 = vadd.f32 %v1953, %v1883
    %v1955 = vadd.f32 %v1954, %v1884
    %v1956 = vadd.f32 %v1955, %v1885
    %v1957 = vadd.f32 %v1956, %v1886
    %v1958 = vadd.f32 %v1957, %v1887
    %v1959 = vadd.f32 %v1958, %v1888
    %v1960 = vadd.f32 %v1959, %v1889
    %v1961 = vadd.f32 %v1960, %v1890
    %v1962 = vadd.f32 %v1961, %v1891
    %v1963 = vadd.f32 %v1962, %v1892
    %v1964 = vadd.f32 %v1963, %v1893
    %v1965 = vadd.f32 %v1964, %v1894
    %v1966 = vadd.f32 %v1965, %v1895
    %v1967 = vadd.f32 %v1966, %v1896
    %v1968 = vadd.f32 %v1967, %v1897
    %v1969 = vadd.f32 %v1968, %v1898
    %v1970 = vadd.f32 %v1969, %v1899
    %v1971 = vadd.f32 %v1970, %v1900
    %v1972 = vadd.f32 %v1971, %v1901
    %v1973 = vadd.f32 %v1972, %v1902
    %v1974 = vadd.f32 %v1973, %v1903
    %v1975 = vadd.f32 %v1974, %v1904
    %v1976 = vadd.f32 %v1975, %v1905
    %v1977 = vadd.f32 %v1976, %v1906
    %v1978 = vadd.f32 %v1977, %v1907
    %v1979 = vadd.f32 %v1978, %v1908
    %v1980 = vadd.f32 %v1979, %v1909
    %v1981 = vadd.f32 %v1980, %v1910
    %v1982 = vadd.f32 %v1981, %v1911
    %v1983 = vadd.f32 %v1982, %v1912
    %v1984 = vadd.f32 %v1983, %v1913
    %1985 = vadd.xlane.f32.xlu0 %v1984
    %v1986 = vpop.xlane.xlu0 %1985
    %v1987 = vrot.slane %v1986, 4
    %v1988 = vadd.f32 %v1986, %v1987
    %v1989 = vrot.slane %v1988, 2
    %v1990 = vadd.f32 %v1988, %v1989
    %v1991 = vrot.slane %v1990, 1
    %v1992 = vadd.f32 %v1990, %v1991
    %s1993 = vtos %v1992
    %v1994 = vstv %s1993
    %v1995 = vadd.f32 %v1994, 0.0
    %s1996 = sld [smem:[#allocation2]]
    %s1997 = sld [smem:[#allocation2 + $0x1]]
    %s1998 = sld [smem:[#allocation2 + $0x2]]
    %v1999 = vrsqrt.pop %v1521
    %v2000 = vrcp.pop %v1521
    %v2001 = vmul.f32 %v1999, %v2000
    %v2002 = vrsqrt.pop %v1995
    %v2003 = vrcp.pop %v1995
    %v2004 = vmul.f32 %v2002, %v2003
    %v2005 = vrsqrt.pop %v1722
    %v2006 = vrcp.pop %v1722
    %v2007 = vmul.f32 %v2005, %v2006
    %s2008 = smul.f32 %s1997, 0.20048438
    %v2009 = vstv %s2008
    %v2010 = vmul.f32 %v2009, %v2001
    %v2011 = vmul.f32 %v2010, %v52
    %v2012 = vmul.f32 %v2010, %v54
    %s2013 = smul.f32 %s1998, 0.20048438
    %v2014 = vstv %s2013
    %v2015 = vmul.f32 %v2014, %v2007
    %v2016 = vmul.f32 %v2015, %v56
    %v2017 = vmul.f32 %v2015, %v58
    %v2018 = vadd.f32 %v2011, %v2016
    %v2019 = vadd.f32 %v2012, %v2017
    %s2020 = smul.f32 %s1996, -0.20048438
    %v2021 = vstv %s2020
    %v2022 = vmul.f32 %v2021, %v2004
    %v2023 = vmul.f32 %v2022, %v60
    %v2024 = vmul.f32 %v2022, %v62
    %v2025 = vmul.f32 %v2014, %v2004
    %v2026 = vmul.f32 %v2025, %v52
    %v2027 = vmul.f32 %v2025, %v54
    %v2028 = vmul.f32 %v2021, %v2001
    %v2029 = vmul.f32 %v2028, %v56
    %v2030 = vmul.f32 %v2028, %v58
    %s2031 = smul.f32 %s1997, -0.20048438
    %v2032 = vstv %s2031
    %v2033 = vmul.f32 %v2032, %v2007
    %v2034 = vmul.f32 %v2033, %v60
    %v2035 = vmul.f32 %v2033, %v62
    %v2036 = vadd.f32 %v2029, %v2034
    %v2037 = vadd.f32 %v2030, %v2035
    %2038 = vrot.lane.b32.xlu0 %v78, 3
    %v2039 = vpop.permute.xlu0 %2038
    %2040 = vrot.lane.b32.xlu0 %v87, 3
    %v2041 = vpop.permute.xlu0 %2040
    %2042 = vrot.lane.b32.xlu0 %v96, 3
    %v2043 = vpop.permute.xlu0 %2042
    %2044 = vrot.lane.b32.xlu0 %v105, 3
    %v2045 = vpop.permute.xlu0 %2044
    %2046 = vrot.lane.b32.xlu0 %v114, 3
    %v2047 = vpop.permute.xlu0 %2046
    %2048 = vrot.lane.b32.xlu0 %v123, 3
    %v2049 = vpop.permute.xlu0 %2048
    %2050 = vrot.lane.b32.xlu0 %v132, 3
    %v2051 = vpop.permute.xlu0 %2050
    %2052 = vrot.lane.b32.xlu0 %v141, 3
    %v2053 = vpop.permute.xlu0 %2052
    %2062 = vrot.lane.b32.xlu0 %v70, 3
    %v2063 = vpop.permute.xlu0 %2062
    %2064 = vrot.lane.b32.xlu0 %v71, 3
    %v2065 = vpop.permute.xlu0 %2064
    %2066 = vrot.lane.b32.xlu0 %v72, 3
    %v2067 = vpop.permute.xlu0 %2066
    %2068 = vrot.lane.b32.xlu0 %v73, 3
    %v2069 = vpop.permute.xlu0 %2068
    %2070 = vrot.lane.b32.xlu0 %v74, 3
    %v2071 = vpop.permute.xlu0 %2070
    %2072 = vrot.lane.b32.xlu0 %v75, 3
    %v2073 = vpop.permute.xlu0 %2072
    %2074 = vrot.lane.b32.xlu0 %v76, 3
    %v2075 = vpop.permute.xlu0 %2074
    %2076 = vrot.lane.b32.xlu0 %v77, 3
    %v2077 = vpop.permute.xlu0 %2076
    %2078 = vrot.lane.b32.xlu0 %v79, 3
    %v2079 = vpop.permute.xlu0 %2078
    %2080 = vrot.lane.b32.xlu0 %v80, 3
    %v2081 = vpop.permute.xlu0 %2080
    %2082 = vrot.lane.b32.xlu0 %v81, 3
    %v2083 = vpop.permute.xlu0 %2082
    %2084 = vrot.lane.b32.xlu0 %v82, 3
    %v2085 = vpop.permute.xlu0 %2084
    %2086 = vrot.lane.b32.xlu0 %v83, 3
    %v2087 = vpop.permute.xlu0 %2086
    %2088 = vrot.lane.b32.xlu0 %v84, 3
    %v2089 = vpop.permute.xlu0 %2088
    %2090 = vrot.lane.b32.xlu0 %v85, 3
    %v2091 = vpop.permute.xlu0 %2090
    %2092 = vrot.lane.b32.xlu0 %v86, 3
    %v2093 = vpop.permute.xlu0 %2092
    %2094 = vrot.lane.b32.xlu0 %v88, 3
    %v2095 = vpop.permute.xlu0 %2094
    %2096 = vrot.lane.b32.xlu0 %v89, 3
    %v2097 = vpop.permute.xlu0 %2096
    %2098 = vrot.lane.b32.xlu0 %v90, 3
    %v2099 = vpop.permute.xlu0 %2098
    %2100 = vrot.lane.b32.xlu0 %v91, 3
    %v2101 = vpop.permute.xlu0 %2100
    %2102 = vrot.lane.b32.xlu0 %v92, 3
    %v2103 = vpop.permute.xlu0 %2102
    %2104 = vrot.lane.b32.xlu0 %v93, 3
    %v2105 = vpop.permute.xlu0 %2104
    %2106 = vrot.lane.b32.xlu0 %v94, 3
    %v2107 = vpop.permute.xlu0 %2106
    %2108 = vrot.lane.b32.xlu0 %v95, 3
    %v2109 = vpop.permute.xlu0 %2108
    %2110 = vrot.lane.b32.xlu0 %v97, 3
    %v2111 = vpop.permute.xlu0 %2110
    %2112 = vrot.lane.b32.xlu0 %v98, 3
    %v2113 = vpop.permute.xlu0 %2112
    %2114 = vrot.lane.b32.xlu0 %v99, 3
    %v2115 = vpop.permute.xlu0 %2114
    %2116 = vrot.lane.b32.xlu0 %v100, 3
    %v2117 = vpop.permute.xlu0 %2116
    %2118 = vrot.lane.b32.xlu0 %v101, 3
    %v2119 = vpop.permute.xlu0 %2118
    %2120 = vrot.lane.b32.xlu0 %v102, 3
    %v2121 = vpop.permute.xlu0 %2120
    %2122 = vrot.lane.b32.xlu0 %v103, 3
    %v2123 = vpop.permute.xlu0 %2122
    %2124 = vrot.lane.b32.xlu0 %v104, 3
    %v2125 = vpop.permute.xlu0 %2124
    %2126 = vrot.lane.b32.xlu0 %v106, 3
    %v2127 = vpop.permute.xlu0 %2126
    %2128 = vrot.lane.b32.xlu0 %v107, 3
    %v2129 = vpop.permute.xlu0 %2128
    %2130 = vrot.lane.b32.xlu0 %v108, 3
    %v2131 = vpop.permute.xlu0 %2130
    %2132 = vrot.lane.b32.xlu0 %v109, 3
    %v2133 = vpop.permute.xlu0 %2132
    %2134 = vrot.lane.b32.xlu0 %v110, 3
    %v2135 = vpop.permute.xlu0 %2134
    %2136 = vrot.lane.b32.xlu0 %v111, 3
    %v2137 = vpop.permute.xlu0 %2136
    %2138 = vrot.lane.b32.xlu0 %v112, 3
    %v2139 = vpop.permute.xlu0 %2138
    %2140 = vrot.lane.b32.xlu0 %v113, 3
    %v2141 = vpop.permute.xlu0 %2140
    %2142 = vrot.lane.b32.xlu0 %v115, 3
    %v2143 = vpop.permute.xlu0 %2142
    %2144 = vrot.lane.b32.xlu0 %v116, 3
    %v2145 = vpop.permute.xlu0 %2144
    %2146 = vrot.lane.b32.xlu0 %v117, 3
    %v2147 = vpop.permute.xlu0 %2146
    %2148 = vrot.lane.b32.xlu0 %v118, 3
    %v2149 = vpop.permute.xlu0 %2148
    %2150 = vrot.lane.b32.xlu0 %v119, 3
    %v2151 = vpop.permute.xlu0 %2150
    %2152 = vrot.lane.b32.xlu0 %v120, 3
    %v2153 = vpop.permute.xlu0 %2152
    %2154 = vrot.lane.b32.xlu0 %v121, 3
    %v2155 = vpop.permute.xlu0 %2154
    %2156 = vrot.lane.b32.xlu0 %v122, 3
    %v2157 = vpop.permute.xlu0 %2156
    %2158 = vrot.lane.b32.xlu0 %v124, 3
    %v2159 = vpop.permute.xlu0 %2158
    %2160 = vrot.lane.b32.xlu0 %v125, 3
    %v2161 = vpop.permute.xlu0 %2160
    %2162 = vrot.lane.b32.xlu0 %v126, 3
    %v2163 = vpop.permute.xlu0 %2162
    %2164 = vrot.lane.b32.xlu0 %v127, 3
    %v2165 = vpop.permute.xlu0 %2164
    %2166 = vrot.lane.b32.xlu0 %v128, 3
    %v2167 = vpop.permute.xlu0 %2166
    %2168 = vrot.lane.b32.xlu0 %v129, 3
    %v2169 = vpop.permute.xlu0 %2168
    %2170 = vrot.lane.b32.xlu0 %v130, 3
    %v2171 = vpop.permute.xlu0 %2170
    %2172 = vrot.lane.b32.xlu0 %v131, 3
    %v2173 = vpop.permute.xlu0 %2172
    %2174 = vrot.lane.b32.xlu0 %v133, 3
    %v2175 = vpop.permute.xlu0 %2174
    %2176 = vrot.lane.b32.xlu0 %v134, 3
    %v2177 = vpop.permute.xlu0 %2176
    %2178 = vrot.lane.b32.xlu0 %v135, 3
    %v2179 = vpop.permute.xlu0 %2178
    %2180 = vrot.lane.b32.xlu0 %v136, 3
    %v2181 = vpop.permute.xlu0 %2180
    %2182 = vrot.lane.b32.xlu0 %v137, 3
    %v2183 = vpop.permute.xlu0 %2182
    %2184 = vrot.lane.b32.xlu0 %v138, 3
    %v2185 = vpop.permute.xlu0 %2184
    %2186 = vrot.lane.b32.xlu0 %v139, 3
    %v2187 = vpop.permute.xlu0 %2186
    %2188 = vrot.lane.b32.xlu0 %v140, 3
    %v2189 = vpop.permute.xlu0 %2188
    %vm2190 = vcmask 23552
    %v2191 = vsel %vm2190, %v2063, %v2065
    %v2192 = vsel %vm2190, %v2065, %v2067
    %v2193 = vsel %vm2190, %v2067, %v2069
    %v2194 = vsel %vm2190, %v2069, %v2071
    %v2195 = vsel %vm2190, %v2071, %v2073
    %v2196 = vsel %vm2190, %v2073, %v2075
    %v2197 = vsel %vm2190, %v2075, %v2077
    %v2198 = vsel %vm2190, %v2077, %v2039
    %v2199 = vsel %vm2190, %v2079, %v2081
    %v2200 = vsel %vm2190, %v2081, %v2083
    %v2201 = vsel %vm2190, %v2083, %v2085
    %v2202 = vsel %vm2190, %v2085, %v2087
    %v2203 = vsel %vm2190, %v2087, %v2089
    %v2204 = vsel %vm2190, %v2089, %v2091
    %v2205 = vsel %vm2190, %v2091, %v2093
    %v2206 = vsel %vm2190, %v2093, %v2041
    %v2207 = vsel %vm2190, %v2095, %v2097
    %v2208 = vsel %vm2190, %v2097, %v2099
    %v2209 = vsel %vm2190, %v2099, %v2101
    %v2210 = vsel %vm2190, %v2101, %v2103
    %v2211 = vsel %vm2190, %v2103, %v2105
    %v2212 = vsel %vm2190, %v2105, %v2107
    %v2213 = vsel %vm2190, %v2107, %v2109
    %v2214 = vsel %vm2190, %v2109, %v2043
    %v2215 = vsel %vm2190, %v2111, %v2113
    %v2216 = vsel %vm2190, %v2113, %v2115
    %v2217 = vsel %vm2190, %v2115, %v2117
    %v2218 = vsel %vm2190, %v2117, %v2119
    %v2219 = vsel %vm2190, %v2119, %v2121
    %v2220 = vsel %vm2190, %v2121, %v2123
    %v2221 = vsel %vm2190, %v2123, %v2125
    %v2222 = vsel %vm2190, %v2125, %v2045
    %v2223 = vsel %vm2190, %v2127, %v2129
    %v2224 = vsel %vm2190, %v2129, %v2131
    %v2225 = vsel %vm2190, %v2131, %v2133
    %v2226 = vsel %vm2190, %v2133, %v2135
    %v2227 = vsel %vm2190, %v2135, %v2137
    %v2228 = vsel %vm2190, %v2137, %v2139
    %v2229 = vsel %vm2190, %v2139, %v2141
    %v2230 = vsel %vm2190, %v2141, %v2047
    %v2231 = vsel %vm2190, %v2143, %v2145
    %v2232 = vsel %vm2190, %v2145, %v2147
    %v2233 = vsel %vm2190, %v2147, %v2149
    %v2234 = vsel %vm2190, %v2149, %v2151
    %v2235 = vsel %vm2190, %v2151, %v2153
    %v2236 = vsel %vm2190, %v2153, %v2155
    %v2237 = vsel %vm2190, %v2155, %v2157
    %v2238 = vsel %vm2190, %v2157, %v2049
    %v2239 = vsel %vm2190, %v2159, %v2161
    %v2240 = vsel %vm2190, %v2161, %v2163
    %v2241 = vsel %vm2190, %v2163, %v2165
    %v2242 = vsel %vm2190, %v2165, %v2167
    %v2243 = vsel %vm2190, %v2167, %v2169
    %v2244 = vsel %vm2190, %v2169, %v2171
    %v2245 = vsel %vm2190, %v2171, %v2173
    %v2246 = vsel %vm2190, %v2173, %v2051
    %v2247 = vsel %vm2190, %v2175, %v2177
    %v2248 = vsel %vm2190, %v2177, %v2179
    %v2249 = vsel %vm2190, %v2179, %v2181
    %v2250 = vsel %vm2190, %v2181, %v2183
    %v2251 = vsel %vm2190, %v2183, %v2185
    %v2252 = vsel %vm2190, %v2185, %v2187
    %v2253 = vsel %vm2190, %v2187, %v2189
    %v2254 = vsel %vm2190, %v2189, %v2053
    %v2327 = vsel %vm2190, %v2039, %v2063
    %v2328 = vsel %vm2190, %v2041, %v2079
    %v2329 = vsel %vm2190, %v2043, %v2095
    %v2330 = vsel %vm2190, %v2045, %v2111
    %v2331 = vsel %vm2190, %v2047, %v2127
    %v2332 = vsel %vm2190, %v2049, %v2143
    %v2333 = vsel %vm2190, %v2051, %v2159
    %v2334 = vsel %vm2190, %v2053, %v2175
    %2335 = vrot.lane.b32.xlu0 %v78, 12
    %v2336 = vpop.permute.xlu0 %2335
    %2337 = vrot.lane.b32.xlu0 %v87, 12
    %v2338 = vpop.permute.xlu0 %2337
    %2339 = vrot.lane.b32.xlu0 %v96, 12
    %v2340 = vpop.permute.xlu0 %2339
    %2341 = vrot.lane.b32.xlu0 %v105, 12
    %v2342 = vpop.permute.xlu0 %2341
    %2343 = vrot.lane.b32.xlu0 %v114, 12
    %v2344 = vpop.permute.xlu0 %2343
    %2345 = vrot.lane.b32.xlu0 %v123, 12
    %v2346 = vpop.permute.xlu0 %2345
    %2347 = vrot.lane.b32.xlu0 %v132, 12
    %v2348 = vpop.permute.xlu0 %2347
    %2349 = vrot.lane.b32.xlu0 %v141, 12
    %v2350 = vpop.permute.xlu0 %2349
    %2359 = vrot.lane.b32.xlu0 %v70, 12
    %v2360 = vpop.permute.xlu0 %2359
    %2361 = vrot.lane.b32.xlu0 %v71, 12
    %v2362 = vpop.permute.xlu0 %2361
    %2363 = vrot.lane.b32.xlu0 %v72, 12
    %v2364 = vpop.permute.xlu0 %2363
    %2365 = vrot.lane.b32.xlu0 %v73, 12
    %v2366 = vpop.permute.xlu0 %2365
    %2367 = vrot.lane.b32.xlu0 %v74, 12
    %v2368 = vpop.permute.xlu0 %2367
    %2369 = vrot.lane.b32.xlu0 %v75, 12
    %v2370 = vpop.permute.xlu0 %2369
    %2371 = vrot.lane.b32.xlu0 %v76, 12
    %v2372 = vpop.permute.xlu0 %2371
    %2373 = vrot.lane.b32.xlu0 %v77, 12
    %v2374 = vpop.permute.xlu0 %2373
    %2375 = vrot.lane.b32.xlu0 %v79, 12
    %v2376 = vpop.permute.xlu0 %2375
    %2377 = vrot.lane.b32.xlu0 %v80, 12
    %v2378 = vpop.permute.xlu0 %2377
    %2379 = vrot.lane.b32.xlu0 %v81, 12
    %v2380 = vpop.permute.xlu0 %2379
    %2381 = vrot.lane.b32.xlu0 %v82, 12
    %v2382 = vpop.permute.xlu0 %2381
    %2383 = vrot.lane.b32.xlu0 %v83, 12
    %v2384 = vpop.permute.xlu0 %2383
    %2385 = vrot.lane.b32.xlu0 %v84, 12
    %v2386 = vpop.permute.xlu0 %2385
    %2387 = vrot.lane.b32.xlu0 %v85, 12
    %v2388 = vpop.permute.xlu0 %2387
    %2389 = vrot.lane.b32.xlu0 %v86, 12
    %v2390 = vpop.permute.xlu0 %2389
    %2391 = vrot.lane.b32.xlu0 %v88, 12
    %v2392 = vpop.permute.xlu0 %2391
    %2393 = vrot.lane.b32.xlu0 %v89, 12
    %v2394 = vpop.permute.xlu0 %2393
    %2395 = vrot.lane.b32.xlu0 %v90, 12
    %v2396 = vpop.permute.xlu0 %2395
    %2397 = vrot.lane.b32.xlu0 %v91, 12
    %v2398 = vpop.permute.xlu0 %2397
    %2399 = vrot.lane.b32.xlu0 %v92, 12
    %v2400 = vpop.permute.xlu0 %2399
    %2401 = vrot.lane.b32.xlu0 %v93, 12
    %v2402 = vpop.permute.xlu0 %2401
    %2403 = vrot.lane.b32.xlu0 %v94, 12
    %v2404 = vpop.permute.xlu0 %2403
    %2405 = vrot.lane.b32.xlu0 %v95, 12
    %v2406 = vpop.permute.xlu0 %2405
    %2407 = vrot.lane.b32.xlu0 %v97, 12
    %v2408 = vpop.permute.xlu0 %2407
    %2409 = vrot.lane.b32.xlu0 %v98, 12
    %v2410 = vpop.permute.xlu0 %2409
    %2411 = vrot.lane.b32.xlu0 %v99, 12
    %v2412 = vpop.permute.xlu0 %2411
    %2413 = vrot.lane.b32.xlu0 %v100, 12
    %v2414 = vpop.permute.xlu0 %2413
    %2415 = vrot.lane.b32.xlu0 %v101, 12
    %v2416 = vpop.permute.xlu0 %2415
    %2417 = vrot.lane.b32.xlu0 %v102, 12
    %v2418 = vpop.permute.xlu0 %2417
    %2419 = vrot.lane.b32.xlu0 %v103, 12
    %v2420 = vpop.permute.xlu0 %2419
    %2421 = vrot.lane.b32.xlu0 %v104, 12
    %v2422 = vpop.permute.xlu0 %2421
    %2423 = vrot.lane.b32.xlu0 %v106, 12
    %v2424 = vpop.permute.xlu0 %2423
    %2425 = vrot.lane.b32.xlu0 %v107, 12
    %v2426 = vpop.permute.xlu0 %2425
    %2427 = vrot.lane.b32.xlu0 %v108, 12
    %v2428 = vpop.permute.xlu0 %2427
    %2429 = vrot.lane.b32.xlu0 %v109, 12
    %v2430 = vpop.permute.xlu0 %2429
    %2431 = vrot.lane.b32.xlu0 %v110, 12
    %v2432 = vpop.permute.xlu0 %2431
    %2433 = vrot.lane.b32.xlu0 %v111, 12
    %v2434 = vpop.permute.xlu0 %2433
    %2435 = vrot.lane.b32.xlu0 %v112, 12
    %v2436 = vpop.permute.xlu0 %2435
    %2437 = vrot.lane.b32.xlu0 %v113, 12
    %v2438 = vpop.permute.xlu0 %2437
    %2439 = vrot.lane.b32.xlu0 %v115, 12
    %v2440 = vpop.permute.xlu0 %2439
    %2441 = vrot.lane.b32.xlu0 %v116, 12
    %v2442 = vpop.permute.xlu0 %2441
    %2443 = vrot.lane.b32.xlu0 %v117, 12
    %v2444 = vpop.permute.xlu0 %2443
    %2445 = vrot.lane.b32.xlu0 %v118, 12
    %v2446 = vpop.permute.xlu0 %2445
    %2447 = vrot.lane.b32.xlu0 %v119, 12
    %v2448 = vpop.permute.xlu0 %2447
    %2449 = vrot.lane.b32.xlu0 %v120, 12
    %v2450 = vpop.permute.xlu0 %2449
    %2451 = vrot.lane.b32.xlu0 %v121, 12
    %v2452 = vpop.permute.xlu0 %2451
    %2453 = vrot.lane.b32.xlu0 %v122, 12
    %v2454 = vpop.permute.xlu0 %2453
    %2455 = vrot.lane.b32.xlu0 %v124, 12
    %v2456 = vpop.permute.xlu0 %2455
    %2457 = vrot.lane.b32.xlu0 %v125, 12
    %v2458 = vpop.permute.xlu0 %2457
    %2459 = vrot.lane.b32.xlu0 %v126, 12
    %v2460 = vpop.permute.xlu0 %2459
    %2461 = vrot.lane.b32.xlu0 %v127, 12
    %v2462 = vpop.permute.xlu0 %2461
    %2463 = vrot.lane.b32.xlu0 %v128, 12
    %v2464 = vpop.permute.xlu0 %2463
    %2465 = vrot.lane.b32.xlu0 %v129, 12
    %v2466 = vpop.permute.xlu0 %2465
    %2467 = vrot.lane.b32.xlu0 %v130, 12
    %v2468 = vpop.permute.xlu0 %2467
    %2469 = vrot.lane.b32.xlu0 %v131, 12
    %v2470 = vpop.permute.xlu0 %2469
    %2471 = vrot.lane.b32.xlu0 %v133, 12
    %v2472 = vpop.permute.xlu0 %2471
    %2473 = vrot.lane.b32.xlu0 %v134, 12
    %v2474 = vpop.permute.xlu0 %2473
    %2475 = vrot.lane.b32.xlu0 %v135, 12
    %v2476 = vpop.permute.xlu0 %2475
    %2477 = vrot.lane.b32.xlu0 %v136, 12
    %v2478 = vpop.permute.xlu0 %2477
    %2479 = vrot.lane.b32.xlu0 %v137, 12
    %v2480 = vpop.permute.xlu0 %2479
    %2481 = vrot.lane.b32.xlu0 %v138, 12
    %v2482 = vpop.permute.xlu0 %2481
    %2483 = vrot.lane.b32.xlu0 %v139, 12
    %v2484 = vpop.permute.xlu0 %2483
    %2485 = vrot.lane.b32.xlu0 %v140, 12
    %v2486 = vpop.permute.xlu0 %2485
    %vm2487 = vcmask 97280
    %v2488 = vsel %vm2487, %v2360, %v2362
    %v2489 = vsel %vm2487, %v2362, %v2364
    %v2490 = vsel %vm2487, %v2364, %v2366
    %v2491 = vsel %vm2487, %v2366, %v2368
    %v2492 = vsel %vm2487, %v2368, %v2370
    %v2493 = vsel %vm2487, %v2370, %v2372
    %v2494 = vsel %vm2487, %v2372, %v2374
    %v2495 = vsel %vm2487, %v2374, %v2336
    %v2496 = vsel %vm2487, %v2376, %v2378
    %v2497 = vsel %vm2487, %v2378, %v2380
    %v2498 = vsel %vm2487, %v2380, %v2382
    %v2499 = vsel %vm2487, %v2382, %v2384
    %v2500 = vsel %vm2487, %v2384, %v2386
    %v2501 = vsel %vm2487, %v2386, %v2388
    %v2502 = vsel %vm2487, %v2388, %v2390
    %v2503 = vsel %vm2487, %v2390, %v2338
    %v2504 = vsel %vm2487, %v2392, %v2394
    %v2505 = vsel %vm2487, %v2394, %v2396
    %v2506 = vsel %vm2487, %v2396, %v2398
    %v2507 = vsel %vm2487, %v2398, %v2400
    %v2508 = vsel %vm2487, %v2400, %v2402
    %v2509 = vsel %vm2487, %v2402, %v2404
    %v2510 = vsel %vm2487, %v2404, %v2406
    %v2511 = vsel %vm2487, %v2406, %v2340
    %v2512 = vsel %vm2487, %v2408, %v2410
    %v2513 = vsel %vm2487, %v2410, %v2412
    %v2514 = vsel %vm2487, %v2412, %v2414
    %v2515 = vsel %vm2487, %v2414, %v2416
    %v2516 = vsel %vm2487, %v2416, %v2418
    %v2517 = vsel %vm2487, %v2418, %v2420
    %v2518 = vsel %vm2487, %v2420, %v2422
    %v2519 = vsel %vm2487, %v2422, %v2342
    %v2520 = vsel %vm2487, %v2424, %v2426
    %v2521 = vsel %vm2487, %v2426, %v2428
    %v2522 = vsel %vm2487, %v2428, %v2430
    %v2523 = vsel %vm2487, %v2430, %v2432
    %v2524 = vsel %vm2487, %v2432, %v2434
    %v2525 = vsel %vm2487, %v2434, %v2436
    %v2526 = vsel %vm2487, %v2436, %v2438
    %v2527 = vsel %vm2487, %v2438, %v2344
    %v2528 = vsel %vm2487, %v2440, %v2442
    %v2529 = vsel %vm2487, %v2442, %v2444
    %v2530 = vsel %vm2487, %v2444, %v2446
    %v2531 = vsel %vm2487, %v2446, %v2448
    %v2532 = vsel %vm2487, %v2448, %v2450
    %v2533 = vsel %vm2487, %v2450, %v2452
    %v2534 = vsel %vm2487, %v2452, %v2454
    %v2535 = vsel %vm2487, %v2454, %v2346
    %v2536 = vsel %vm2487, %v2456, %v2458
    %v2537 = vsel %vm2487, %v2458, %v2460
    %v2538 = vsel %vm2487, %v2460, %v2462
    %v2539 = vsel %vm2487, %v2462, %v2464
    %v2540 = vsel %vm2487, %v2464, %v2466
    %v2541 = vsel %vm2487, %v2466, %v2468
    %v2542 = vsel %vm2487, %v2468, %v2470
    %v2543 = vsel %vm2487, %v2470, %v2348
    %v2544 = vsel %vm2487, %v2472, %v2474
    %v2545 = vsel %vm2487, %v2474, %v2476
    %v2546 = vsel %vm2487, %v2476, %v2478
    %v2547 = vsel %vm2487, %v2478, %v2480
    %v2548 = vsel %vm2487, %v2480, %v2482
    %v2549 = vsel %vm2487, %v2482, %v2484
    %v2550 = vsel %vm2487, %v2484, %v2486
    %v2551 = vsel %vm2487, %v2486, %v2350
    %v2624 = vsel %vm2487, %v2336, %v2360
    %v2625 = vsel %vm2487, %v2338, %v2376
    %v2626 = vsel %vm2487, %v2340, %v2392
    %v2627 = vsel %vm2487, %v2342, %v2408
    %v2628 = vsel %vm2487, %v2344, %v2424
    %v2629 = vsel %vm2487, %v2346, %v2440
    %v2630 = vsel %vm2487, %v2348, %v2456
    %v2631 = vsel %vm2487, %v2350, %v2472
    %2632 = vrot.lane.b32.xlu0 %v70, 119
    %v2633 = vpop.permute.xlu0 %2632
    %2634 = vrot.lane.b32.xlu0 %v71, 119
    %v2635 = vpop.permute.xlu0 %2634
    %2636 = vrot.lane.b32.xlu0 %v72, 119
    %v2637 = vpop.permute.xlu0 %2636
    %2638 = vrot.lane.b32.xlu0 %v73, 119
    %v2639 = vpop.permute.xlu0 %2638
    %2640 = vrot.lane.b32.xlu0 %v74, 119
    %v2641 = vpop.permute.xlu0 %2640
    %2642 = vrot.lane.b32.xlu0 %v75, 119
    %v2643 = vpop.permute.xlu0 %2642
    %2644 = vrot.lane.b32.xlu0 %v76, 119
    %v2645 = vpop.permute.xlu0 %2644
    %2646 = vrot.lane.b32.xlu0 %v77, 119
    %v2647 = vpop.permute.xlu0 %2646
    %2648 = vrot.lane.b32.xlu0 %v78, 119
    %v2649 = vpop.permute.xlu0 %2648
    %2650 = vrot.lane.b32.xlu0 %v79, 119
    %v2651 = vpop.permute.xlu0 %2650
    %2652 = vrot.lane.b32.xlu0 %v80, 119
    %v2653 = vpop.permute.xlu0 %2652
    %2654 = vrot.lane.b32.xlu0 %v81, 119
    %v2655 = vpop.permute.xlu0 %2654
    %2656 = vrot.lane.b32.xlu0 %v82, 119
    %v2657 = vpop.permute.xlu0 %2656
    %2658 = vrot.lane.b32.xlu0 %v83, 119
    %v2659 = vpop.permute.xlu0 %2658
    %2660 = vrot.lane.b32.xlu0 %v84, 119
    %v2661 = vpop.permute.xlu0 %2660
    %2662 = vrot.lane.b32.xlu0 %v85, 119
    %v2663 = vpop.permute.xlu0 %2662
    %2664 = vrot.lane.b32.xlu0 %v86, 119
    %v2665 = vpop.permute.xlu0 %2664
    %2666 = vrot.lane.b32.xlu0 %v87, 119
    %v2667 = vpop.permute.xlu0 %2666
    %2668 = vrot.lane.b32.xlu0 %v88, 119
    %v2669 = vpop.permute.xlu0 %2668
    %2670 = vrot.lane.b32.xlu0 %v89, 119
    %v2671 = vpop.permute.xlu0 %2670
    %2672 = vrot.lane.b32.xlu0 %v90, 119
    %v2673 = vpop.permute.xlu0 %2672
    %2674 = vrot.lane.b32.xlu0 %v91, 119
    %v2675 = vpop.permute.xlu0 %2674
    %2676 = vrot.lane.b32.xlu0 %v92, 119
    %v2677 = vpop.permute.xlu0 %2676
    %2678 = vrot.lane.b32.xlu0 %v93, 119
    %v2679 = vpop.permute.xlu0 %2678
    %2680 = vrot.lane.b32.xlu0 %v94, 119
    %v2681 = vpop.permute.xlu0 %2680
    %2682 = vrot.lane.b32.xlu0 %v95, 119
    %v2683 = vpop.permute.xlu0 %2682
    %2684 = vrot.lane.b32.xlu0 %v96, 119
    %v2685 = vpop.permute.xlu0 %2684
    %2686 = vrot.lane.b32.xlu0 %v97, 119
    %v2687 = vpop.permute.xlu0 %2686
    %2688 = vrot.lane.b32.xlu0 %v98, 119
    %v2689 = vpop.permute.xlu0 %2688
    %2690 = vrot.lane.b32.xlu0 %v99, 119
    %v2691 = vpop.permute.xlu0 %2690
    %2692 = vrot.lane.b32.xlu0 %v100, 119
    %v2693 = vpop.permute.xlu0 %2692
    %2694 = vrot.lane.b32.xlu0 %v101, 119
    %v2695 = vpop.permute.xlu0 %2694
    %2696 = vrot.lane.b32.xlu0 %v102, 119
    %v2697 = vpop.permute.xlu0 %2696
    %2698 = vrot.lane.b32.xlu0 %v103, 119
    %v2699 = vpop.permute.xlu0 %2698
    %2700 = vrot.lane.b32.xlu0 %v104, 119
    %v2701 = vpop.permute.xlu0 %2700
    %2702 = vrot.lane.b32.xlu0 %v105, 119
    %v2703 = vpop.permute.xlu0 %2702
    %2704 = vrot.lane.b32.xlu0 %v106, 119
    %v2705 = vpop.permute.xlu0 %2704
    %2706 = vrot.lane.b32.xlu0 %v107, 119
    %v2707 = vpop.permute.xlu0 %2706
    %2708 = vrot.lane.b32.xlu0 %v108, 119
    %v2709 = vpop.permute.xlu0 %2708
    %2710 = vrot.lane.b32.xlu0 %v109, 119
    %v2711 = vpop.permute.xlu0 %2710
    %2712 = vrot.lane.b32.xlu0 %v110, 119
    %v2713 = vpop.permute.xlu0 %2712
    %2714 = vrot.lane.b32.xlu0 %v111, 119
    %v2715 = vpop.permute.xlu0 %2714
    %2716 = vrot.lane.b32.xlu0 %v112, 119
    %v2717 = vpop.permute.xlu0 %2716
    %2718 = vrot.lane.b32.xlu0 %v113, 119
    %v2719 = vpop.permute.xlu0 %2718
    %2720 = vrot.lane.b32.xlu0 %v114, 119
    %v2721 = vpop.permute.xlu0 %2720
    %2722 = vrot.lane.b32.xlu0 %v115, 119
    %v2723 = vpop.permute.xlu0 %2722
    %2724 = vrot.lane.b32.xlu0 %v116, 119
    %v2725 = vpop.permute.xlu0 %2724
    %2726 = vrot.lane.b32.xlu0 %v117, 119
    %v2727 = vpop.permute.xlu0 %2726
    %2728 = vrot.lane.b32.xlu0 %v118, 119
    %v2729 = vpop.permute.xlu0 %2728
    %2730 = vrot.lane.b32.xlu0 %v119, 119
    %v2731 = vpop.permute.xlu0 %2730
    %2732 = vrot.lane.b32.xlu0 %v120, 119
    %v2733 = vpop.permute.xlu0 %2732
    %2734 = vrot.lane.b32.xlu0 %v121, 119
    %v2735 = vpop.permute.xlu0 %2734
    %2736 = vrot.lane.b32.xlu0 %v122, 119
    %v2737 = vpop.permute.xlu0 %2736
    %2738 = vrot.lane.b32.xlu0 %v123, 119
    %v2739 = vpop.permute.xlu0 %2738
    %2740 = vrot.lane.b32.xlu0 %v124, 119
    %v2741 = vpop.permute.xlu0 %2740
    %2742 = vrot.lane.b32.xlu0 %v125, 119
    %v2743 = vpop.permute.xlu0 %2742
    %2744 = vrot.lane.b32.xlu0 %v126, 119
    %v2745 = vpop.permute.xlu0 %2744
    %2746 = vrot.lane.b32.xlu0 %v127, 119
    %v2747 = vpop.permute.xlu0 %2746
    %2748 = vrot.lane.b32.xlu0 %v128, 119
    %v2749 = vpop.permute.xlu0 %2748
    %2750 = vrot.lane.b32.xlu0 %v129, 119
    %v2751 = vpop.permute.xlu0 %2750
    %2752 = vrot.lane.b32.xlu0 %v130, 119
    %v2753 = vpop.permute.xlu0 %2752
    %2754 = vrot.lane.b32.xlu0 %v131, 119
    %v2755 = vpop.permute.xlu0 %2754
    %2756 = vrot.lane.b32.xlu0 %v132, 119
    %v2757 = vpop.permute.xlu0 %2756
    %2758 = vrot.lane.b32.xlu0 %v133, 119
    %v2759 = vpop.permute.xlu0 %2758
    %2760 = vrot.lane.b32.xlu0 %v134, 119
    %v2761 = vpop.permute.xlu0 %2760
    %2762 = vrot.lane.b32.xlu0 %v135, 119
    %v2763 = vpop.permute.xlu0 %2762
    %2764 = vrot.lane.b32.xlu0 %v136, 119
    %v2765 = vpop.permute.xlu0 %2764
    %2766 = vrot.lane.b32.xlu0 %v137, 119
    %v2767 = vpop.permute.xlu0 %2766
    %2768 = vrot.lane.b32.xlu0 %v138, 119
    %v2769 = vpop.permute.xlu0 %2768
    %2770 = vrot.lane.b32.xlu0 %v139, 119
    %v2771 = vpop.permute.xlu0 %2770
    %2772 = vrot.lane.b32.xlu0 %v140, 119
    %v2773 = vpop.permute.xlu0 %2772
    %2774 = vrot.lane.b32.xlu0 %v141, 119
    %v2775 = vpop.permute.xlu0 %2774
    %vm2776 = vcmask 973824
    %v2777 = vsel %vm2776, %v2633, %v2635
    %v2778 = vsel %vm2776, %v2635, %v2637
    %v2779 = vsel %vm2776, %v2637, %v2639
    %v2780 = vsel %vm2776, %v2639, %v2641
    %v2781 = vsel %vm2776, %v2641, %v2643
    %v2782 = vsel %vm2776, %v2643, %v2645
    %v2783 = vsel %vm2776, %v2645, %v2647
    %v2784 = vsel %vm2776, %v2647, %v2649
    %v2785 = vsel %vm2776, %v2651, %v2653
    %v2786 = vsel %vm2776, %v2653, %v2655
    %v2787 = vsel %vm2776, %v2655, %v2657
    %v2788 = vsel %vm2776, %v2657, %v2659
    %v2789 = vsel %vm2776, %v2659, %v2661
    %v2790 = vsel %vm2776, %v2661, %v2663
    %v2791 = vsel %vm2776, %v2663, %v2665
    %v2792 = vsel %vm2776, %v2665, %v2667
    %v2793 = vsel %vm2776, %v2669, %v2671
    %v2794 = vsel %vm2776, %v2671, %v2673
    %v2795 = vsel %vm2776, %v2673, %v2675
    %v2796 = vsel %vm2776, %v2675, %v2677
    %v2797 = vsel %vm2776, %v2677, %v2679
    %v2798 = vsel %vm2776, %v2679, %v2681
    %v2799 = vsel %vm2776, %v2681, %v2683
    %v2800 = vsel %vm2776, %v2683, %v2685
    %v2801 = vsel %vm2776, %v2687, %v2689
    %v2802 = vsel %vm2776, %v2689, %v2691
    %v2803 = vsel %vm2776, %v2691, %v2693
    %v2804 = vsel %vm2776, %v2693, %v2695
    %v2805 = vsel %vm2776, %v2695, %v2697
    %v2806 = vsel %vm2776, %v2697, %v2699
    %v2807 = vsel %vm2776, %v2699, %v2701
    %v2808 = vsel %vm2776, %v2701, %v2703
    %v2809 = vsel %vm2776, %v2705, %v2707
    %v2810 = vsel %vm2776, %v2707, %v2709
    %v2811 = vsel %vm2776, %v2709, %v2711
    %v2812 = vsel %vm2776, %v2711, %v2713
    %v2813 = vsel %vm2776, %v2713, %v2715
    %v2814 = vsel %vm2776, %v2715, %v2717
    %v2815 = vsel %vm2776, %v2717, %v2719
    %v2816 = vsel %vm2776, %v2719, %v2721
    %v2817 = vsel %vm2776, %v2723, %v2725
    %v2818 = vsel %vm2776, %v2725, %v2727
    %v2819 = vsel %vm2776, %v2727, %v2729
    %v2820 = vsel %vm2776, %v2729, %v2731
    %v2821 = vsel %vm2776, %v2731, %v2733
    %v2822 = vsel %vm2776, %v2733, %v2735
    %v2823 = vsel %vm2776, %v2735, %v2737
    %v2824 = vsel %vm2776, %v2737, %v2739
    %v2825 = vsel %vm2776, %v2741, %v2743
    %v2826 = vsel %vm2776, %v2743, %v2745
    %v2827 = vsel %vm2776, %v2745, %v2747
    %v2828 = vsel %vm2776, %v2747, %v2749
    %v2829 = vsel %vm2776, %v2749, %v2751
    %v2830 = vsel %vm2776, %v2751, %v2753
    %v2831 = vsel %vm2776, %v2753, %v2755
    %v2832 = vsel %vm2776, %v2755, %v2757
    %v2833 = vsel %vm2776, %v2759, %v2761
    %v2834 = vsel %vm2776, %v2761, %v2763
    %v2835 = vsel %vm2776, %v2763, %v2765
    %v2836 = vsel %vm2776, %v2765, %v2767
    %v2837 = vsel %vm2776, %v2767, %v2769
    %v2838 = vsel %vm2776, %v2769, %v2771
    %v2839 = vsel %vm2776, %v2771, %v2773
    %v2840 = vsel %vm2776, %v2773, %v2775
    %v2921 = vsel %vm2776, %v2649, %v2633
    %v2922 = vsel %vm2776, %v2667, %v2651
    %v2923 = vsel %vm2776, %v2685, %v2669
    %v2924 = vsel %vm2776, %v2703, %v2687
    %v2925 = vsel %vm2776, %v2721, %v2705
    %v2926 = vsel %vm2776, %v2739, %v2723
    %v2927 = vsel %vm2776, %v2757, %v2741
    %v2928 = vsel %vm2776, %v2775, %v2759
    %v2929 = vsub.f32 %v2327, %v800
    %v2930 = vsub.f32 %v2191, %v664
    %v2931 = vsub.f32 %v2192, %v665
    %v2932 = vsub.f32 %v2193, %v666
    %v2933 = vsub.f32 %v2194, %v667
    %v2934 = vsub.f32 %v2195, %v668
    %v2935 = vsub.f32 %v2196, %v669
    %v2936 = vsub.f32 %v2197, %v670
    %v2937 = vsub.f32 %v2198, %v671
    %v2938 = vsub.f32 %v2328, %v801
    %v2939 = vsub.f32 %v2199, %v672
    %v2940 = vsub.f32 %v2200, %v673
    %v2941 = vsub.f32 %v2201, %v674
    %v2942 = vsub.f32 %v2202, %v675
    %v2943 = vsub.f32 %v2203, %v676
    %v2944 = vsub.f32 %v2204, %v677
    %v2945 = vsub.f32 %v2205, %v678
    %v2946 = vsub.f32 %v2206, %v679
    %v2947 = vsub.f32 %v2329, %v802
    %v2948 = vsub.f32 %v2207, %v680
    %v2949 = vsub.f32 %v2208, %v681
    %v2950 = vsub.f32 %v2209, %v682
    %v2951 = vsub.f32 %v2210, %v683
    %v2952 = vsub.f32 %v2211, %v684
    %v2953 = vsub.f32 %v2212, %v685
    %v2954 = vsub.f32 %v2213, %v686
    %v2955 = vsub.f32 %v2214, %v687
    %v2956 = vsub.f32 %v2330, %v803
    %v2957 = vsub.f32 %v2215, %v688
    %v2958 = vsub.f32 %v2216, %v689
    %v2959 = vsub.f32 %v2217, %v690
    %v2960 = vsub.f32 %v2218, %v691
    %v2961 = vsub.f32 %v2219, %v692
    %v2962 = vsub.f32 %v2220, %v693
    %v2963 = vsub.f32 %v2221, %v694
    %v2964 = vsub.f32 %v2222, %v695
    %v2965 = vsub.f32 %v2331, %v804
    %v2966 = vsub.f32 %v2223, %v696
    %v2967 = vsub.f32 %v2224, %v697
    %v2968 = vsub.f32 %v2225, %v698
    %v2969 = vsub.f32 %v2226, %v699
    %v2970 = vsub.f32 %v2227, %v700
    %v2971 = vsub.f32 %v2228, %v701
    %v2972 = vsub.f32 %v2229, %v702
    %v2973 = vsub.f32 %v2230, %v703
    %v2974 = vsub.f32 %v2332, %v805
    %v2975 = vsub.f32 %v2231, %v704
    %v2976 = vsub.f32 %v2232, %v705
    %v2977 = vsub.f32 %v2233, %v706
    %v2978 = vsub.f32 %v2234, %v707
    %v2979 = vsub.f32 %v2235, %v708
    %v2980 = vsub.f32 %v2236, %v709
    %v2981 = vsub.f32 %v2237, %v710
    %v2982 = vsub.f32 %v2238, %v711
    %v2983 = vsub.f32 %v2333, %v806
    %v2984 = vsub.f32 %v2239, %v712
    %v2985 = vsub.f32 %v2240, %v713
    %v2986 = vsub.f32 %v2241, %v714
    %v2987 = vsub.f32 %v2242, %v715
    %v2988 = vsub.f32 %v2243, %v716
    %v2989 = vsub.f32 %v2244, %v717
    %v2990 = vsub.f32 %v2245, %v718
    %v2991 = vsub.f32 %v2246, %v719
    %v2992 = vsub.f32 %v2334, %v807
    %v2993 = vsub.f32 %v2247, %v720
    %v2994 = vsub.f32 %v2248, %v721
    %v2995 = vsub.f32 %v2249, %v722
    %v2996 = vsub.f32 %v2250, %v723
    %v2997 = vsub.f32 %v2251, %v724
    %v2998 = vsub.f32 %v2252, %v725
    %v2999 = vsub.f32 %v2253, %v726
    %v3000 = vsub.f32 %v2254, %v727
    %v3001 = vsub.f32 %v800, %v2624
    %v3002 = vsub.f32 %v664, %v2488
    %v3003 = vsub.f32 %v665, %v2489
    %v3004 = vsub.f32 %v666, %v2490
    %v3005 = vsub.f32 %v667, %v2491
    %v3006 = vsub.f32 %v668, %v2492
    %v3007 = vsub.f32 %v669, %v2493
    %v3008 = vsub.f32 %v670, %v2494
    %v3009 = vsub.f32 %v671, %v2495
    %v3010 = vsub.f32 %v801, %v2625
    %v3011 = vsub.f32 %v672, %v2496
    %v3012 = vsub.f32 %v673, %v2497
    %v3013 = vsub.f32 %v674, %v2498
    %v3014 = vsub.f32 %v675, %v2499
    %v3015 = vsub.f32 %v676, %v2500
    %v3016 = vsub.f32 %v677, %v2501
    %v3017 = vsub.f32 %v678, %v2502
    %v3018 = vsub.f32 %v679, %v2503
    %v3019 = vsub.f32 %v802, %v2626
    %v3020 = vsub.f32 %v680, %v2504
    %v3021 = vsub.f32 %v681, %v2505
    %v3022 = vsub.f32 %v682, %v2506
    %v3023 = vsub.f32 %v683, %v2507
    %v3024 = vsub.f32 %v684, %v2508
    %v3025 = vsub.f32 %v685, %v2509
    %v3026 = vsub.f32 %v686, %v2510
    %v3027 = vsub.f32 %v687, %v2511
    %v3028 = vsub.f32 %v803, %v2627
    %v3029 = vsub.f32 %v688, %v2512
    %v3030 = vsub.f32 %v689, %v2513
    %v3031 = vsub.f32 %v690, %v2514
    %v3032 = vsub.f32 %v691, %v2515
    %v3033 = vsub.f32 %v692, %v2516
    %v3034 = vsub.f32 %v693, %v2517
    %v3035 = vsub.f32 %v694, %v2518
    %v3036 = vsub.f32 %v695, %v2519
    %v3037 = vsub.f32 %v804, %v2628
    %v3038 = vsub.f32 %v696, %v2520
    %v3039 = vsub.f32 %v697, %v2521
    %v3040 = vsub.f32 %v698, %v2522
    %v3041 = vsub.f32 %v699, %v2523
    %v3042 = vsub.f32 %v700, %v2524
    %v3043 = vsub.f32 %v701, %v2525
    %v3044 = vsub.f32 %v702, %v2526
    %v3045 = vsub.f32 %v703, %v2527
    %v3046 = vsub.f32 %v805, %v2629
    %v3047 = vsub.f32 %v704, %v2528
    %v3048 = vsub.f32 %v705, %v2529
    %v3049 = vsub.f32 %v706, %v2530
    %v3050 = vsub.f32 %v707, %v2531
    %v3051 = vsub.f32 %v708, %v2532
    %v3052 = vsub.f32 %v709, %v2533
    %v3053 = vsub.f32 %v710, %v2534
    %v3054 = vsub.f32 %v711, %v2535
    %v3055 = vsub.f32 %v806, %v2630
    %v3056 = vsub.f32 %v712, %v2536
    %v3057 = vsub.f32 %v713, %v2537
    %v3058 = vsub.f32 %v714, %v2538
    %v3059 = vsub.f32 %v715, %v2539
    %v3060 = vsub.f32 %v716, %v2540
    %v3061 = vsub.f32 %v717, %v2541
    %v3062 = vsub.f32 %v718, %v2542
    %v3063 = vsub.f32 %v719, %v2543
    %v3064 = vsub.f32 %v807, %v2631
    %v3065 = vsub.f32 %v720, %v2544
    %v3066 = vsub.f32 %v721, %v2545
    %v3067 = vsub.f32 %v722, %v2546
    %v3068 = vsub.f32 %v723, %v2547
    %v3069 = vsub.f32 %v724, %v2548
    %v3070 = vsub.f32 %v725, %v2549
    %v3071 = vsub.f32 %v726, %v2550
    %v3072 = vsub.f32 %v727, %v2551
    %v3075 = vlaneseq
    %v3076 = vshrl.u32 %v3075, 7
    %v3077 = vsub.s32 0, %v3076
    %v3078 = vrot.slane %v64, %v3077
    %v3079 = vlaneseq
    %v3080 = vshrl.u32 %v3079, 7
    %v3081 = vsub.s32 1, %v3080
    %v3082 = vrot.slane %v64, %v3081
    %v3083 = vlaneseq
    %v3084 = vshrl.u32 %v3083, 7
    %v3085 = vsub.s32 2, %v3084
    %v3086 = vrot.slane %v64, %v3085
    %v3087 = vlaneseq
    %v3088 = vshrl.u32 %v3087, 7
    %v3089 = vsub.s32 3, %v3088
    %v3090 = vrot.slane %v64, %v3089
    %v3091 = vlaneseq
    %v3092 = vshrl.u32 %v3091, 7
    %v3093 = vsub.s32 4, %v3092
    %v3094 = vrot.slane %v64, %v3093
    %v3095 = vlaneseq
    %v3096 = vshrl.u32 %v3095, 7
    %v3097 = vsub.s32 5, %v3096
    %v3098 = vrot.slane %v64, %v3097
    %v3099 = vlaneseq
    %v3100 = vshrl.u32 %v3099, 7
    %v3101 = vsub.s32 6, %v3100
    %v3102 = vrot.slane %v64, %v3101
    %v3103 = vlaneseq
    %v3104 = vshrl.u32 %v3103, 7
    %v3105 = vsub.s32 7, %v3104
    %v3106 = vrot.slane %v64, %v3105
    %v3107 = vlaneseq
    %v3108 = vshrl.u32 %v3107, 7
    %v3109 = vsub.s32 0, %v3108
    %v3110 = vrot.slane %v66, %v3109
    %v3120 = vmul.f32 %v3078, %v2777
    %v3121 = vmul.f32 %v3082, %v2778
    %v3122 = vmul.f32 %v3086, %v2779
    %v3123 = vmul.f32 %v3090, %v2780
    %v3124 = vmul.f32 %v3094, %v2781
    %v3125 = vmul.f32 %v3098, %v2782
    %v3126 = vmul.f32 %v3102, %v2783
    %v3127 = vmul.f32 %v3106, %v2784
    %v3128 = vmul.f32 %v3110, %v2921
    %v3129 = vmul.f32 %v3078, %v2785
    %v3130 = vmul.f32 %v3082, %v2786
    %v3131 = vmul.f32 %v3086, %v2787
    %v3132 = vmul.f32 %v3090, %v2788
    %v3133 = vmul.f32 %v3094, %v2789
    %v3134 = vmul.f32 %v3098, %v2790
    %v3135 = vmul.f32 %v3102, %v2791
    %v3136 = vmul.f32 %v3106, %v2792
    %v3137 = vmul.f32 %v3110, %v2922
    %v3138 = vmul.f32 %v3078, %v2793
    %v3139 = vmul.f32 %v3082, %v2794
    %v3140 = vmul.f32 %v3086, %v2795
    %v3141 = vmul.f32 %v3090, %v2796
    %v3142 = vmul.f32 %v3094, %v2797
    %v3143 = vmul.f32 %v3098, %v2798
    %v3144 = vmul.f32 %v3102, %v2799
    %v3145 = vmul.f32 %v3106, %v2800
    %v3146 = vmul.f32 %v3110, %v2923
    %v3147 = vmul.f32 %v3078, %v2801
    %v3148 = vmul.f32 %v3082, %v2802
    %v3149 = vmul.f32 %v3086, %v2803
    %v3150 = vmul.f32 %v3090, %v2804
    %v3151 = vmul.f32 %v3094, %v2805
    %v3152 = vmul.f32 %v3098, %v2806
    %v3153 = vmul.f32 %v3102, %v2807
    %v3154 = vmul.f32 %v3106, %v2808
    %v3155 = vmul.f32 %v3110, %v2924
    %v3156 = vmul.f32 %v3078, %v2809
    %v3157 = vmul.f32 %v3082, %v2810
    %v3158 = vmul.f32 %v3086, %v2811
    %v3159 = vmul.f32 %v3090, %v2812
    %v3160 = vmul.f32 %v3094, %v2813
    %v3161 = vmul.f32 %v3098, %v2814
    %v3162 = vmul.f32 %v3102, %v2815
    %v3163 = vmul.f32 %v3106, %v2816
    %v3164 = vmul.f32 %v3110, %v2925
    %v3165 = vmul.f32 %v3078, %v2817
    %v3166 = vmul.f32 %v3082, %v2818
    %v3167 = vmul.f32 %v3086, %v2819
    %v3168 = vmul.f32 %v3090, %v2820
    %v3169 = vmul.f32 %v3094, %v2821
    %v3170 = vmul.f32 %v3098, %v2822
    %v3171 = vmul.f32 %v3102, %v2823
    %v3172 = vmul.f32 %v3106, %v2824
    %v3173 = vmul.f32 %v3110, %v2926
    %v3174 = vmul.f32 %v3078, %v2825
    %v3175 = vmul.f32 %v3082, %v2826
    %v3176 = vmul.f32 %v3086, %v2827
    %v3177 = vmul.f32 %v3090, %v2828
    %v3178 = vmul.f32 %v3094, %v2829
    %v3179 = vmul.f32 %v3098, %v2830
    %v3180 = vmul.f32 %v3102, %v2831
    %v3181 = vmul.f32 %v3106, %v2832
    %v3182 = vmul.f32 %v3110, %v2927
    %v3183 = vmul.f32 %v3078, %v2833
    %v3184 = vmul.f32 %v3082, %v2834
    %v3185 = vmul.f32 %v3086, %v2835
    %v3186 = vmul.f32 %v3090, %v2836
    %v3187 = vmul.f32 %v3094, %v2837
    %v3188 = vmul.f32 %v3098, %v2838
    %v3189 = vmul.f32 %v3102, %v2839
    %v3190 = vmul.f32 %v3106, %v2840
    %v3191 = vmul.f32 %v3110, %v2928
    %v3194 = vlaneseq
    %v3195 = vshrl.u32 %v3194, 7
    %v3196 = vsub.s32 0, %v3195
    %v3197 = vrot.slane %v2018, %v3196
    %v3198 = vlaneseq
    %v3199 = vshrl.u32 %v3198, 7
    %v3200 = vsub.s32 1, %v3199
    %v3201 = vrot.slane %v2018, %v3200
    %v3202 = vlaneseq
    %v3203 = vshrl.u32 %v3202, 7
    %v3204 = vsub.s32 2, %v3203
    %v3205 = vrot.slane %v2018, %v3204
    %v3206 = vlaneseq
    %v3207 = vshrl.u32 %v3206, 7
    %v3208 = vsub.s32 3, %v3207
    %v3209 = vrot.slane %v2018, %v3208
    %v3210 = vlaneseq
    %v3211 = vshrl.u32 %v3210, 7
    %v3212 = vsub.s32 4, %v3211
    %v3213 = vrot.slane %v2018, %v3212
    %v3214 = vlaneseq
    %v3215 = vshrl.u32 %v3214, 7
    %v3216 = vsub.s32 5, %v3215
    %v3217 = vrot.slane %v2018, %v3216
    %v3218 = vlaneseq
    %v3219 = vshrl.u32 %v3218, 7
    %v3220 = vsub.s32 6, %v3219
    %v3221 = vrot.slane %v2018, %v3220
    %v3222 = vlaneseq
    %v3223 = vshrl.u32 %v3222, 7
    %v3224 = vsub.s32 7, %v3223
    %v3225 = vrot.slane %v2018, %v3224
    %v3226 = vlaneseq
    %v3227 = vshrl.u32 %v3226, 7
    %v3228 = vsub.s32 0, %v3227
    %v3229 = vrot.slane %v2019, %v3228
    %v3239 = vmul.f32 %v3197, %v1105
    %v3240 = vmul.f32 %v3201, %v1106
    %v3241 = vmul.f32 %v3205, %v1107
    %v3242 = vmul.f32 %v3209, %v1108
    %v3243 = vmul.f32 %v3213, %v1109
    %v3244 = vmul.f32 %v3217, %v1110
    %v3245 = vmul.f32 %v3221, %v1111
    %v3246 = vmul.f32 %v3225, %v1112
    %v3247 = vmul.f32 %v3229, %v1113
    %v3248 = vmul.f32 %v3197, %v1114
    %v3249 = vmul.f32 %v3201, %v1115
    %v3250 = vmul.f32 %v3205, %v1116
    %v3251 = vmul.f32 %v3209, %v1117
    %v3252 = vmul.f32 %v3213, %v1118
    %v3253 = vmul.f32 %v3217, %v1119
    %v3254 = vmul.f32 %v3221, %v1120
    %v3255 = vmul.f32 %v3225, %v1121
    %v3256 = vmul.f32 %v3229, %v1122
    %v3257 = vmul.f32 %v3197, %v1123
    %v3258 = vmul.f32 %v3201, %v1124
    %v3259 = vmul.f32 %v3205, %v1125
    %v3260 = vmul.f32 %v3209, %v1126
    %v3261 = vmul.f32 %v3213, %v1127
    %v3262 = vmul.f32 %v3217, %v1128
    %v3263 = vmul.f32 %v3221, %v1129
    %v3264 = vmul.f32 %v3225, %v1130
    %v3265 = vmul.f32 %v3229, %v1131
    %v3266 = vmul.f32 %v3197, %v1132
    %v3267 = vmul.f32 %v3201, %v1133
    %v3268 = vmul.f32 %v3205, %v1134
    %v3269 = vmul.f32 %v3209, %v1135
    %v3270 = vmul.f32 %v3213, %v1136
    %v3271 = vmul.f32 %v3217, %v1137
    %v3272 = vmul.f32 %v3221, %v1138
    %v3273 = vmul.f32 %v3225, %v1139
    %v3274 = vmul.f32 %v3229, %v1140
    %v3275 = vmul.f32 %v3197, %v1141
    %v3276 = vmul.f32 %v3201, %v1142
    %v3277 = vmul.f32 %v3205, %v1143
    %v3278 = vmul.f32 %v3209, %v1144
    %v3279 = vmul.f32 %v3213, %v1145
    %v3280 = vmul.f32 %v3217, %v1146
    %v3281 = vmul.f32 %v3221, %v1147
    %v3282 = vmul.f32 %v3225, %v1148
    %v3283 = vmul.f32 %v3229, %v1149
    %v3284 = vmul.f32 %v3197, %v1150
    %v3285 = vmul.f32 %v3201, %v1151
    %v3286 = vmul.f32 %v3205, %v1152
    %v3287 = vmul.f32 %v3209, %v1153
    %v3288 = vmul.f32 %v3213, %v1154
    %v3289 = vmul.f32 %v3217, %v1155
    %v3290 = vmul.f32 %v3221, %v1156
    %v3291 = vmul.f32 %v3225, %v1157
    %v3292 = vmul.f32 %v3229, %v1158
    %v3293 = vmul.f32 %v3197, %v1159
    %v3294 = vmul.f32 %v3201, %v1160
    %v3295 = vmul.f32 %v3205, %v1161
    %v3296 = vmul.f32 %v3209, %v1162
    %v3297 = vmul.f32 %v3213, %v1163
    %v3298 = vmul.f32 %v3217, %v1164
    %v3299 = vmul.f32 %v3221, %v1165
    %v3300 = vmul.f32 %v3225, %v1166
    %v3301 = vmul.f32 %v3229, %v1167
    %v3302 = vmul.f32 %v3197, %v1168
    %v3303 = vmul.f32 %v3201, %v1169
    %v3304 = vmul.f32 %v3205, %v1170
    %v3305 = vmul.f32 %v3209, %v1171
    %v3306 = vmul.f32 %v3213, %v1172
    %v3307 = vmul.f32 %v3217, %v1173
    %v3308 = vmul.f32 %v3221, %v1174
    %v3309 = vmul.f32 %v3225, %v1175
    %v3310 = vmul.f32 %v3229, %v1176
    %v3311 = vadd.f32 %v3120, %v3239
    %v3312 = vadd.f32 %v3121, %v3240
    %v3313 = vadd.f32 %v3122, %v3241
    %v3314 = vadd.f32 %v3123, %v3242
    %v3315 = vadd.f32 %v3124, %v3243
    %v3316 = vadd.f32 %v3125, %v3244
    %v3317 = vadd.f32 %v3126, %v3245
    %v3318 = vadd.f32 %v3127, %v3246
    %v3319 = vadd.f32 %v3128, %v3247
    %v3320 = vadd.f32 %v3129, %v3248
    %v3321 = vadd.f32 %v3130, %v3249
    %v3322 = vadd.f32 %v3131, %v3250
    %v3323 = vadd.f32 %v3132, %v3251
    %v3324 = vadd.f32 %v3133, %v3252
    %v3325 = vadd.f32 %v3134, %v3253
    %v3326 = vadd.f32 %v3135, %v3254
    %v3327 = vadd.f32 %v3136, %v3255
    %v3328 = vadd.f32 %v3137, %v3256
    %v3329 = vadd.f32 %v3138, %v3257
    %v3330 = vadd.f32 %v3139, %v3258
    %v3331 = vadd.f32 %v3140, %v3259
    %v3332 = vadd.f32 %v3141, %v3260
    %v3333 = vadd.f32 %v3142, %v3261
    %v3334 = vadd.f32 %v3143, %v3262
    %v3335 = vadd.f32 %v3144, %v3263
    %v3336 = vadd.f32 %v3145, %v3264
    %v3337 = vadd.f32 %v3146, %v3265
    %v3338 = vadd.f32 %v3147, %v3266
    %v3339 = vadd.f32 %v3148, %v3267
    %v3340 = vadd.f32 %v3149, %v3268
    %v3341 = vadd.f32 %v3150, %v3269
    %v3342 = vadd.f32 %v3151, %v3270
    %v3343 = vadd.f32 %v3152, %v3271
    %v3344 = vadd.f32 %v3153, %v3272
    %v3345 = vadd.f32 %v3154, %v3273
    %v3346 = vadd.f32 %v3155, %v3274
    %v3347 = vadd.f32 %v3156, %v3275
    %v3348 = vadd.f32 %v3157, %v3276
    %v3349 = vadd.f32 %v3158, %v3277
    %v3350 = vadd.f32 %v3159, %v3278
    %v3351 = vadd.f32 %v3160, %v3279
    %v3352 = vadd.f32 %v3161, %v3280
    %v3353 = vadd.f32 %v3162, %v3281
    %v3354 = vadd.f32 %v3163, %v3282
    %v3355 = vadd.f32 %v3164, %v3283
    %v3356 = vadd.f32 %v3165, %v3284
    %v3357 = vadd.f32 %v3166, %v3285
    %v3358 = vadd.f32 %v3167, %v3286
    %v3359 = vadd.f32 %v3168, %v3287
    %v3360 = vadd.f32 %v3169, %v3288
    %v3361 = vadd.f32 %v3170, %v3289
    %v3362 = vadd.f32 %v3171, %v3290
    %v3363 = vadd.f32 %v3172, %v3291
    %v3364 = vadd.f32 %v3173, %v3292
    %v3365 = vadd.f32 %v3174, %v3293
    %v3366 = vadd.f32 %v3175, %v3294
    %v3367 = vadd.f32 %v3176, %v3295
    %v3368 = vadd.f32 %v3177, %v3296
    %v3369 = vadd.f32 %v3178, %v3297
    %v3370 = vadd.f32 %v3179, %v3298
    %v3371 = vadd.f32 %v3180, %v3299
    %v3372 = vadd.f32 %v3181, %v3300
    %v3373 = vadd.f32 %v3182, %v3301
    %v3374 = vadd.f32 %v3183, %v3302
    %v3375 = vadd.f32 %v3184, %v3303
    %v3376 = vadd.f32 %v3185, %v3304
    %v3377 = vadd.f32 %v3186, %v3305
    %v3378 = vadd.f32 %v3187, %v3306
    %v3379 = vadd.f32 %v3188, %v3307
    %v3380 = vadd.f32 %v3189, %v3308
    %v3381 = vadd.f32 %v3190, %v3309
    %v3382 = vadd.f32 %v3191, %v3310
    %v3385 = vlaneseq
    %v3386 = vshrl.u32 %v3385, 7
    %v3387 = vsub.s32 0, %v3386
    %v3388 = vrot.slane %v2023, %v3387
    %v3389 = vlaneseq
    %v3390 = vshrl.u32 %v3389, 7
    %v3391 = vsub.s32 1, %v3390
    %v3392 = vrot.slane %v2023, %v3391
    %v3393 = vlaneseq
    %v3394 = vshrl.u32 %v3393, 7
    %v3395 = vsub.s32 2, %v3394
    %v3396 = vrot.slane %v2023, %v3395
    %v3397 = vlaneseq
    %v3398 = vshrl.u32 %v3397, 7
    %v3399 = vsub.s32 3, %v3398
    %v3400 = vrot.slane %v2023, %v3399
    %v3401 = vlaneseq
    %v3402 = vshrl.u32 %v3401, 7
    %v3403 = vsub.s32 4, %v3402
    %v3404 = vrot.slane %v2023, %v3403
    %v3405 = vlaneseq
    %v3406 = vshrl.u32 %v3405, 7
    %v3407 = vsub.s32 5, %v3406
    %v3408 = vrot.slane %v2023, %v3407
    %v3409 = vlaneseq
    %v3410 = vshrl.u32 %v3409, 7
    %v3411 = vsub.s32 6, %v3410
    %v3412 = vrot.slane %v2023, %v3411
    %v3413 = vlaneseq
    %v3414 = vshrl.u32 %v3413, 7
    %v3415 = vsub.s32 7, %v3414
    %v3416 = vrot.slane %v2023, %v3415
    %v3417 = vlaneseq
    %v3418 = vshrl.u32 %v3417, 7
    %v3419 = vsub.s32 0, %v3418
    %v3420 = vrot.slane %v2024, %v3419
    %v3430 = vmul.f32 %v3388, %v1177
    %v3431 = vmul.f32 %v3392, %v1178
    %v3432 = vmul.f32 %v3396, %v1179
    %v3433 = vmul.f32 %v3400, %v1180
    %v3434 = vmul.f32 %v3404, %v1181
    %v3435 = vmul.f32 %v3408, %v1182
    %v3436 = vmul.f32 %v3412, %v1183
    %v3437 = vmul.f32 %v3416, %v1184
    %v3438 = vmul.f32 %v3420, %v1185
    %v3439 = vmul.f32 %v3388, %v1186
    %v3440 = vmul.f32 %v3392, %v1187
    %v3441 = vmul.f32 %v3396, %v1188
    %v3442 = vmul.f32 %v3400, %v1189
    %v3443 = vmul.f32 %v3404, %v1190
    %v3444 = vmul.f32 %v3408, %v1191
    %v3445 = vmul.f32 %v3412, %v1192
    %v3446 = vmul.f32 %v3416, %v1193
    %v3447 = vmul.f32 %v3420, %v1194
    %v3448 = vmul.f32 %v3388, %v1195
    %v3449 = vmul.f32 %v3392, %v1196
    %v3450 = vmul.f32 %v3396, %v1197
    %v3451 = vmul.f32 %v3400, %v1198
    %v3452 = vmul.f32 %v3404, %v1199
    %v3453 = vmul.f32 %v3408, %v1200
    %v3454 = vmul.f32 %v3412, %v1201
    %v3455 = vmul.f32 %v3416, %v1202
    %v3456 = vmul.f32 %v3420, %v1203
    %v3457 = vmul.f32 %v3388, %v1204
    %v3458 = vmul.f32 %v3392, %v1205
    %v3459 = vmul.f32 %v3396, %v1206
    %v3460 = vmul.f32 %v3400, %v1207
    %v3461 = vmul.f32 %v3404, %v1208
    %v3462 = vmul.f32 %v3408, %v1209
    %v3463 = vmul.f32 %v3412, %v1210
    %v3464 = vmul.f32 %v3416, %v1211
    %v3465 = vmul.f32 %v3420, %v1212
    %v3466 = vmul.f32 %v3388, %v1213
    %v3467 = vmul.f32 %v3392, %v1214
    %v3468 = vmul.f32 %v3396, %v1215
    %v3469 = vmul.f32 %v3400, %v1216
    %v3470 = vmul.f32 %v3404, %v1217
    %v3471 = vmul.f32 %v3408, %v1218
    %v3472 = vmul.f32 %v3412, %v1219
    %v3473 = vmul.f32 %v3416, %v1220
    %v3474 = vmul.f32 %v3420, %v1221
    %v3475 = vmul.f32 %v3388, %v1222
    %v3476 = vmul.f32 %v3392, %v1223
    %v3477 = vmul.f32 %v3396, %v1224
    %v3478 = vmul.f32 %v3400, %v1225
    %v3479 = vmul.f32 %v3404, %v1226
    %v3480 = vmul.f32 %v3408, %v1227
    %v3481 = vmul.f32 %v3412, %v1228
    %v3482 = vmul.f32 %v3416, %v1229
    %v3483 = vmul.f32 %v3420, %v1230
    %v3484 = vmul.f32 %v3388, %v1231
    %v3485 = vmul.f32 %v3392, %v1232
    %v3486 = vmul.f32 %v3396, %v1233
    %v3487 = vmul.f32 %v3400, %v1234
    %v3488 = vmul.f32 %v3404, %v1235
    %v3489 = vmul.f32 %v3408, %v1236
    %v3490 = vmul.f32 %v3412, %v1237
    %v3491 = vmul.f32 %v3416, %v1238
    %v3492 = vmul.f32 %v3420, %v1239
    %v3493 = vmul.f32 %v3388, %v1240
    %v3494 = vmul.f32 %v3392, %v1241
    %v3495 = vmul.f32 %v3396, %v1242
    %v3496 = vmul.f32 %v3400, %v1243
    %v3497 = vmul.f32 %v3404, %v1244
    %v3498 = vmul.f32 %v3408, %v1245
    %v3499 = vmul.f32 %v3412, %v1246
    %v3500 = vmul.f32 %v3416, %v1247
    %v3501 = vmul.f32 %v3420, %v1248
    %v3502 = vadd.f32 %v3311, %v3430
    %v3503 = vadd.f32 %v3312, %v3431
    %v3504 = vadd.f32 %v3313, %v3432
    %v3505 = vadd.f32 %v3314, %v3433
    %v3506 = vadd.f32 %v3315, %v3434
    %v3507 = vadd.f32 %v3316, %v3435
    %v3508 = vadd.f32 %v3317, %v3436
    %v3509 = vadd.f32 %v3318, %v3437
    %v3510 = vadd.f32 %v3319, %v3438
    %v3511 = vadd.f32 %v3320, %v3439
    %v3512 = vadd.f32 %v3321, %v3440
    %v3513 = vadd.f32 %v3322, %v3441
    %v3514 = vadd.f32 %v3323, %v3442
    %v3515 = vadd.f32 %v3324, %v3443
    %v3516 = vadd.f32 %v3325, %v3444
    %v3517 = vadd.f32 %v3326, %v3445
    %v3518 = vadd.f32 %v3327, %v3446
    %v3519 = vadd.f32 %v3328, %v3447
    %v3520 = vadd.f32 %v3329, %v3448
    %v3521 = vadd.f32 %v3330, %v3449
    %v3522 = vadd.f32 %v3331, %v3450
    %v3523 = vadd.f32 %v3332, %v3451
    %v3524 = vadd.f32 %v3333, %v3452
    %v3525 = vadd.f32 %v3334, %v3453
    %v3526 = vadd.f32 %v3335, %v3454
    %v3527 = vadd.f32 %v3336, %v3455
    %v3528 = vadd.f32 %v3337, %v3456
    %v3529 = vadd.f32 %v3338, %v3457
    %v3530 = vadd.f32 %v3339, %v3458
    %v3531 = vadd.f32 %v3340, %v3459
    %v3532 = vadd.f32 %v3341, %v3460
    %v3533 = vadd.f32 %v3342, %v3461
    %v3534 = vadd.f32 %v3343, %v3462
    %v3535 = vadd.f32 %v3344, %v3463
    %v3536 = vadd.f32 %v3345, %v3464
    %v3537 = vadd.f32 %v3346, %v3465
    %v3538 = vadd.f32 %v3347, %v3466
    %v3539 = vadd.f32 %v3348, %v3467
    %v3540 = vadd.f32 %v3349, %v3468
    %v3541 = vadd.f32 %v3350, %v3469
    %v3542 = vadd.f32 %v3351, %v3470
    %v3543 = vadd.f32 %v3352, %v3471
    %v3544 = vadd.f32 %v3353, %v3472
    %v3545 = vadd.f32 %v3354, %v3473
    %v3546 = vadd.f32 %v3355, %v3474
    %v3547 = vadd.f32 %v3356, %v3475
    %v3548 = vadd.f32 %v3357, %v3476
    %v3549 = vadd.f32 %v3358, %v3477
    %v3550 = vadd.f32 %v3359, %v3478
    %v3551 = vadd.f32 %v3360, %v3479
    %v3552 = vadd.f32 %v3361, %v3480
    %v3553 = vadd.f32 %v3362, %v3481
    %v3554 = vadd.f32 %v3363, %v3482
    %v3555 = vadd.f32 %v3364, %v3483
    %v3556 = vadd.f32 %v3365, %v3484
    %v3557 = vadd.f32 %v3366, %v3485
    %v3558 = vadd.f32 %v3367, %v3486
    %v3559 = vadd.f32 %v3368, %v3487
    %v3560 = vadd.f32 %v3369, %v3488
    %v3561 = vadd.f32 %v3370, %v3489
    %v3562 = vadd.f32 %v3371, %v3490
    %v3563 = vadd.f32 %v3372, %v3491
    %v3564 = vadd.f32 %v3373, %v3492
    %v3565 = vadd.f32 %v3374, %v3493
    %v3566 = vadd.f32 %v3375, %v3494
    %v3567 = vadd.f32 %v3376, %v3495
    %v3568 = vadd.f32 %v3377, %v3496
    %v3569 = vadd.f32 %v3378, %v3497
    %v3570 = vadd.f32 %v3379, %v3498
    %v3571 = vadd.f32 %v3380, %v3499
    %v3572 = vadd.f32 %v3381, %v3500
    %v3573 = vadd.f32 %v3382, %v3501
    %v3576 = vlaneseq
    %v3577 = vshrl.u32 %v3576, 7
    %v3578 = vsub.s32 0, %v3577
    %v3579 = vrot.slane %v2026, %v3578
    %v3580 = vlaneseq
    %v3581 = vshrl.u32 %v3580, 7
    %v3582 = vsub.s32 1, %v3581
    %v3583 = vrot.slane %v2026, %v3582
    %v3584 = vlaneseq
    %v3585 = vshrl.u32 %v3584, 7
    %v3586 = vsub.s32 2, %v3585
    %v3587 = vrot.slane %v2026, %v3586
    %v3588 = vlaneseq
    %v3589 = vshrl.u32 %v3588, 7
    %v3590 = vsub.s32 3, %v3589
    %v3591 = vrot.slane %v2026, %v3590
    %v3592 = vlaneseq
    %v3593 = vshrl.u32 %v3592, 7
    %v3594 = vsub.s32 4, %v3593
    %v3595 = vrot.slane %v2026, %v3594
    %v3596 = vlaneseq
    %v3597 = vshrl.u32 %v3596, 7
    %v3598 = vsub.s32 5, %v3597
    %v3599 = vrot.slane %v2026, %v3598
    %v3600 = vlaneseq
    %v3601 = vshrl.u32 %v3600, 7
    %v3602 = vsub.s32 6, %v3601
    %v3603 = vrot.slane %v2026, %v3602
    %v3604 = vlaneseq
    %v3605 = vshrl.u32 %v3604, 7
    %v3606 = vsub.s32 7, %v3605
    %v3607 = vrot.slane %v2026, %v3606
    %v3608 = vlaneseq
    %v3609 = vshrl.u32 %v3608, 7
    %v3610 = vsub.s32 0, %v3609
    %v3611 = vrot.slane %v2027, %v3610
    %v3621 = vmul.f32 %v3579, %v2929
    %v3622 = vmul.f32 %v3583, %v2930
    %v3623 = vmul.f32 %v3587, %v2931
    %v3624 = vmul.f32 %v3591, %v2932
    %v3625 = vmul.f32 %v3595, %v2933
    %v3626 = vmul.f32 %v3599, %v2934
    %v3627 = vmul.f32 %v3603, %v2935
    %v3628 = vmul.f32 %v3607, %v2936
    %v3629 = vmul.f32 %v3611, %v2937
    %v3630 = vmul.f32 %v3579, %v2938
    %v3631 = vmul.f32 %v3583, %v2939
    %v3632 = vmul.f32 %v3587, %v2940
    %v3633 = vmul.f32 %v3591, %v2941
    %v3634 = vmul.f32 %v3595, %v2942
    %v3635 = vmul.f32 %v3599, %v2943
    %v3636 = vmul.f32 %v3603, %v2944
    %v3637 = vmul.f32 %v3607, %v2945
    %v3638 = vmul.f32 %v3611, %v2946
    %v3639 = vmul.f32 %v3579, %v2947
    %v3640 = vmul.f32 %v3583, %v2948
    %v3641 = vmul.f32 %v3587, %v2949
    %v3642 = vmul.f32 %v3591, %v2950
    %v3643 = vmul.f32 %v3595, %v2951
    %v3644 = vmul.f32 %v3599, %v2952
    %v3645 = vmul.f32 %v3603, %v2953
    %v3646 = vmul.f32 %v3607, %v2954
    %v3647 = vmul.f32 %v3611, %v2955
    %v3648 = vmul.f32 %v3579, %v2956
    %v3649 = vmul.f32 %v3583, %v2957
    %v3650 = vmul.f32 %v3587, %v2958
    %v3651 = vmul.f32 %v3591, %v2959
    %v3652 = vmul.f32 %v3595, %v2960
    %v3653 = vmul.f32 %v3599, %v2961
    %v3654 = vmul.f32 %v3603, %v2962
    %v3655 = vmul.f32 %v3607, %v2963
    %v3656 = vmul.f32 %v3611, %v2964
    %v3657 = vmul.f32 %v3579, %v2965
    %v3658 = vmul.f32 %v3583, %v2966
    %v3659 = vmul.f32 %v3587, %v2967
    %v3660 = vmul.f32 %v3591, %v2968
    %v3661 = vmul.f32 %v3595, %v2969
    %v3662 = vmul.f32 %v3599, %v2970
    %v3663 = vmul.f32 %v3603, %v2971
    %v3664 = vmul.f32 %v3607, %v2972
    %v3665 = vmul.f32 %v3611, %v2973
    %v3666 = vmul.f32 %v3579, %v2974
    %v3667 = vmul.f32 %v3583, %v2975
    %v3668 = vmul.f32 %v3587, %v2976
    %v3669 = vmul.f32 %v3591, %v2977
    %v3670 = vmul.f32 %v3595, %v2978
    %v3671 = vmul.f32 %v3599, %v2979
    %v3672 = vmul.f32 %v3603, %v2980
    %v3673 = vmul.f32 %v3607, %v2981
    %v3674 = vmul.f32 %v3611, %v2982
    %v3675 = vmul.f32 %v3579, %v2983
    %v3676 = vmul.f32 %v3583, %v2984
    %v3677 = vmul.f32 %v3587, %v2985
    %v3678 = vmul.f32 %v3591, %v2986
    %v3679 = vmul.f32 %v3595, %v2987
    %v3680 = vmul.f32 %v3599, %v2988
    %v3681 = vmul.f32 %v3603, %v2989
    %v3682 = vmul.f32 %v3607, %v2990
    %v3683 = vmul.f32 %v3611, %v2991
    %v3684 = vmul.f32 %v3579, %v2992
    %v3685 = vmul.f32 %v3583, %v2993
    %v3686 = vmul.f32 %v3587, %v2994
    %v3687 = vmul.f32 %v3591, %v2995
    %v3688 = vmul.f32 %v3595, %v2996
    %v3689 = vmul.f32 %v3599, %v2997
    %v3690 = vmul.f32 %v3603, %v2998
    %v3691 = vmul.f32 %v3607, %v2999
    %v3692 = vmul.f32 %v3611, %v3000
    %v3693 = vadd.f32 %v3502, %v3621
    %v3694 = vadd.f32 %v3503, %v3622
    %v3695 = vadd.f32 %v3504, %v3623
    %v3696 = vadd.f32 %v3505, %v3624
    %v3697 = vadd.f32 %v3506, %v3625
    %v3698 = vadd.f32 %v3507, %v3626
    %v3699 = vadd.f32 %v3508, %v3627
    %v3700 = vadd.f32 %v3509, %v3628
    %v3701 = vadd.f32 %v3510, %v3629
    %v3702 = vadd.f32 %v3511, %v3630
    %v3703 = vadd.f32 %v3512, %v3631
    %v3704 = vadd.f32 %v3513, %v3632
    %v3705 = vadd.f32 %v3514, %v3633
    %v3706 = vadd.f32 %v3515, %v3634
    %v3707 = vadd.f32 %v3516, %v3635
    %v3708 = vadd.f32 %v3517, %v3636
    %v3709 = vadd.f32 %v3518, %v3637
    %v3710 = vadd.f32 %v3519, %v3638
    %v3711 = vadd.f32 %v3520, %v3639
    %v3712 = vadd.f32 %v3521, %v3640
    %v3713 = vadd.f32 %v3522, %v3641
    %v3714 = vadd.f32 %v3523, %v3642
    %v3715 = vadd.f32 %v3524, %v3643
    %v3716 = vadd.f32 %v3525, %v3644
    %v3717 = vadd.f32 %v3526, %v3645
    %v3718 = vadd.f32 %v3527, %v3646
    %v3719 = vadd.f32 %v3528, %v3647
    %v3720 = vadd.f32 %v3529, %v3648
    %v3721 = vadd.f32 %v3530, %v3649
    %v3722 = vadd.f32 %v3531, %v3650
    %v3723 = vadd.f32 %v3532, %v3651
    %v3724 = vadd.f32 %v3533, %v3652
    %v3725 = vadd.f32 %v3534, %v3653
    %v3726 = vadd.f32 %v3535, %v3654
    %v3727 = vadd.f32 %v3536, %v3655
    %v3728 = vadd.f32 %v3537, %v3656
    %v3729 = vadd.f32 %v3538, %v3657
    %v3730 = vadd.f32 %v3539, %v3658
    %v3731 = vadd.f32 %v3540, %v3659
    %v3732 = vadd.f32 %v3541, %v3660
    %v3733 = vadd.f32 %v3542, %v3661
    %v3734 = vadd.f32 %v3543, %v3662
    %v3735 = vadd.f32 %v3544, %v3663
    %v3736 = vadd.f32 %v3545, %v3664
    %v3737 = vadd.f32 %v3546, %v3665
    %v3738 = vadd.f32 %v3547, %v3666
    %v3739 = vadd.f32 %v3548, %v3667
    %v3740 = vadd.f32 %v3549, %v3668
    %v3741 = vadd.f32 %v3550, %v3669
    %v3742 = vadd.f32 %v3551, %v3670
    %v3743 = vadd.f32 %v3552, %v3671
    %v3744 = vadd.f32 %v3553, %v3672
    %v3745 = vadd.f32 %v3554, %v3673
    %v3746 = vadd.f32 %v3555, %v3674
    %v3747 = vadd.f32 %v3556, %v3675
    %v3748 = vadd.f32 %v3557, %v3676
    %v3749 = vadd.f32 %v3558, %v3677
    %v3750 = vadd.f32 %v3559, %v3678
    %v3751 = vadd.f32 %v3560, %v3679
    %v3752 = vadd.f32 %v3561, %v3680
    %v3753 = vadd.f32 %v3562, %v3681
    %v3754 = vadd.f32 %v3563, %v3682
    %v3755 = vadd.f32 %v3564, %v3683
    %v3756 = vadd.f32 %v3565, %v3684
    %v3757 = vadd.f32 %v3566, %v3685
    %v3758 = vadd.f32 %v3567, %v3686
    %v3759 = vadd.f32 %v3568, %v3687
    %v3760 = vadd.f32 %v3569, %v3688
    %v3761 = vadd.f32 %v3570, %v3689
    %v3762 = vadd.f32 %v3571, %v3690
    %v3763 = vadd.f32 %v3572, %v3691
    %v3764 = vadd.f32 %v3573, %v3692
    %v3767 = vlaneseq
    %v3768 = vshrl.u32 %v3767, 7
    %v3769 = vsub.s32 0, %v3768
    %v3770 = vrot.slane %v2036, %v3769
    %v3771 = vlaneseq
    %v3772 = vshrl.u32 %v3771, 7
    %v3773 = vsub.s32 1, %v3772
    %v3774 = vrot.slane %v2036, %v3773
    %v3775 = vlaneseq
    %v3776 = vshrl.u32 %v3775, 7
    %v3777 = vsub.s32 2, %v3776
    %v3778 = vrot.slane %v2036, %v3777
    %v3779 = vlaneseq
    %v3780 = vshrl.u32 %v3779, 7
    %v3781 = vsub.s32 3, %v3780
    %v3782 = vrot.slane %v2036, %v3781
    %v3783 = vlaneseq
    %v3784 = vshrl.u32 %v3783, 7
    %v3785 = vsub.s32 4, %v3784
    %v3786 = vrot.slane %v2036, %v3785
    %v3787 = vlaneseq
    %v3788 = vshrl.u32 %v3787, 7
    %v3789 = vsub.s32 5, %v3788
    %v3790 = vrot.slane %v2036, %v3789
    %v3791 = vlaneseq
    %v3792 = vshrl.u32 %v3791, 7
    %v3793 = vsub.s32 6, %v3792
    %v3794 = vrot.slane %v2036, %v3793
    %v3795 = vlaneseq
    %v3796 = vshrl.u32 %v3795, 7
    %v3797 = vsub.s32 7, %v3796
    %v3798 = vrot.slane %v2036, %v3797
    %v3799 = vlaneseq
    %v3800 = vshrl.u32 %v3799, 7
    %v3801 = vsub.s32 0, %v3800
    %v3802 = vrot.slane %v2037, %v3801
    %v3812 = vmul.f32 %v3770, %v3001
    %v3813 = vmul.f32 %v3774, %v3002
    %v3814 = vmul.f32 %v3778, %v3003
    %v3815 = vmul.f32 %v3782, %v3004
    %v3816 = vmul.f32 %v3786, %v3005
    %v3817 = vmul.f32 %v3790, %v3006
    %v3818 = vmul.f32 %v3794, %v3007
    %v3819 = vmul.f32 %v3798, %v3008
    %v3820 = vmul.f32 %v3802, %v3009
    %v3821 = vmul.f32 %v3770, %v3010
    %v3822 = vmul.f32 %v3774, %v3011
    %v3823 = vmul.f32 %v3778, %v3012
    %v3824 = vmul.f32 %v3782, %v3013
    %v3825 = vmul.f32 %v3786, %v3014
    %v3826 = vmul.f32 %v3790, %v3015
    %v3827 = vmul.f32 %v3794, %v3016
    %v3828 = vmul.f32 %v3798, %v3017
    %v3829 = vmul.f32 %v3802, %v3018
    %v3830 = vmul.f32 %v3770, %v3019
    %v3831 = vmul.f32 %v3774, %v3020
    %v3832 = vmul.f32 %v3778, %v3021
    %v3833 = vmul.f32 %v3782, %v3022
    %v3834 = vmul.f32 %v3786, %v3023
    %v3835 = vmul.f32 %v3790, %v3024
    %v3836 = vmul.f32 %v3794, %v3025
    %v3837 = vmul.f32 %v3798, %v3026
    %v3838 = vmul.f32 %v3802, %v3027
    %v3839 = vmul.f32 %v3770, %v3028
    %v3840 = vmul.f32 %v3774, %v3029
    %v3841 = vmul.f32 %v3778, %v3030
    %v3842 = vmul.f32 %v3782, %v3031
    %v3843 = vmul.f32 %v3786, %v3032
    %v3844 = vmul.f32 %v3790, %v3033
    %v3845 = vmul.f32 %v3794, %v3034
    %v3846 = vmul.f32 %v3798, %v3035
    %v3847 = vmul.f32 %v3802, %v3036
    %v3848 = vmul.f32 %v3770, %v3037
    %v3849 = vmul.f32 %v3774, %v3038
    %v3850 = vmul.f32 %v3778, %v3039
    %v3851 = vmul.f32 %v3782, %v3040
    %v3852 = vmul.f32 %v3786, %v3041
    %v3853 = vmul.f32 %v3790, %v3042
    %v3854 = vmul.f32 %v3794, %v3043
    %v3855 = vmul.f32 %v3798, %v3044
    %v3856 = vmul.f32 %v3802, %v3045
    %v3857 = vmul.f32 %v3770, %v3046
    %v3858 = vmul.f32 %v3774, %v3047
    %v3859 = vmul.f32 %v3778, %v3048
    %v3860 = vmul.f32 %v3782, %v3049
    %v3861 = vmul.f32 %v3786, %v3050
    %v3862 = vmul.f32 %v3790, %v3051
    %v3863 = vmul.f32 %v3794, %v3052
    %v3864 = vmul.f32 %v3798, %v3053
    %v3865 = vmul.f32 %v3802, %v3054
    %v3866 = vmul.f32 %v3770, %v3055
    %v3867 = vmul.f32 %v3774, %v3056
    %v3868 = vmul.f32 %v3778, %v3057
    %v3869 = vmul.f32 %v3782, %v3058
    %v3870 = vmul.f32 %v3786, %v3059
    %v3871 = vmul.f32 %v3790, %v3060
    %v3872 = vmul.f32 %v3794, %v3061
    %v3873 = vmul.f32 %v3798, %v3062
    %v3874 = vmul.f32 %v3802, %v3063
    %v3875 = vmul.f32 %v3770, %v3064
    %v3876 = vmul.f32 %v3774, %v3065
    %v3877 = vmul.f32 %v3778, %v3066
    %v3878 = vmul.f32 %v3782, %v3067
    %v3879 = vmul.f32 %v3786, %v3068
    %v3880 = vmul.f32 %v3790, %v3069
    %v3881 = vmul.f32 %v3794, %v3070
    %v3882 = vmul.f32 %v3798, %v3071
    %v3883 = vmul.f32 %v3802, %v3072
    %v3884 = vadd.f32 %v3693, %v3812
    %v3885 = vadd.f32 %v3694, %v3813
    %v3886 = vadd.f32 %v3695, %v3814
    %v3887 = vadd.f32 %v3696, %v3815
    %v3888 = vadd.f32 %v3697, %v3816
    %v3889 = vadd.f32 %v3698, %v3817
    %v3890 = vadd.f32 %v3699, %v3818
    %v3891 = vadd.f32 %v3700, %v3819
    %v3892 = vadd.f32 %v3701, %v3820
    %v3893 = vadd.f32 %v3702, %v3821
    %v3894 = vadd.f32 %v3703, %v3822
    %v3895 = vadd.f32 %v3704, %v3823
    %v3896 = vadd.f32 %v3705, %v3824
    %v3897 = vadd.f32 %v3706, %v3825
    %v3898 = vadd.f32 %v3707, %v3826
    %v3899 = vadd.f32 %v3708, %v3827
    %v3900 = vadd.f32 %v3709, %v3828
    %v3901 = vadd.f32 %v3710, %v3829
    %v3902 = vadd.f32 %v3711, %v3830
    %v3903 = vadd.f32 %v3712, %v3831
    %v3904 = vadd.f32 %v3713, %v3832
    %v3905 = vadd.f32 %v3714, %v3833
    %v3906 = vadd.f32 %v3715, %v3834
    %v3907 = vadd.f32 %v3716, %v3835
    %v3908 = vadd.f32 %v3717, %v3836
    %v3909 = vadd.f32 %v3718, %v3837
    %v3910 = vadd.f32 %v3719, %v3838
    %v3911 = vadd.f32 %v3720, %v3839
    %v3912 = vadd.f32 %v3721, %v3840
    %v3913 = vadd.f32 %v3722, %v3841
    %v3914 = vadd.f32 %v3723, %v3842
    %v3915 = vadd.f32 %v3724, %v3843
    %v3916 = vadd.f32 %v3725, %v3844
    %v3917 = vadd.f32 %v3726, %v3845
    %v3918 = vadd.f32 %v3727, %v3846
    %v3919 = vadd.f32 %v3728, %v3847
    %v3920 = vadd.f32 %v3729, %v3848
    %v3921 = vadd.f32 %v3730, %v3849
    %v3922 = vadd.f32 %v3731, %v3850
    %v3923 = vadd.f32 %v3732, %v3851
    %v3924 = vadd.f32 %v3733, %v3852
    %v3925 = vadd.f32 %v3734, %v3853
    %v3926 = vadd.f32 %v3735, %v3854
    %v3927 = vadd.f32 %v3736, %v3855
    %v3928 = vadd.f32 %v3737, %v3856
    %v3929 = vadd.f32 %v3738, %v3857
    %v3930 = vadd.f32 %v3739, %v3858
    %v3931 = vadd.f32 %v3740, %v3859
    %v3932 = vadd.f32 %v3741, %v3860
    %v3933 = vadd.f32 %v3742, %v3861
    %v3934 = vadd.f32 %v3743, %v3862
    %v3935 = vadd.f32 %v3744, %v3863
    %v3936 = vadd.f32 %v3745, %v3864
    %v3937 = vadd.f32 %v3746, %v3865
    %v3938 = vadd.f32 %v3747, %v3866
    %v3939 = vadd.f32 %v3748, %v3867
    %v3940 = vadd.f32 %v3749, %v3868
    %v3941 = vadd.f32 %v3750, %v3869
    %v3942 = vadd.f32 %v3751, %v3870
    %v3943 = vadd.f32 %v3752, %v3871
    %v3944 = vadd.f32 %v3753, %v3872
    %v3945 = vadd.f32 %v3754, %v3873
    %v3946 = vadd.f32 %v3755, %v3874
    %v3947 = vadd.f32 %v3756, %v3875
    %v3948 = vadd.f32 %v3757, %v3876
    %v3949 = vadd.f32 %v3758, %v3877
    %v3950 = vadd.f32 %v3759, %v3878
    %v3951 = vadd.f32 %v3760, %v3879
    %v3952 = vadd.f32 %v3761, %v3880
    %v3953 = vadd.f32 %v3762, %v3881
    %v3954 = vadd.f32 %v3763, %v3882
    %v3955 = vadd.f32 %v3764, %v3883
    %s3956 = smul.addr %s67, 8
    %s3957 = scalar_lea.vmem [#allocation9], %s3956
    %3958 = vst [vmem:[%s3957] sm:$0xff] %v3884
    %3959 = vst [vmem:[%s3957 + $0x8] sm:$0xff] %v3885
    %3960 = vst [vmem:[%s3957 + $0x10] sm:$0xff] %v3886
    %3961 = vst [vmem:[%s3957 + $0x18] sm:$0xff] %v3887
    %3962 = vst [vmem:[%s3957 + $0x20] sm:$0xff] %v3888
    %3963 = vst [vmem:[%s3957 + $0x28] sm:$0xff] %v3889
    %3964 = vst [vmem:[%s3957 + $0x30] sm:$0xff] %v3890
    %3965 = vst [vmem:[%s3957 + $0x38] sm:$0xff] %v3891
    %3966 = vst [vmem:[%s3957 + $0x40] sm:$0xff] %v3892
    %3967 = vst [vmem:[%s3957 + $0x48] sm:$0xff] %v3893
    %3968 = vst [vmem:[%s3957 + $0x50] sm:$0xff] %v3894
    %3969 = vst [vmem:[%s3957 + $0x58] sm:$0xff] %v3895
    %3970 = vst [vmem:[%s3957 + $0x60] sm:$0xff] %v3896
    %3971 = vst [vmem:[%s3957 + $0x68] sm:$0xff] %v3897
    %3972 = vst [vmem:[%s3957 + $0x70] sm:$0xff] %v3898
    %3973 = vst [vmem:[%s3957 + $0x78] sm:$0xff] %v3899
    %3974 = vst [vmem:[%s3957 + $0x80] sm:$0xff] %v3900
    %3975 = vst [vmem:[%s3957 + $0x88] sm:$0xff] %v3901
    %3976 = vst [vmem:[%s3957 + $0x90] sm:$0xff] %v3902
    %3977 = vst [vmem:[%s3957 + $0x98] sm:$0xff] %v3903
    %3978 = vst [vmem:[%s3957 + $0xa0] sm:$0xff] %v3904
    %3979 = vst [vmem:[%s3957 + $0xa8] sm:$0xff] %v3905
    %3980 = vst [vmem:[%s3957 + $0xb0] sm:$0xff] %v3906
    %3981 = vst [vmem:[%s3957 + $0xb8] sm:$0xff] %v3907
    %3982 = vst [vmem:[%s3957 + $0xc0] sm:$0xff] %v3908
    %3983 = vst [vmem:[%s3957 + $0xc8] sm:$0xff] %v3909
    %3984 = vst [vmem:[%s3957 + $0xd0] sm:$0xff] %v3910
    %3985 = vst [vmem:[%s3957 + $0xd8] sm:$0xff] %v3911
    %3986 = vst [vmem:[%s3957 + $0xe0] sm:$0xff] %v3912
    %3987 = vst [vmem:[%s3957 + $0xe8] sm:$0xff] %v3913
    %3988 = vst [vmem:[%s3957 + $0xf0] sm:$0xff] %v3914
    %3989 = vst [vmem:[%s3957 + $0xf8] sm:$0xff] %v3915
    %3990 = vst [vmem:[%s3957 + $0x100] sm:$0xff] %v3916
    %3991 = vst [vmem:[%s3957 + $0x108] sm:$0xff] %v3917
    %3992 = vst [vmem:[%s3957 + $0x110] sm:$0xff] %v3918
    %3993 = vst [vmem:[%s3957 + $0x118] sm:$0xff] %v3919
    %3994 = vst [vmem:[%s3957 + $0x120] sm:$0xff] %v3920
    %3995 = vst [vmem:[%s3957 + $0x128] sm:$0xff] %v3921
    %3996 = vst [vmem:[%s3957 + $0x130] sm:$0xff] %v3922
    %3997 = vst [vmem:[%s3957 + $0x138] sm:$0xff] %v3923
    %3998 = vst [vmem:[%s3957 + $0x140] sm:$0xff] %v3924
    %3999 = vst [vmem:[%s3957 + $0x148] sm:$0xff] %v3925
    %4000 = vst [vmem:[%s3957 + $0x150] sm:$0xff] %v3926
    %4001 = vst [vmem:[%s3957 + $0x158] sm:$0xff] %v3927
    %4002 = vst [vmem:[%s3957 + $0x160] sm:$0xff] %v3928
    %4003 = vst [vmem:[%s3957 + $0x168] sm:$0xff] %v3929
    %4004 = vst [vmem:[%s3957 + $0x170] sm:$0xff] %v3930
    %4005 = vst [vmem:[%s3957 + $0x178] sm:$0xff] %v3931
    %4006 = vst [vmem:[%s3957 + $0x180] sm:$0xff] %v3932
    %4007 = vst [vmem:[%s3957 + $0x188] sm:$0xff] %v3933
    %4008 = vst [vmem:[%s3957 + $0x190] sm:$0xff] %v3934
    %4009 = vst [vmem:[%s3957 + $0x198] sm:$0xff] %v3935
    %4010 = vst [vmem:[%s3957 + $0x1a0] sm:$0xff] %v3936
    %4011 = vst [vmem:[%s3957 + $0x1a8] sm:$0xff] %v3937
    %4012 = vst [vmem:[%s3957 + $0x1b0] sm:$0xff] %v3938
    %4013 = vst [vmem:[%s3957 + $0x1b8] sm:$0xff] %v3939
    %4014 = vst [vmem:[%s3957 + $0x1c0] sm:$0xff] %v3940
    %4015 = vst [vmem:[%s3957 + $0x1c8] sm:$0xff] %v3941
    %4016 = vst [vmem:[%s3957 + $0x1d0] sm:$0xff] %v3942
    %4017 = vst [vmem:[%s3957 + $0x1d8] sm:$0xff] %v3943
    %4018 = vst [vmem:[%s3957 + $0x1e0] sm:$0xff] %v3944
    %4019 = vst [vmem:[%s3957 + $0x1e8] sm:$0xff] %v3945
    %4020 = vst [vmem:[%s3957 + $0x1f0] sm:$0xff] %v3946
    %4021 = vst [vmem:[%s3957 + $0x1f8] sm:$0xff] %v3947
    %4022 = vst [vmem:[%s3957 + $0x200] sm:$0xff] %v3948
    %4023 = vst [vmem:[%s3957 + $0x208] sm:$0xff] %v3949
    %4024 = vst [vmem:[%s3957 + $0x210] sm:$0xff] %v3950
    %4025 = vst [vmem:[%s3957 + $0x218] sm:$0xff] %v3951
    %4026 = vst [vmem:[%s3957 + $0x220] sm:$0xff] %v3952
    %4027 = vst [vmem:[%s3957 + $0x228] sm:$0xff] %v3953
    %4028 = vst [vmem:[%s3957 + $0x230] sm:$0xff] %v3954
    %4029 = vst [vmem:[%s3957 + $0x238] sm:$0xff] %v3955
    // Predicated region
    $region26: #{tpu_custom_call.1} parent=1 // pred_check
      _
    $region27: #{tpu_custom_call.1} parent=1 // pred_check_branch
      %4031 = sbr.rel (0) target = $region29
    $region28: #{tpu_custom_call.1} parent=1 // pred_region
      %s4033 = ssub.s32 9216, 9216
      %4034 = vsyncadd [#allocation4], %s4033
      %s4035 = sshll.u32 [#allocation9], 4
      %s4036 = int_to_ptr.vmem [resolvable:$true] %s4035
      %4041 = dma.vmem_to_hbm [thread:$0]  %s4036, 9216, %s3, [#allocation4], 1152, 1152, 72
    $region29: #{tpu_custom_call.1} parent=1 // pred_fallthru
      _
    // Predicated region
    $region30: #{tpu_custom_call.1} parent=1 // pred_check
      _
    $region31: #{tpu_custom_call.1} parent=1 // pred_check_branch
      %4043 = sbr.rel (0) target = $region33
    $region32: #{tpu_custom_call.1} parent=1 // pred_region
      %4044 = dma.done [#allocation4], 9216
    $region33: #{tpu_custom_call.1} parent=1 // pred_fallthru
      _
    %4045 = vsyncpa [#allocation3], 1
    %4046 = vsyncpa [#allocation8], 1
    %4047 = vsyncpa [#allocation4], 1
    %4048 = vsyncpa [#allocation5], 1

</llo_original>
